<compile_context>
chip_gen: v7x
topology: tpu7x:2x2x1
jax: 0.10.0
libtpu: 0.0.40
codegen_flags: <defaults>
</compile_context>

<pallas_src>
import functools

import jax
import jax.numpy as jnp
from jax import lax
from jax.experimental import pallas as pl
from jax.experimental.pallas import tpu as pltpu


def _round_up(x, m):
    return (x + m - 1) // m * m


def _merge_run_dual_kernel(mask_ref, x_ref,
                           wA_ref, bA_ref, wB_ref, bB_ref,
                           w3_ref, b3_ref, o_ref, s_ref,
                           *, cp, wp, fp, lpad, wbuf, cdtype):
    """One batch element per grid step.

    mask_ref : (1, fp)   f32      1.0 at true-image positions of the frame
    x_ref    : (1, Cp, wbuf) f32  flat input buffer, frame at [lpad, lpad+fp)
    wA_ref   : (2Cp, 18Cp)        block-diag [w1a(d=1), w2a(d=3)]
    wB_ref   : (2Cp, 18Cp)        block-diag [w1b(d=2), w2b(d=4)]
    w3_ref   : (Cp, 18Cp)         body3 weights over the 2Cp concat channels
    b*_ref   : (rows, 1) f32
    o_ref    : (1, Cp, fp) f32    body3 output + f32 residual over the frame
    s_ref    : (2Cp, wbuf) cdtype persistent activation scratch
    """
    mask = mask_ref[...]                               # (1, fp), f32

    # Zero the scratch strips outside the frame window every step (cheap,
    # lane-aligned, and megacore-safe); [lpad, lpad+fp) is fully rewritten.
    s_ref[:, :lpad] = jnp.zeros((2 * cp, lpad), cdtype)
    s_ref[:, lpad + fp:] = jnp.zeros((2 * cp, wbuf - lpad - fp), cdtype)

    def offsets(dil):
        # Lane offsets of the 9 taps of a 3x3 conv with dilation `dil`
        # on the flattened (hp, wp) frame.
        return [lpad + (ky - 1) * dil * wp + (kx - 1) * dil
                for ky in range(3) for kx in range(3)]

    def win_value(buf, dil):
        # 9 lane-shifted windows of a (rows, wbuf) value.
        return [lax.slice_in_dim(buf, s, s + fp, axis=1) for s in offsets(dil)]

    def win_scratch(r0, r1, dil):
        # 9 lane-shifted windows read directly from the scratch ref.
        return [s_ref[r0:r1, s:s + fp] for s in offsets(dil)]

    def relu_mask(acc):
        # ReLU + zero everything outside the true image (this realizes the
        # zero padding seen by the *next* conv), cast to the compute dtype.
        return (jnp.maximum(acc, 0.0) * mask).astype(cdtype)

    # ---- Stage A: body1 conv(d=1) and body2 conv(d=3) on x, fused ---------
    x_f32 = x_ref[0]                                   # (Cp, wbuf), f32
    xb = x_f32.astype(cdtype)
    pA = jnp.concatenate(win_value(xb, 1) + win_value(xb, 3), axis=0)
    accA = jnp.dot(wA_ref[...], pA,
                   preferred_element_type=jnp.float32) + bA_ref[...]
    s_ref[:, lpad:lpad + fp] = relu_mask(accA)         # rows [0,Cp)=h1, [Cp,2Cp)=h2

    # ---- Stage B: body1 conv(d=2) on h1 and body2 conv(d=4) on h2, fused --
    pB = jnp.concatenate(win_scratch(0, cp, 2) + win_scratch(cp, 2 * cp, 4),
                         axis=0)
    accB = jnp.dot(wB_ref[...], pB,
                   preferred_element_type=jnp.float32) + bB_ref[...]
    s_ref[:, lpad:lpad + fp] = relu_mask(accB)         # rows = [out1 ; out2]

    # ---- Stage C: body3 conv(d=1) over cat([out1, out2]) + residual -------
    pC = jnp.concatenate(win_scratch(0, 2 * cp, 1), axis=0)
    acc3 = jnp.dot(w3_ref[...], pC,
                   preferred_element_type=jnp.float32) + b3_ref[...]
    c_out = jnp.maximum(acc3, 0.0)     # unmasked: host slices the interior
    x_res = lax.slice_in_dim(x_f32, lpad, lpad + fp, axis=1)  # exact f32 skip
    o_ref[0] = c_out + x_res


def merge_run_dual_pallas(x, params, *, compute_dtype=jnp.bfloat16):
    """x: (N, C, H, W) f32; params: torch-layout conv weights/biases."""
    n, c, h, w = x.shape
    k = 3
    pad = 4                                    # max padding / dilation used
    hp, wp = h + 2 * pad, w + 2 * pad
    frame = hp * wp                            # flattened padded frame
    fp = _round_up(frame, 128)                 # lane-aligned compute width
    offmax = 4 * wp + 4                        # largest tap offset (dil=4)
    lpad = _round_up(offmax, 128)
    wbuf = _round_up(lpad + fp + offmax, 128)
    cp = _round_up(c, 8)                       # sublane-aligned channel count

    # Flat zero-padded image buffer (N, Cp, wbuf), kept in f32 so the residual
    # add inside the kernel is exact even for bf16 compute.
    xp = jnp.pad(x.astype(jnp.float32),
                 ((0, 0), (0, cp - c), (pad, pad), (pad, pad)))
    xbuf = jnp.pad(xp.reshape(n, cp, frame),
                   ((0, 0), (0, 0), (lpad, wbuf - lpad - frame)))

    # Mask of true-image positions inside the (lane-aligned) frame.
    m = jnp.zeros((hp, wp), jnp.float32).at[pad:pad + h, pad:pad + w].set(1.0)
    mask = jnp.pad(m.reshape(1, frame), ((0, 0), (0, fp - frame)))

    def pack_w(wt):
        # torch (Cout, Cin, 3, 3) -> (Cp, 9*Cp), columns ordered
        # (ky, kx, padded_channel) to match the window stacking.
        cout, cin, _, _ = wt.shape
        wz = jnp.zeros((cp, cp, k, k), jnp.float32)
        wz = wz.at[:cout, :cin].set(wt.astype(jnp.float32))
        return jnp.transpose(wz, (0, 2, 3, 1)).reshape(cp, k * k * cp)

    def pack_w3(wt):
        # torch (Cout, 2*Cin, 3, 3) -> (Cp, 9*2Cp); group g channels land in
        # padded channel rows [g*Cp, g*Cp+Cin) to match [h1 ; h2] scratch rows.
        cout, cin_tot, _, _ = wt.shape
        cin_g = cin_tot // 2
        wz = jnp.zeros((cp, 2 * cp, k, k), jnp.float32)
        wz = wz.at[:cout, :cin_g].set(wt[:, :cin_g].astype(jnp.float32))
        wz = wz.at[:cout, cp:cp + cin_g].set(wt[:, cin_g:].astype(jnp.float32))
        wz = jnp.transpose(wz, (0, 2, 3, 1)).reshape(cp, k * k * 2 * cp)
        return wz.astype(compute_dtype)

    def block_diag(wa, wb):
        # [[wa, 0], [0, wb]] : (2Cp, 18Cp) fused branch-pair weight.
        cols = wa.shape[1]
        z = jnp.zeros((2 * cp, 2 * cols), jnp.float32)
        z = z.at[:cp, :cols].set(wa)
        z = z.at[cp:, cols:].set(wb)
        return z.astype(compute_dtype)

    def pack_b(bt):
        return jnp.pad(bt.astype(jnp.float32),
                       (0, cp - bt.shape[0])).reshape(cp, 1)

    def pack_b2(ba, bb):
        return jnp.concatenate([pack_b(ba), pack_b(bb)], axis=0)   # (2Cp, 1)

    wA = block_diag(pack_w(params["w1a"]), pack_w(params["w2a"]))
    bA = pack_b2(params["b1a"], params["b2a"])
    wB = block_diag(pack_w(params["w1b"]), pack_w(params["w2b"]))
    bB = pack_b2(params["b1b"], params["b2b"])
    w3 = pack_w3(params["w3"])
    b3 = pack_b(params["b3"])

    kernel = functools.partial(_merge_run_dual_kernel, cp=cp, wp=wp, fp=fp,
                               lpad=lpad, wbuf=wbuf, cdtype=compute_dtype)
    const2d = lambda i: (0, 0)

    out_frame = pl.pallas_call(
        kernel,
        out_shape=jax.ShapeDtypeStruct((n, cp, fp), jnp.float32),
        grid_spec=pltpu.PrefetchScalarGridSpec(
            num_scalar_prefetch=0,
            grid=(n,),
            in_specs=[
                pl.BlockSpec((1, fp), const2d),                     # mask
                pl.BlockSpec((1, cp, wbuf), lambda i: (i, 0, 0)),   # x buffer
                pl.BlockSpec(wA.shape, const2d), pl.BlockSpec(bA.shape, const2d),
                pl.BlockSpec(wB.shape, const2d), pl.BlockSpec(bB.shape, const2d),
                pl.BlockSpec(w3.shape, const2d), pl.BlockSpec(b3.shape, const2d),
            ],
            out_specs=pl.BlockSpec((1, cp, fp), lambda i: (i, 0, 0)),
            scratch_shapes=[pltpu.VMEM((2 * cp, wbuf), compute_dtype)],
        ),
        compiler_params=pltpu.CompilerParams(
            dimension_semantics=("parallel",)),
    )(mask, xbuf, wA, bA, wB, bB, w3, b3)

    # Extract true channels and image interior of the padded frame.
    out = out_frame[:, :c, :frame].reshape(n, c, hp, wp)
    return out[:, :, pad:pad + h, pad:pad + w]


def merge_run_dual_reference(x, params):
    """Pure-JAX reference via lax dilated convolutions (NCHW)."""
    dn = lax.conv_dimension_numbers(x.shape, params["w1a"].shape,
                                    ("NCHW", "OIHW", "NCHW"))

    def conv(inp, wt, bt, dil):
        y = lax.conv_general_dilated(
            inp, wt, window_strides=(1, 1),
            padding=[(dil, dil), (dil, dil)],
            rhs_dilation=(dil, dil), dimension_numbers=dn)
        return y + bt.reshape(1, -1, 1, 1)

    o1 = jnp.maximum(conv(x, params["w1a"], params["b1a"], 1), 0.0)
    o1 = jnp.maximum(conv(o1, params["w1b"], params["b1b"], 2), 0.0)
    o2 = jnp.maximum(conv(x, params["w2a"], params["b2a"], 3), 0.0)
    o2 = jnp.maximum(conv(o2, params["w2b"], params["b2b"], 4), 0.0)
    cat = jnp.concatenate([o1, o2], axis=1)
    c_out = jnp.maximum(conv(cat, params["w3"], params["b3"], 1), 0.0)
    return c_out + x


if __name__ == "__main__":
    N, C, H, W, K = 2, 4, 16, 16, 3
    key = jax.random.PRNGKey(0)
    ks = jax.random.split(key, 11)

    def conv_w(k_, cout, cin):
        return (jax.random.normal(k_, (cout, cin, K, K), jnp.float32)
                / jnp.sqrt(cin * K * K))

    def conv_b(k_, cout):
        return 0.05 * jax.random.normal(k_, (cout,), jnp.float32)

    x = jax.random.normal(ks[0], (N, C, H, W), jnp.float32)
    params = {
        "w1a": conv_w(ks[1], C, C), "b1a": conv_b(ks[2], C),
        "w1b": conv_w(ks[3], C, C), "b1b": conv_b(ks[4], C),
        "w2a": conv_w(ks[5], C, C), "b2a": conv_b(ks[6], C),
        "w2b": conv_w(ks[7], C, C), "b2b": conv_b(ks[8], C),
        "w3": conv_w(ks[9], C, 2 * C), "b3": conv_b(ks[10], C),
    }

    ref = merge_run_dual_reference(x, params)

    # float32 compute path: tight check against the reference.
    out_f32 = jax.block_until_ready(
        merge_run_dual_pallas(x, params, compute_dtype=jnp.float32))
    assert out_f32.shape == (N, C, H, W)
    err_f32 = float(jnp.max(jnp.abs(out_f32 - ref)))
    assert err_f32 < 5e-4, f"f32 kernel mismatch vs reference: {err_f32}"

    # Default path: bf16 matmul operands, f32 accumulation + exact f32 skip.
    out_bf16 = jax.block_until_ready(merge_run_dual_pallas(x, params))
    err_bf16 = float(jnp.max(jnp.abs(out_bf16 - ref)))
    assert err_bf16 < 1e-1, f"bf16 kernel mismatch vs reference: {err_bf16}"

    print("KERNEL_OK")
</pallas_src>

<mosaic_0001>
module attributes {stable_mosaic.version = 11 : i64} {
  func.func @_merge_run_dual_kernel(%arg0: i32, %arg1: memref<1x640xf32, #tpu.memory_space<vmem>>, %arg2: memref<1x8x896xf32, #tpu.memory_space<vmem>>, %arg3: memref<16x144xf32, #tpu.memory_space<vmem>>, %arg4: memref<16x1xf32, #tpu.memory_space<vmem>>, %arg5: memref<16x144xf32, #tpu.memory_space<vmem>>, %arg6: memref<16x1xf32, #tpu.memory_space<vmem>>, %arg7: memref<8x144xf32, #tpu.memory_space<vmem>>, %arg8: memref<8x1xf32, #tpu.memory_space<vmem>>, %arg9: memref<1x8x640xf32, #tpu.memory_space<vmem>>, %arg10: memref<16x896xf32, #tpu.memory_space<vmem>>) attributes {dimension_semantics = [#tpu.dimension_semantics<parallel>], iteration_bounds = array<i64: 2>, scalar_prefetch = 0 : i64, scratch_operands = 1 : i64, tpu.core_type = #tpu.core_type<tc>, window_params = [{pipeline_mode = #tpu.pipeline_mode<synchronous>, transform_indices = @transform_0, window_bounds = array<i64: 1, 640>}, {transform_indices = @transform_1, window_bounds = array<i64: 1, 8, 896>}, {pipeline_mode = #tpu.pipeline_mode<synchronous>, transform_indices = @transform_2, window_bounds = array<i64: 16, 144>}, {pipeline_mode = #tpu.pipeline_mode<synchronous>, transform_indices = @transform_3, window_bounds = array<i64: 16, 1>}, {pipeline_mode = #tpu.pipeline_mode<synchronous>, transform_indices = @transform_4, window_bounds = array<i64: 16, 144>}, {pipeline_mode = #tpu.pipeline_mode<synchronous>, transform_indices = @transform_5, window_bounds = array<i64: 16, 1>}, {pipeline_mode = #tpu.pipeline_mode<synchronous>, transform_indices = @transform_6, window_bounds = array<i64: 8, 144>}, {pipeline_mode = #tpu.pipeline_mode<synchronous>, transform_indices = @transform_7, window_bounds = array<i64: 8, 1>}, {transform_indices = @transform_8, window_bounds = array<i64: 1, 8, 640>}]} {
    %c0 = arith.constant 0 : index
    %c0_0 = arith.constant 0 : index
    %0 = vector.load %arg1[%c0, %c0_0] : memref<1x640xf32, #tpu.memory_space<vmem>>, vector<1x640xf32>
    %cst = arith.constant 0.000000e+00 : f32
    %1 = vector.broadcast %cst : f32 to vector<16x128xf32>
    %c0_1 = arith.constant 0 : index
    %c0_2 = arith.constant 0 : index
    %2 = vector.load %arg10[%c0_1, %c0_2] : memref<16x896xf32, #tpu.memory_space<vmem>>, vector<16x128xf32>
    tpu.vector_store %arg10[%c0_1, %c0_2], %1 {strides = array<i32>} : memref<16x896xf32, #tpu.memory_space<vmem>>, vector<16x128xf32>,
    %cst_3 = arith.constant 0.000000e+00 : f32
    %3 = vector.broadcast %cst_3 : f32 to vector<16x128xf32>
    %c0_4 = arith.constant 0 : index
    %c768 = arith.constant 768 : index
    %4 = vector.load %arg10[%c0_4, %c768] : memref<16x896xf32, #tpu.memory_space<vmem>>, vector<16x128xf32>
    tpu.vector_store %arg10[%c0_4, %c768], %3 {strides = array<i32>} : memref<16x896xf32, #tpu.memory_space<vmem>>, vector<16x128xf32>,
    %c0_5 = arith.constant 0 : index
    %c0_6 = arith.constant 0 : index
    %c0_7 = arith.constant 0 : index
    %5 = vector.load %arg2[%c0_5, %c0_6, %c0_7] : memref<1x8x896xf32, #tpu.memory_space<vmem>>, vector<1x8x896xf32>
    %6 = vector.shape_cast %5 : vector<1x8x896xf32> to vector<8x896xf32>
    %7 = vector.extract_strided_slice %6 {offsets = [0, 103], sizes = [8, 640], strides = [1, 1]} : vector<8x896xf32> to vector<8x640xf32>
    %8 = vector.extract_strided_slice %6 {offsets = [0, 104], sizes = [8, 640], strides = [1, 1]} : vector<8x896xf32> to vector<8x640xf32>
    %9 = vector.extract_strided_slice %6 {offsets = [0, 105], sizes = [8, 640], strides = [1, 1]} : vector<8x896xf32> to vector<8x640xf32>
    %10 = vector.extract_strided_slice %6 {offsets = [0, 127], sizes = [8, 640], strides = [1, 1]} : vector<8x896xf32> to vector<8x640xf32>
    %11 = vector.extract_strided_slice %6 {offsets = [0, 128], sizes = [8, 640], strides = [1, 1]} : vector<8x896xf32> to vector<8x640xf32>
    %12 = vector.extract_strided_slice %6 {offsets = [0, 129], sizes = [8, 640], strides = [1, 1]} : vector<8x896xf32> to vector<8x640xf32>
    %13 = vector.extract_strided_slice %6 {offsets = [0, 151], sizes = [8, 640], strides = [1, 1]} : vector<8x896xf32> to vector<8x640xf32>
    %14 = vector.extract_strided_slice %6 {offsets = [0, 152], sizes = [8, 640], strides = [1, 1]} : vector<8x896xf32> to vector<8x640xf32>
    %15 = vector.extract_strided_slice %6 {offsets = [0, 153], sizes = [8, 640], strides = [1, 1]} : vector<8x896xf32> to vector<8x640xf32>
    %16 = vector.extract_strided_slice %6 {offsets = [0, 53], sizes = [8, 640], strides = [1, 1]} : vector<8x896xf32> to vector<8x640xf32>
    %17 = vector.extract_strided_slice %6 {offsets = [0, 56], sizes = [8, 640], strides = [1, 1]} : vector<8x896xf32> to vector<8x640xf32>
    %18 = vector.extract_strided_slice %6 {offsets = [0, 59], sizes = [8, 640], strides = [1, 1]} : vector<8x896xf32> to vector<8x640xf32>
    %19 = vector.extract_strided_slice %6 {offsets = [0, 125], sizes = [8, 640], strides = [1, 1]} : vector<8x896xf32> to vector<8x640xf32>
    %20 = vector.extract_strided_slice %6 {offsets = [0, 128], sizes = [8, 640], strides = [1, 1]} : vector<8x896xf32> to vector<8x640xf32>
    %21 = vector.extract_strided_slice %6 {offsets = [0, 131], sizes = [8, 640], strides = [1, 1]} : vector<8x896xf32> to vector<8x640xf32>
    %22 = vector.extract_strided_slice %6 {offsets = [0, 197], sizes = [8, 640], strides = [1, 1]} : vector<8x896xf32> to vector<8x640xf32>
    %23 = vector.extract_strided_slice %6 {offsets = [0, 200], sizes = [8, 640], strides = [1, 1]} : vector<8x896xf32> to vector<8x640xf32>
    %24 = vector.extract_strided_slice %6 {offsets = [0, 203], sizes = [8, 640], strides = [1, 1]} : vector<8x896xf32> to vector<8x640xf32>
    %25 = tpu.concatenate %7, %8, %9, %10, %11, %12, %13, %14, %15, %16, %17, %18, %19, %20, %21, %22 in 0 : vector<8x640xf32>, vector<8x640xf32>, vector<8x640xf32>, vector<8x640xf32>, vector<8x640xf32>, vector<8x640xf32>, vector<8x640xf32>, vector<8x640xf32>, vector<8x640xf32>, vector<8x640xf32>, vector<8x640xf32>, vector<8x640xf32>, vector<8x640xf32>, vector<8x640xf32>, vector<8x640xf32>, vector<8x640xf32> -> vector<128x640xf32>
    %26 = tpu.concatenate %23, %24 in 0 : vector<8x640xf32>, vector<8x640xf32> -> vector<16x640xf32>
    %27 = tpu.concatenate %25, %26 in 0 : vector<128x640xf32>, vector<16x640xf32> -> vector<144x640xf32>
    %c0_8 = arith.constant 0 : index
    %c0_9 = arith.constant 0 : index
    %28 = vector.load %arg3[%c0_8, %c0_9] : memref<16x144xf32, #tpu.memory_space<vmem>>, vector<16x144xf32>
    %cst_10 = arith.constant dense<0.000000e+00> : vector<16x640xf32>
    %29 = tpu.matmul %28, %27, %cst_10 {dimension_numbers = #tpu.dot_dimension_numbers<[1], [0], [0], [1], [0, 0, 1, 1], [], []>} : vector<16x144xf32>, vector<144x640xf32>, vector<16x640xf32> -> vector<16x640xf32>
    %c0_11 = arith.constant 0 : index
    %c0_12 = arith.constant 0 : index
    %30 = vector.load %arg4[%c0_11, %c0_12] : memref<16x1xf32, #tpu.memory_space<vmem>>, vector<16x1xf32>
    %31 = vector.broadcast %30 : vector<16x1xf32> to vector<16x640xf32>
    %32 = arith.addf %29, %31 : vector<16x640xf32>
    %cst_13 = arith.constant 0.000000e+00 : f32
    %33 = vector.broadcast %cst_13 : f32 to vector<16x640xf32>
    %34 = arith.maximumf %32, %33 : vector<16x640xf32>
    %35 = vector.broadcast %0 : vector<1x640xf32> to vector<16x640xf32>
    %36 = arith.mulf %34, %35 : vector<16x640xf32>
    %c0_14 = arith.constant 0 : index
    %c128 = arith.constant 128 : index
    %37 = vector.load %arg10[%c0_14, %c128] : memref<16x896xf32, #tpu.memory_space<vmem>>, vector<16x640xf32>
    tpu.vector_store %arg10[%c0_14, %c128], %36 {strides = array<i32>} : memref<16x896xf32, #tpu.memory_space<vmem>>, vector<16x640xf32>,
    %c0_15 = arith.constant 0 : index
    %c78 = arith.constant 78 : index
    %38 = vector.load %arg10[%c0_15, %c78] : memref<16x896xf32, #tpu.memory_space<vmem>>, vector<8x640xf32>
    %c0_16 = arith.constant 0 : index
    %c80 = arith.constant 80 : index
    %39 = vector.load %arg10[%c0_16, %c80] : memref<16x896xf32, #tpu.memory_space<vmem>>, vector<8x640xf32>
    %c0_17 = arith.constant 0 : index
    %c82 = arith.constant 82 : index
    %40 = vector.load %arg10[%c0_17, %c82] : memref<16x896xf32, #tpu.memory_space<vmem>>, vector<8x640xf32>
    %c0_18 = arith.constant 0 : index
    %c126 = arith.constant 126 : index
    %41 = vector.load %arg10[%c0_18, %c126] : memref<16x896xf32, #tpu.memory_space<vmem>>, vector<8x640xf32>
    %c0_19 = arith.constant 0 : index
    %c128_20 = arith.constant 128 : index
    %42 = vector.load %arg10[%c0_19, %c128_20] : memref<16x896xf32, #tpu.memory_space<vmem>>, vector<8x640xf32>
    %c0_21 = arith.constant 0 : index
    %c130 = arith.constant 130 : index
    %43 = vector.load %arg10[%c0_21, %c130] : memref<16x896xf32, #tpu.memory_space<vmem>>, vector<8x640xf32>
    %c0_22 = arith.constant 0 : index
    %c174 = arith.constant 174 : index
    %44 = vector.load %arg10[%c0_22, %c174] : memref<16x896xf32, #tpu.memory_space<vmem>>, vector<8x640xf32>
    %c0_23 = arith.constant 0 : index
    %c176 = arith.constant 176 : index
    %45 = vector.load %arg10[%c0_23, %c176] : memref<16x896xf32, #tpu.memory_space<vmem>>, vector<8x640xf32>
    %c0_24 = arith.constant 0 : index
    %c178 = arith.constant 178 : index
    %46 = vector.load %arg10[%c0_24, %c178] : memref<16x896xf32, #tpu.memory_space<vmem>>, vector<8x640xf32>
    %c8 = arith.constant 8 : index
    %c28 = arith.constant 28 : index
    %47 = vector.load %arg10[%c8, %c28] : memref<16x896xf32, #tpu.memory_space<vmem>>, vector<8x640xf32>
    %c8_25 = arith.constant 8 : index
    %c32 = arith.constant 32 : index
    %48 = vector.load %arg10[%c8_25, %c32] : memref<16x896xf32, #tpu.memory_space<vmem>>, vector<8x640xf32>
    %c8_26 = arith.constant 8 : index
    %c36 = arith.constant 36 : index
    %49 = vector.load %arg10[%c8_26, %c36] : memref<16x896xf32, #tpu.memory_space<vmem>>, vector<8x640xf32>
    %c8_27 = arith.constant 8 : index
    %c124 = arith.constant 124 : index
    %50 = vector.load %arg10[%c8_27, %c124] : memref<16x896xf32, #tpu.memory_space<vmem>>, vector<8x640xf32>
    %c8_28 = arith.constant 8 : index
    %c128_29 = arith.constant 128 : index
    %51 = vector.load %arg10[%c8_28, %c128_29] : memref<16x896xf32, #tpu.memory_space<vmem>>, vector<8x640xf32>
    %c8_30 = arith.constant 8 : index
    %c132 = arith.constant 132 : index
    %52 = vector.load %arg10[%c8_30, %c132] : memref<16x896xf32, #tpu.memory_space<vmem>>, vector<8x640xf32>
    %c8_31 = arith.constant 8 : index
    %c220 = arith.constant 220 : index
    %53 = vector.load %arg10[%c8_31, %c220] : memref<16x896xf32, #tpu.memory_space<vmem>>, vector<8x640xf32>
    %c8_32 = arith.constant 8 : index
    %c224 = arith.constant 224 : index
    %54 = vector.load %arg10[%c8_32, %c224] : memref<16x896xf32, #tpu.memory_space<vmem>>, vector<8x640xf32>
    %c8_33 = arith.constant 8 : index
    %c228 = arith.constant 228 : index
    %55 = vector.load %arg10[%c8_33, %c228] : memref<16x896xf32, #tpu.memory_space<vmem>>, vector<8x640xf32>
    %56 = tpu.concatenate %38, %39, %40, %41, %42, %43, %44, %45, %46, %47, %48, %49, %50, %51, %52, %53 in 0 : vector<8x640xf32>, vector<8x640xf32>, vector<8x640xf32>, vector<8x640xf32>, vector<8x640xf32>, vector<8x640xf32>, vector<8x640xf32>, vector<8x640xf32>, vector<8x640xf32>, vector<8x640xf32>, vector<8x640xf32>, vector<8x640xf32>, vector<8x640xf32>, vector<8x640xf32>, vector<8x640xf32>, vector<8x640xf32> -> vector<128x640xf32>
    %57 = tpu.concatenate %54, %55 in 0 : vector<8x640xf32>, vector<8x640xf32> -> vector<16x640xf32>
    %58 = tpu.concatenate %56, %57 in 0 : vector<128x640xf32>, vector<16x640xf32> -> vector<144x640xf32>
    %c0_34 = arith.constant 0 : index
    %c0_35 = arith.constant 0 : index
    %59 = vector.load %arg5[%c0_34, %c0_35] : memref<16x144xf32, #tpu.memory_space<vmem>>, vector<16x144xf32>
    %cst_36 = arith.constant dense<0.000000e+00> : vector<16x640xf32>
    %60 = tpu.matmul %59, %58, %cst_36 {dimension_numbers = #tpu.dot_dimension_numbers<[1], [0], [0], [1], [0, 0, 1, 1], [], []>} : vector<16x144xf32>, vector<144x640xf32>, vector<16x640xf32> -> vector<16x640xf32>
    %c0_37 = arith.constant 0 : index
    %c0_38 = arith.constant 0 : index
    %61 = vector.load %arg6[%c0_37, %c0_38] : memref<16x1xf32, #tpu.memory_space<vmem>>, vector<16x1xf32>
    %62 = vector.broadcast %61 : vector<16x1xf32> to vector<16x640xf32>
    %63 = arith.addf %60, %62 : vector<16x640xf32>
    %cst_39 = arith.constant 0.000000e+00 : f32
    %64 = vector.broadcast %cst_39 : f32 to vector<16x640xf32>
    %65 = arith.maximumf %63, %64 : vector<16x640xf32>
    %66 = vector.broadcast %0 : vector<1x640xf32> to vector<16x640xf32>
    %67 = arith.mulf %65, %66 : vector<16x640xf32>
    %c0_40 = arith.constant 0 : index
    %c128_41 = arith.constant 128 : index
    %68 = vector.load %arg10[%c0_40, %c128_41] : memref<16x896xf32, #tpu.memory_space<vmem>>, vector<16x640xf32>
    tpu.vector_store %arg10[%c0_40, %c128_41], %67 {strides = array<i32>} : memref<16x896xf32, #tpu.memory_space<vmem>>, vector<16x640xf32>,
    %c0_42 = arith.constant 0 : index
    %c103 = arith.constant 103 : index
    %69 = vector.load %arg10[%c0_42, %c103] : memref<16x896xf32, #tpu.memory_space<vmem>>, vector<16x640xf32>
    %c0_43 = arith.constant 0 : index
    %c104 = arith.constant 104 : index
    %70 = vector.load %arg10[%c0_43, %c104] : memref<16x896xf32, #tpu.memory_space<vmem>>, vector<16x640xf32>
    %c0_44 = arith.constant 0 : index
    %c105 = arith.constant 105 : index
    %71 = vector.load %arg10[%c0_44, %c105] : memref<16x896xf32, #tpu.memory_space<vmem>>, vector<16x640xf32>
    %c0_45 = arith.constant 0 : index
    %c127 = arith.constant 127 : index
    %72 = vector.load %arg10[%c0_45, %c127] : memref<16x896xf32, #tpu.memory_space<vmem>>, vector<16x640xf32>
    %c0_46 = arith.constant 0 : index
    %c128_47 = arith.constant 128 : index
    %73 = vector.load %arg10[%c0_46, %c128_47] : memref<16x896xf32, #tpu.memory_space<vmem>>, vector<16x640xf32>
    %c0_48 = arith.constant 0 : index
    %c129 = arith.constant 129 : index
    %74 = vector.load %arg10[%c0_48, %c129] : memref<16x896xf32, #tpu.memory_space<vmem>>, vector<16x640xf32>
    %c0_49 = arith.constant 0 : index
    %c151 = arith.constant 151 : index
    %75 = vector.load %arg10[%c0_49, %c151] : memref<16x896xf32, #tpu.memory_space<vmem>>, vector<16x640xf32>
    %c0_50 = arith.constant 0 : index
    %c152 = arith.constant 152 : index
    %76 = vector.load %arg10[%c0_50, %c152] : memref<16x896xf32, #tpu.memory_space<vmem>>, vector<16x640xf32>
    %c0_51 = arith.constant 0 : index
    %c153 = arith.constant 153 : index
    %77 = vector.load %arg10[%c0_51, %c153] : memref<16x896xf32, #tpu.memory_space<vmem>>, vector<16x640xf32>
    %78 = tpu.concatenate %69, %70, %71, %72, %73, %74, %75, %76, %77 in 0 : vector<16x640xf32>, vector<16x640xf32>, vector<16x640xf32>, vector<16x640xf32>, vector<16x640xf32>, vector<16x640xf32>, vector<16x640xf32>, vector<16x640xf32>, vector<16x640xf32> -> vector<144x640xf32>
    %c0_52 = arith.constant 0 : index
    %c0_53 = arith.constant 0 : index
    %79 = vector.load %arg7[%c0_52, %c0_53] : memref<8x144xf32, #tpu.memory_space<vmem>>, vector<8x144xf32>
    %cst_54 = arith.constant dense<0.000000e+00> : vector<8x640xf32>
    %80 = tpu.matmul %79, %78, %cst_54 {dimension_numbers = #tpu.dot_dimension_numbers<[1], [0], [0], [1], [0, 0, 1, 1], [], []>} : vector<8x144xf32>, vector<144x640xf32>, vector<8x640xf32> -> vector<8x640xf32>
    %c0_55 = arith.constant 0 : index
    %c0_56 = arith.constant 0 : index
    %81 = vector.load %arg8[%c0_55, %c0_56] : memref<8x1xf32, #tpu.memory_space<vmem>>, vector<8x1xf32>
    %82 = vector.broadcast %81 : vector<8x1xf32> to vector<8x640xf32>
    %83 = arith.addf %80, %82 : vector<8x640xf32>
    %cst_57 = arith.constant 0.000000e+00 : f32
    %84 = vector.broadcast %cst_57 : f32 to vector<8x640xf32>
    %85 = arith.maximumf %83, %84 : vector<8x640xf32>
    %86 = vector.extract_strided_slice %6 {offsets = [0, 128], sizes = [8, 640], strides = [1, 1]} : vector<8x896xf32> to vector<8x640xf32>
    %87 = arith.addf %85, %86 : vector<8x640xf32>
    %c0_58 = arith.constant 0 : index
    %c0_59 = arith.constant 0 : index
    %c0_60 = arith.constant 0 : index
    %88 = vector.load %arg9[%c0_58, %c0_59, %c0_60] : memref<1x8x640xf32, #tpu.memory_space<vmem>>, vector<1x8x640xf32>
    %89 = vector.shape_cast %88 : vector<1x8x640xf32> to vector<8x640xf32>
    %90 = vector.shape_cast %87 : vector<8x640xf32> to vector<1x8x640xf32>
    tpu.vector_store %arg9[%c0_58, %c0_59, %c0_60], %90 {strides = array<i32>} : memref<1x8x640xf32, #tpu.memory_space<vmem>>, vector<1x8x640xf32>,
    return
  }
  func.func @transform_0(%arg0: i32) -> (i32, i32) {
    %c0_i32 = arith.constant 0 : i32
    %c0_i32_0 = arith.constant 0 : i32
    %c0_i32_1 = arith.constant 0 : i32
    return %c0_i32, %c0_i32_0 : i32, i32
  }
  func.func @transform_1(%arg0: i32) -> (i32, i32, i32) {
    %c0_i32 = arith.constant 0 : i32
    %c0_i32_0 = arith.constant 0 : i32
    %c0_i32_1 = arith.constant 0 : i32
    return %arg0, %c0_i32, %c0_i32_0 : i32, i32, i32
  }
  func.func @transform_2(%arg0: i32) -> (i32, i32) {
    %c0_i32 = arith.constant 0 : i32
    %c0_i32_0 = arith.constant 0 : i32
    %c0_i32_1 = arith.constant 0 : i32
    return %c0_i32, %c0_i32_0 : i32, i32
  }
  func.func @transform_3(%arg0: i32) -> (i32, i32) {
    %c0_i32 = arith.constant 0 : i32
    %c0_i32_0 = arith.constant 0 : i32
    %c0_i32_1 = arith.constant 0 : i32
    return %c0_i32, %c0_i32_0 : i32, i32
  }
  func.func @transform_4(%arg0: i32) -> (i32, i32) {
    %c0_i32 = arith.constant 0 : i32
    %c0_i32_0 = arith.constant 0 : i32
    %c0_i32_1 = arith.constant 0 : i32
    return %c0_i32, %c0_i32_0 : i32, i32
  }
  func.func @transform_5(%arg0: i32) -> (i32, i32) {
    %c0_i32 = arith.constant 0 : i32
    %c0_i32_0 = arith.constant 0 : i32
    %c0_i32_1 = arith.constant 0 : i32
    return %c0_i32, %c0_i32_0 : i32, i32
  }
  func.func @transform_6(%arg0: i32) -> (i32, i32) {
    %c0_i32 = arith.constant 0 : i32
    %c0_i32_0 = arith.constant 0 : i32
    %c0_i32_1 = arith.constant 0 : i32
    return %c0_i32, %c0_i32_0 : i32, i32
  }
  func.func @transform_7(%arg0: i32) -> (i32, i32) {
    %c0_i32 = arith.constant 0 : i32
    %c0_i32_0 = arith.constant 0 : i32
    %c0_i32_1 = arith.constant 0 : i32
    return %c0_i32, %c0_i32_0 : i32, i32
  }
  func.func @transform_8(%arg0: i32) -> (i32, i32, i32) {
    %c0_i32 = arith.constant 0 : i32
    %c0_i32_0 = arith.constant 0 : i32
    %c0_i32_1 = arith.constant 0 : i32
    return %arg0, %c0_i32, %c0_i32_0 : i32, i32, i32
  }
}

</mosaic_0001>

<llo_original>
// kernel: tpu_custom_call.1
$region0: #{tpu_custom_call.1}
  #allocation0 [shape = 'u32[]', space=smem, size = 0x4, offset = 0x4, fixed_abs, tag = 'smem constant byte address 0x4 - core index']
  #allocation1 [shape = 'u32[144,128]{1,0:T(1,128)}', space=vmem, size = 0x12000, scoped, tag = 'internal scratch']
  #allocation2 [shape = 'f32[16,896]{1,0:T(8,128)}', space=vmem, size = 0xe000, scoped, tag = 'scratch operand']
  %s0 = inlined_call_operand.hbm [shape: f32[1,640], index: 0, kind: input, shape index: {}]
  %s1 = inlined_call_operand.hbm [shape: f32[2,8,896], index: 1, kind: input, shape index: {}]
  %s2 = inlined_call_operand.vmem [shape: f32[16,144], index: 2, kind: input, shape index: {}]
  %s3 = inlined_call_operand.vmem [shape: f32[16,1], index: 3, kind: input, shape index: {}]
  %s4 = inlined_call_operand.hbm [shape: f32[16,144], index: 4, kind: input, shape index: {}]
  %s5 = inlined_call_operand.vmem [shape: f32[16,1], index: 5, kind: input, shape index: {}]
  %s6 = inlined_call_operand.vmem [shape: f32[8,144], index: 6, kind: input, shape index: {}]
  %s7 = inlined_call_operand.vmem [shape: f32[8,1], index: 7, kind: input, shape index: {}]
  %s8 = inlined_call_operand.hbm [shape: f32[2,8,640], index: 8, kind: output, shape index: {}]
  %s9 = sld [smem:[#allocation0]]
  $region77: #{tpu_custom_call.1} parent=0
    _
  %s11 = ssub.s32 1, %s9
  %s12 = scalar_select 0, %s11, %s9
  $region1: #{tpu_custom_call.1} parent=0
    #allocation3 [shape = 'u8[2560]{0}', space=vmem, size = 0xc00, scoped, tag = 'input window, operand 0, single buffered']
    #allocation4 [shape = 's32[2]{0}', space=sflag, size = 0x8, scoped, tag = 'scoped memory for tpu_custom_call.1']
    #allocation5 [shape = 's32[2]{0}', space=sflag, size = 0x8, scoped, tag = 'scoped memory for tpu_custom_call.1']
    #allocation6 [shape = 'u8[57344]{0}', space=vmem, size = 0xe000, scoped, tag = 'input window, operand 1']
    #allocation7 [shape = 's32[2]{0}', space=sflag, size = 0x8, scoped, tag = 'scoped memory for tpu_custom_call.1']
    #allocation8 [shape = 'u8[16384]{0}', space=vmem, size = 0x4000, scoped, tag = 'input window, operand 4, single buffered']
    #allocation9 [shape = 'u8[40960]{0}', space=vmem, size = 0xa000, scoped, tag = 'output window, operand 0']
    %13 = vsyncpa [#allocation4], 0
    %14 = vsyncpa [#allocation7], 0
    %s15 = scalar_lea.sflag [#allocation7], 1
    %16 = vsyncpa %s15, 0
    %17 = vsyncpa [#allocation5], 0
    %s18 = scalar_lea.sflag [#allocation5], 1
    %19 = vsyncpa %s18, 0
    loop: start=0, step=1, limit=4
    $region2: #{tpu_custom_call.1} parent=1 // loop_pre_header
      _
    $region3: #{tpu_custom_call.1} parent=1 // loop_header
      %s21 = sphi 0, %s25
      %p22 = scmp.ge.s32.totalorder %s21, 4
      %s29 = sphi 0, %s29
      %s31 = sphi 0, %s29
      %s32 = sphi 0, %s31
      %s46 = sphi 0, %s32
      %s52 = sphi 0, %s54
      %s55 = sphi 0, %s52
      %s56 = sphi 0, %s55
      %s72 = sphi 0, %s56
      %s76 = sphi 0, %s76
      %s78 = sphi 0, %s76
      %s79 = sphi 0, %s78
      %s93 = sphi 0, %s79
      %s97 = sphi 0, %s97
      %s99 = sphi 0, %s97
      %s100 = sphi 0, %s99
      %s114 = sphi 0, %s100
      %s118 = sphi 0, %s118
      %s120 = sphi 0, %s118
      %s121 = sphi 0, %s120
      %s135 = sphi 0, %s121
      %s139 = sphi 0, %s139
      %s141 = sphi 0, %s139
      %s142 = sphi 0, %s141
      %s156 = sphi 0, %s142
      %s160 = sphi 0, %s160
      %s162 = sphi 0, %s160
      %s163 = sphi 0, %s162
      %s177 = sphi 0, %s163
      %s181 = sphi 0, %s181
      %s183 = sphi 0, %s181
      %s184 = sphi 0, %s183
      %s198 = sphi 0, %s184
      %s204 = sphi 0, %s206
      %s207 = sphi 0, %s204
      %s208 = sphi 0, %s207
      %s224 = sphi 0, %s208
    $region4: #{tpu_custom_call.1} parent=1 // loop_header_branch
      %24 = sbr.rel (%p22) target = $region8
    $region5: #{tpu_custom_call.1} parent=1 // loop_body
      %s26 = ssub.s32 %s21, 1
      %s27 = ssub.s32 %s21, 2
      %s28 = sadd.s32 %s21, 1
      %s30 = sadd.s32 %s29, 1
      %p33 = scmp.eq.s32.totalorder %s21, 1
      %p34 = scmp.ne.s32.totalorder %s29, %s31
      %p35 = scmp.eq.s32.totalorder %s21, 0
      %p36 = por %p34, %p35
      %p37 = scmp.ne.s32.totalorder %s29, %s31
      %p38 = scmp.eq.s32.totalorder %s26, 1
      %p39 = por %p37, %p38
      %p40 = scmp.ne.s32.totalorder %s31, %s32
      %p41 = scmp.eq.s32.totalorder %s26, 0
      %p42 = por %p40, %p41
      %p43 = scmp.ne.s32.totalorder %s31, %s32
      %p44 = scmp.eq.s32.totalorder %s27, 1
      %p45 = por %p43, %p44
      %p47 = scmp.ne.s32.totalorder %s32, %s46
      %p48 = scmp.eq.s32.totalorder %s27, 0
      %p49 = por %p47, %p48
      %s50 = ssub.s32 %s21, %s28
      %p51 = scmp.eq.s32.totalorder %s50, 0
      %s53 = sadd.s32 %s52, 1
      %s54 = scalar_select %p51, %s52, %s53
      %p57 = pneg %p51
      %p58 = scmp.eq.s32.totalorder %s21, 1
      %p59 = por %p57, %p58
      %p60 = scmp.ne.s32.totalorder %s52, %s55
      %p61 = scmp.eq.s32.totalorder %s21, 0
      %p62 = por %p60, %p61
      %p63 = scmp.ne.s32.totalorder %s52, %s55
      %p64 = scmp.eq.s32.totalorder %s26, 1
      %p65 = por %p63, %p64
      %p66 = scmp.ne.s32.totalorder %s55, %s56
      %p67 = scmp.eq.s32.totalorder %s26, 0
      %p68 = por %p66, %p67
      %p69 = scmp.ne.s32.totalorder %s55, %s56
      %p70 = scmp.eq.s32.totalorder %s27, 1
      %p71 = por %p69, %p70
      %p73 = scmp.ne.s32.totalorder %s56, %s72
      %p74 = scmp.eq.s32.totalorder %s27, 0
      %p75 = por %p73, %p74
      %s77 = sadd.s32 %s76, 1
      %p80 = scmp.eq.s32.totalorder %s21, 1
      %p81 = scmp.ne.s32.totalorder %s76, %s78
      %p82 = scmp.eq.s32.totalorder %s21, 0
      %p83 = por %p81, %p82
      %p84 = scmp.ne.s32.totalorder %s76, %s78
      %p85 = scmp.eq.s32.totalorder %s26, 1
      %p86 = por %p84, %p85
      %p87 = scmp.ne.s32.totalorder %s78, %s79
      %p88 = scmp.eq.s32.totalorder %s26, 0
      %p89 = por %p87, %p88
      %p90 = scmp.ne.s32.totalorder %s78, %s79
      %p91 = scmp.eq.s32.totalorder %s27, 1
      %p92 = por %p90, %p91
      %p94 = scmp.ne.s32.totalorder %s79, %s93
      %p95 = scmp.eq.s32.totalorder %s27, 0
      %p96 = por %p94, %p95
      %s98 = sadd.s32 %s97, 1
      %p101 = scmp.eq.s32.totalorder %s21, 1
      %p102 = scmp.ne.s32.totalorder %s97, %s99
      %p103 = scmp.eq.s32.totalorder %s21, 0
      %p104 = por %p102, %p103
      %p105 = scmp.ne.s32.totalorder %s97, %s99
      %p106 = scmp.eq.s32.totalorder %s26, 1
      %p107 = por %p105, %p106
      %p108 = scmp.ne.s32.totalorder %s99, %s100
      %p109 = scmp.eq.s32.totalorder %s26, 0
      %p110 = por %p108, %p109
      %p111 = scmp.ne.s32.totalorder %s99, %s100
      %p112 = scmp.eq.s32.totalorder %s27, 1
      %p113 = por %p111, %p112
      %p115 = scmp.ne.s32.totalorder %s100, %s114
      %p116 = scmp.eq.s32.totalorder %s27, 0
      %p117 = por %p115, %p116
      %s119 = sadd.s32 %s118, 1
      %p122 = scmp.eq.s32.totalorder %s21, 1
      %p123 = scmp.ne.s32.totalorder %s118, %s120
      %p124 = scmp.eq.s32.totalorder %s21, 0
      %p125 = por %p123, %p124
      %p126 = scmp.ne.s32.totalorder %s118, %s120
      %p127 = scmp.eq.s32.totalorder %s26, 1
      %p128 = por %p126, %p127
      %p129 = scmp.ne.s32.totalorder %s120, %s121
      %p130 = scmp.eq.s32.totalorder %s26, 0
      %p131 = por %p129, %p130
      %p132 = scmp.ne.s32.totalorder %s120, %s121
      %p133 = scmp.eq.s32.totalorder %s27, 1
      %p134 = por %p132, %p133
      %p136 = scmp.ne.s32.totalorder %s121, %s135
      %p137 = scmp.eq.s32.totalorder %s27, 0
      %p138 = por %p136, %p137
      %s140 = sadd.s32 %s139, 1
      %p143 = scmp.eq.s32.totalorder %s21, 1
      %p144 = scmp.ne.s32.totalorder %s139, %s141
      %p145 = scmp.eq.s32.totalorder %s21, 0
      %p146 = por %p144, %p145
      %p147 = scmp.ne.s32.totalorder %s139, %s141
      %p148 = scmp.eq.s32.totalorder %s26, 1
      %p149 = por %p147, %p148
      %p150 = scmp.ne.s32.totalorder %s141, %s142
      %p151 = scmp.eq.s32.totalorder %s26, 0
      %p152 = por %p150, %p151
      %p153 = scmp.ne.s32.totalorder %s141, %s142
      %p154 = scmp.eq.s32.totalorder %s27, 1
      %p155 = por %p153, %p154
      %p157 = scmp.ne.s32.totalorder %s142, %s156
      %p158 = scmp.eq.s32.totalorder %s27, 0
      %p159 = por %p157, %p158
      %s161 = sadd.s32 %s160, 1
      %p164 = scmp.eq.s32.totalorder %s21, 1
      %p165 = scmp.ne.s32.totalorder %s160, %s162
      %p166 = scmp.eq.s32.totalorder %s21, 0
      %p167 = por %p165, %p166
      %p168 = scmp.ne.s32.totalorder %s160, %s162
      %p169 = scmp.eq.s32.totalorder %s26, 1
      %p170 = por %p168, %p169
      %p171 = scmp.ne.s32.totalorder %s162, %s163
      %p172 = scmp.eq.s32.totalorder %s26, 0
      %p173 = por %p171, %p172
      %p174 = scmp.ne.s32.totalorder %s162, %s163
      %p175 = scmp.eq.s32.totalorder %s27, 1
      %p176 = por %p174, %p175
      %p178 = scmp.ne.s32.totalorder %s163, %s177
      %p179 = scmp.eq.s32.totalorder %s27, 0
      %p180 = por %p178, %p179
      %s182 = sadd.s32 %s181, 1
      %p185 = scmp.eq.s32.totalorder %s21, 1
      %p186 = scmp.ne.s32.totalorder %s181, %s183
      %p187 = scmp.eq.s32.totalorder %s21, 0
      %p188 = por %p186, %p187
      %p189 = scmp.ne.s32.totalorder %s181, %s183
      %p190 = scmp.eq.s32.totalorder %s26, 1
      %p191 = por %p189, %p190
      %p192 = scmp.ne.s32.totalorder %s183, %s184
      %p193 = scmp.eq.s32.totalorder %s26, 0
      %p194 = por %p192, %p193
      %p195 = scmp.ne.s32.totalorder %s183, %s184
      %p196 = scmp.eq.s32.totalorder %s27, 1
      %p197 = por %p195, %p196
      %p199 = scmp.ne.s32.totalorder %s184, %s198
      %p200 = scmp.eq.s32.totalorder %s27, 0
      %p201 = por %p199, %p200
      %s202 = ssub.s32 %s21, %s28
      %p203 = scmp.eq.s32.totalorder %s202, 0
      %s205 = sadd.s32 %s204, 1
      %s206 = scalar_select %p203, %s204, %s205
      %p209 = pneg %p203
      %p210 = scmp.eq.s32.totalorder %s21, 1
      %p211 = por %p209, %p210
      %p212 = scmp.ne.s32.totalorder %s204, %s207
      %p213 = scmp.eq.s32.totalorder %s21, 0
      %p214 = por %p212, %p213
      %p215 = scmp.ne.s32.totalorder %s204, %s207
      %p216 = scmp.eq.s32.totalorder %s26, 1
      %p217 = por %p215, %p216
      %p218 = scmp.ne.s32.totalorder %s207, %s208
      %p219 = scmp.eq.s32.totalorder %s26, 0
      %p220 = por %p218, %p219
      %p221 = scmp.ne.s32.totalorder %s207, %s208
      %p222 = scmp.eq.s32.totalorder %s27, 1
      %p223 = por %p221, %p222
      %p225 = scmp.ne.s32.totalorder %s208, %s224
      %p226 = scmp.eq.s32.totalorder %s27, 0
      %p227 = por %p225, %p226
      %p228 = scmp.le.s32.totalorder 1, %s21
      %p229 = scmp.lt.s32.totalorder %s21, 3
      %p230 = pnand %p228, %p229
      %p231 = pneg %p230
      // Predicated region
      $region9: #{tpu_custom_call.1} parent=5 // pred_check
        _
      $region10: #{tpu_custom_call.1} parent=5 // pred_check_branch
        %233 = sbr.rel (%p230) target = $region12
      $region11: #{tpu_custom_call.1} parent=5 // pred_region
        %s234 = ssub.s32 %s21, 1
        // Predicated region
        $region13: #{tpu_custom_call.1} parent=11 // pred_check
          %p235 = pneg %p42
        $region14: #{tpu_custom_call.1} parent=11 // pred_check_branch
          %237 = sbr.rel (%p235) target = $region16
        $region15: #{tpu_custom_call.1} parent=11 // pred_region
          %s239 = ssub.s32 80, 80
          %240 = vsyncadd [#allocation4], %s239
          %s242 = sshll.u32 [#allocation3], 4
          %s243 = int_to_ptr.vmem [resolvable:$true] %s242
          %245 = dma.hbm_to_vmem [thread:$0]  %s0, 80, %s243, [#allocation4]
        $region16: #{tpu_custom_call.1} parent=11 // pred_fallthru
          _
        // Predicated region
        $region17: #{tpu_custom_call.1} parent=11 // pred_check
          %p246 = pneg %p89
        $region18: #{tpu_custom_call.1} parent=11 // pred_check_branch
          %248 = sbr.rel (%p246) target = $region20
        $region19: #{tpu_custom_call.1} parent=11 // pred_region
          _
        $region20: #{tpu_custom_call.1} parent=11 // pred_fallthru
          _
        // Predicated region
        $region21: #{tpu_custom_call.1} parent=11 // pred_check
          %p249 = pneg %p110
        $region22: #{tpu_custom_call.1} parent=11 // pred_check_branch
          %251 = sbr.rel (%p249) target = $region24
        $region23: #{tpu_custom_call.1} parent=11 // pred_region
          _
        $region24: #{tpu_custom_call.1} parent=11 // pred_fallthru
          _
        // Predicated region
        $region25: #{tpu_custom_call.1} parent=11 // pred_check
          %p252 = pneg %p131
        $region26: #{tpu_custom_call.1} parent=11 // pred_check_branch
          %254 = sbr.rel (%p252) target = $region28
        $region27: #{tpu_custom_call.1} parent=11 // pred_region
          %s256 = ssub.s32 512, 512
          %257 = vsyncadd [#allocation7], %s256
          %s258 = sshll.u32 [#allocation8], 4
          %s259 = int_to_ptr.vmem [resolvable:$true] %s258
          %264 = dma.hbm_to_vmem [thread:$0]  %s4, 512, %s259, [#allocation7], 256, 256, 16
        $region28: #{tpu_custom_call.1} parent=11 // pred_fallthru
          _
        // Predicated region
        $region29: #{tpu_custom_call.1} parent=11 // pred_check
          %p265 = pneg %p152
        $region30: #{tpu_custom_call.1} parent=11 // pred_check_branch
          %267 = sbr.rel (%p265) target = $region32
        $region31: #{tpu_custom_call.1} parent=11 // pred_region
          _
        $region32: #{tpu_custom_call.1} parent=11 // pred_fallthru
          _
        // Predicated region
        $region33: #{tpu_custom_call.1} parent=11 // pred_check
          %p268 = pneg %p173
        $region34: #{tpu_custom_call.1} parent=11 // pred_check_branch
          %270 = sbr.rel (%p268) target = $region36
        $region35: #{tpu_custom_call.1} parent=11 // pred_region
          _
        $region36: #{tpu_custom_call.1} parent=11 // pred_fallthru
          _
        // Predicated region
        $region37: #{tpu_custom_call.1} parent=11 // pred_check
          %p271 = pneg %p194
        $region38: #{tpu_custom_call.1} parent=11 // pred_check_branch
          %273 = sbr.rel (%p271) target = $region40
        $region39: #{tpu_custom_call.1} parent=11 // pred_region
          _
        $region40: #{tpu_custom_call.1} parent=11 // pred_fallthru
          _
      $region12: #{tpu_custom_call.1} parent=5 // pred_fallthru
        _
      %p274 = scmp.lt.s32.totalorder %s21, 2
      // Predicated region
      $region41: #{tpu_custom_call.1} parent=5 // pred_check
        %p275 = pneg %p274
      $region42: #{tpu_custom_call.1} parent=5 // pred_check_branch
        %277 = sbr.rel (%p275) target = $region44
      $region43: #{tpu_custom_call.1} parent=5 // pred_region
        // Predicated region
        $region45: #{tpu_custom_call.1} parent=43 // pred_check
          %p278 = pneg %p62
        $region46: #{tpu_custom_call.1} parent=43 // pred_check_branch
          %280 = sbr.rel (%p278) target = $region48
        $region47: #{tpu_custom_call.1} parent=43 // pred_region
          %s281 = sand.u32 %s21, 1
          %s282 = scalar_lea.sflag [#allocation7], %s281
          %s283 = sand.u32 %s52, 1
          %s284 = smul.addr %s283, 56
          %s285 = scalar_lea.vmem [#allocation6], %s284
          %s287 = ssub.s32 896, 896
          %288 = vsyncadd %s282, %s287
          %s289 = smul.addr %s21, 7
          %s290 = smul.addr %s289, 128
          %s291 = scalar_lea.hbm %s1, %s290
          %s293 = sshll.u32 %s285, 4
          %s294 = int_to_ptr.vmem [resolvable:$true] %s293
          %296 = dma.hbm_to_vmem [thread:$0]  %s291, 896, %s294, %s282
        $region48: #{tpu_custom_call.1} parent=43 // pred_fallthru
          _
      $region44: #{tpu_custom_call.1} parent=5 // pred_fallthru
        _
      %p297 = scmp.le.s32.totalorder 1, %s21
      %p298 = scmp.lt.s32.totalorder %s21, 3
      %p299 = pnand %p297, %p298
      %p300 = pneg %p299
      // Predicated region
      $region49: #{tpu_custom_call.1} parent=5 // pred_check
        _
      $region50: #{tpu_custom_call.1} parent=5 // pred_check_branch
        %302 = sbr.rel (%p299) target = $region52
      $region51: #{tpu_custom_call.1} parent=5 // pred_region
        %s303 = ssub.s32 %s21, 1
        // Predicated region
        $region53: #{tpu_custom_call.1} parent=51 // pred_check
          %p304 = pneg %p42
        $region54: #{tpu_custom_call.1} parent=51 // pred_check_branch
          %306 = sbr.rel (%p304) target = $region56
        $region55: #{tpu_custom_call.1} parent=51 // pred_region
          %307 = dma.done [#allocation4], 80
        $region56: #{tpu_custom_call.1} parent=51 // pred_fallthru
          _
        %s308 = sand.u32 %s26, 1
        %s309 = scalar_lea.sflag [#allocation7], %s308
        %s310 = sand.u32 %s55, 1
        %s311 = smul.addr %s310, 56
        %s312 = scalar_lea.vmem [#allocation6], %s311
        // Predicated region
        $region57: #{tpu_custom_call.1} parent=51 // pred_check
          %p313 = pneg %p68
        $region58: #{tpu_custom_call.1} parent=51 // pred_check_branch
          %315 = sbr.rel (%p313) target = $region60
        $region59: #{tpu_custom_call.1} parent=51 // pred_region
          %316 = dma.done %s309, 896
        $region60: #{tpu_custom_call.1} parent=51 // pred_fallthru
          _
        // Predicated region
        $region61: #{tpu_custom_call.1} parent=51 // pred_check
          %p317 = pneg %p131
        $region62: #{tpu_custom_call.1} parent=51 // pred_check_branch
          %319 = sbr.rel (%p317) target = $region64
        $region63: #{tpu_custom_call.1} parent=51 // pred_region
          %320 = dma.done [#allocation7], 512
        $region64: #{tpu_custom_call.1} parent=51 // pred_fallthru
          _
        %p321 = pneg %p42
        %p322 = pneg %p39
        %s323 = sand.u32 %s26, 1
        %s324 = scalar_lea.sflag [#allocation7], %s323
        %s325 = sand.u32 %s55, 1
        %s326 = smul.addr %s325, 56
        %s327 = scalar_lea.vmem [#allocation6], %s326
        %p328 = pneg %p68
        %p329 = pneg %p65
        %p330 = pneg %p89
        %p331 = pneg %p86
        %p332 = pneg %p110
        %p333 = pneg %p107
        %p334 = pneg %p131
        %p335 = pneg %p128
        %p336 = pneg %p152
        %p337 = pneg %p149
        %p338 = pneg %p173
        %p339 = pneg %p170
        %p340 = pneg %p194
        %p341 = pneg %p191
        %p342 = pneg %p220
        %p343 = pneg %p217
        %s344 = sand.u32 %s207, 1
        %s345 = scalar_lea.sflag [#allocation5], %s344
        %s346 = sand.u32 %s207, 1
        %s347 = smul.addr %s346, 40
        %s348 = scalar_lea.vmem [#allocation9], %s347
        %v349 = vld [vmem:[#allocation3] sm:$0x1f]
        %350 = vst [vmem:[#allocation2] sm:$0xff] 0.0
        %351 = vst [vmem:[#allocation2 + $0x38] sm:$0xff] 0.0
        %352 = vst [vmem:[#allocation2 + $0x30] sm:$0xff] 0.0
        %353 = vst [vmem:[#allocation2 + $0x68] sm:$0xff] 0.0
        %v354 = vld [vmem:[%s312] sm:$0xff]
        %v355 = vld [vmem:[%s312 + $0x8] sm:$0xff]
        %v356 = vld [vmem:[%s312 + $0x10] sm:$0xff]
        %v357 = vld [vmem:[%s312 + $0x18] sm:$0xff]
        %v358 = vld [vmem:[%s312 + $0x20] sm:$0xff]
        %v359 = vld [vmem:[%s312 + $0x28] sm:$0xff]
        %v360 = vld [vmem:[%s312 + $0x30] sm:$0xff]
        %367 = vrot.lane.b32.xlu0 %v354, 127
        %v368 = vpop.permute.xlu0 %367
        %369 = vrot.lane.b32.xlu0 %v355, 127
        %v370 = vpop.permute.xlu0 %369
        %371 = vrot.lane.b32.xlu0 %v356, 127
        %v372 = vpop.permute.xlu0 %371
        %373 = vrot.lane.b32.xlu0 %v357, 127
        %v374 = vpop.permute.xlu0 %373
        %375 = vrot.lane.b32.xlu0 %v358, 127
        %v376 = vpop.permute.xlu0 %375
        %377 = vrot.lane.b32.xlu0 %v359, 127
        %v378 = vpop.permute.xlu0 %377
        %vm379 = vcmask 1039360
        %v380 = vsel %vm379, %v368, %v370
        %v381 = vsel %vm379, %v370, %v372
        %v382 = vsel %vm379, %v372, %v374
        %v383 = vsel %vm379, %v374, %v376
        %v384 = vsel %vm379, %v376, %v378
        %385 = vrot.lane.b32.xlu0 %v354, 126
        %v386 = vpop.permute.xlu0 %385
        %387 = vrot.lane.b32.xlu0 %v355, 126
        %v388 = vpop.permute.xlu0 %387
        %389 = vrot.lane.b32.xlu0 %v356, 126
        %v390 = vpop.permute.xlu0 %389
        %391 = vrot.lane.b32.xlu0 %v357, 126
        %v392 = vpop.permute.xlu0 %391
        %393 = vrot.lane.b32.xlu0 %v358, 126
        %v394 = vpop.permute.xlu0 %393
        %395 = vrot.lane.b32.xlu0 %v359, 126
        %v396 = vpop.permute.xlu0 %395
        %vm397 = vcmask 1031168
        %v398 = vsel %vm397, %v386, %v388
        %v399 = vsel %vm397, %v388, %v390
        %v400 = vsel %vm397, %v390, %v392
        %v401 = vsel %vm397, %v392, %v394
        %v402 = vsel %vm397, %v394, %v396
        %403 = vrot.lane.b32.xlu0 %v354, 104
        %v404 = vpop.permute.xlu0 %403
        %405 = vrot.lane.b32.xlu0 %v355, 104
        %v406 = vpop.permute.xlu0 %405
        %407 = vrot.lane.b32.xlu0 %v356, 104
        %v408 = vpop.permute.xlu0 %407
        %409 = vrot.lane.b32.xlu0 %v357, 104
        %v410 = vpop.permute.xlu0 %409
        %411 = vrot.lane.b32.xlu0 %v358, 104
        %v412 = vpop.permute.xlu0 %411
        %413 = vrot.lane.b32.xlu0 %v359, 104
        %v414 = vpop.permute.xlu0 %413
        %vm415 = vcmask 850944
        %v416 = vsel %vm415, %v404, %v406
        %v417 = vsel %vm415, %v406, %v408
        %v418 = vsel %vm415, %v408, %v410
        %v419 = vsel %vm415, %v410, %v412
        %v420 = vsel %vm415, %v412, %v414
        %421 = vrot.lane.b32.xlu0 %v355, 103
        %v422 = vpop.permute.xlu0 %421
        %423 = vrot.lane.b32.xlu0 %v356, 103
        %v424 = vpop.permute.xlu0 %423
        %425 = vrot.lane.b32.xlu0 %v357, 103
        %v426 = vpop.permute.xlu0 %425
        %427 = vrot.lane.b32.xlu0 %v358, 103
        %v428 = vpop.permute.xlu0 %427
        %429 = vrot.lane.b32.xlu0 %v359, 103
        %v430 = vpop.permute.xlu0 %429
        %vm431 = vcmask 842752
        %v432 = vsel %vm431, %v422, %v424
        %v433 = vsel %vm431, %v424, %v426
        %v434 = vsel %vm431, %v426, %v428
        %v435 = vsel %vm431, %v428, %v430
        %437 = vrot.lane.b32.xlu0 %v355, 102
        %v438 = vpop.permute.xlu0 %437
        %439 = vrot.lane.b32.xlu0 %v356, 102
        %v440 = vpop.permute.xlu0 %439
        %441 = vrot.lane.b32.xlu0 %v357, 102
        %v442 = vpop.permute.xlu0 %441
        %443 = vrot.lane.b32.xlu0 %v358, 102
        %v444 = vpop.permute.xlu0 %443
        %445 = vrot.lane.b32.xlu0 %v359, 102
        %v446 = vpop.permute.xlu0 %445
        %447 = vrot.lane.b32.xlu0 %v360, 102
        %v448 = vpop.permute.xlu0 %447
        %vm449 = vcmask 834560
        %v450 = vsel %vm449, %v438, %v440
        %v451 = vsel %vm449, %v440, %v442
        %v452 = vsel %vm449, %v442, %v444
        %v453 = vsel %vm449, %v444, %v446
        %v454 = vsel %vm449, %v446, %v448
        %455 = vrot.lane.b32.xlu0 %v355, 80
        %v456 = vpop.permute.xlu0 %455
        %457 = vrot.lane.b32.xlu0 %v356, 80
        %v458 = vpop.permute.xlu0 %457
        %459 = vrot.lane.b32.xlu0 %v357, 80
        %v460 = vpop.permute.xlu0 %459
        %461 = vrot.lane.b32.xlu0 %v358, 80
        %v462 = vpop.permute.xlu0 %461
        %463 = vrot.lane.b32.xlu0 %v359, 80
        %v464 = vpop.permute.xlu0 %463
        %465 = vrot.lane.b32.xlu0 %v360, 80
        %v466 = vpop.permute.xlu0 %465
        %vm467 = vcmask 654336
        %v468 = vsel %vm467, %v456, %v458
        %v469 = vsel %vm467, %v458, %v460
        %v470 = vsel %vm467, %v460, %v462
        %v471 = vsel %vm467, %v462, %v464
        %v472 = vsel %vm467, %v464, %v466
        %473 = vrot.lane.b32.xlu0 %v355, 79
        %v474 = vpop.permute.xlu0 %473
        %475 = vrot.lane.b32.xlu0 %v356, 79
        %v476 = vpop.permute.xlu0 %475
        %477 = vrot.lane.b32.xlu0 %v357, 79
        %v478 = vpop.permute.xlu0 %477
        %479 = vrot.lane.b32.xlu0 %v358, 79
        %v480 = vpop.permute.xlu0 %479
        %481 = vrot.lane.b32.xlu0 %v359, 79
        %v482 = vpop.permute.xlu0 %481
        %483 = vrot.lane.b32.xlu0 %v360, 79
        %v484 = vpop.permute.xlu0 %483
        %vm485 = vcmask 646144
        %v486 = vsel %vm485, %v474, %v476
        %v487 = vsel %vm485, %v476, %v478
        %v488 = vsel %vm485, %v478, %v480
        %v489 = vsel %vm485, %v480, %v482
        %v490 = vsel %vm485, %v482, %v484
        %491 = vrot.lane.b32.xlu0 %v355, 78
        %v492 = vpop.permute.xlu0 %491
        %493 = vrot.lane.b32.xlu0 %v356, 78
        %v494 = vpop.permute.xlu0 %493
        %495 = vrot.lane.b32.xlu0 %v357, 78
        %v496 = vpop.permute.xlu0 %495
        %497 = vrot.lane.b32.xlu0 %v358, 78
        %v498 = vpop.permute.xlu0 %497
        %499 = vrot.lane.b32.xlu0 %v359, 78
        %v500 = vpop.permute.xlu0 %499
        %501 = vrot.lane.b32.xlu0 %v360, 78
        %v502 = vpop.permute.xlu0 %501
        %vm503 = vcmask 637952
        %v504 = vsel %vm503, %v492, %v494
        %v505 = vsel %vm503, %v494, %v496
        %v506 = vsel %vm503, %v496, %v498
        %v507 = vsel %vm503, %v498, %v500
        %v508 = vsel %vm503, %v500, %v502
        %509 = vrot.lane.b32.xlu0 %v354, 50
        %v510 = vpop.permute.xlu0 %509
        %511 = vrot.lane.b32.xlu0 %v355, 50
        %v512 = vpop.permute.xlu0 %511
        %513 = vrot.lane.b32.xlu0 %v356, 50
        %v514 = vpop.permute.xlu0 %513
        %515 = vrot.lane.b32.xlu0 %v357, 50
        %v516 = vpop.permute.xlu0 %515
        %517 = vrot.lane.b32.xlu0 %v358, 50
        %v518 = vpop.permute.xlu0 %517
        %519 = vrot.lane.b32.xlu0 %v359, 50
        %v520 = vpop.permute.xlu0 %519
        %vm521 = vcmask 408576
        %v522 = vsel %vm521, %v510, %v512
        %v523 = vsel %vm521, %v512, %v514
        %v524 = vsel %vm521, %v514, %v516
        %v525 = vsel %vm521, %v516, %v518
        %v526 = vsel %vm521, %v518, %v520
        %527 = vrot.lane.b32.xlu0 %v354, 47
        %v528 = vpop.permute.xlu0 %527
        %529 = vrot.lane.b32.xlu0 %v355, 47
        %v530 = vpop.permute.xlu0 %529
        %531 = vrot.lane.b32.xlu0 %v356, 47
        %v532 = vpop.permute.xlu0 %531
        %533 = vrot.lane.b32.xlu0 %v357, 47
        %v534 = vpop.permute.xlu0 %533
        %535 = vrot.lane.b32.xlu0 %v358, 47
        %v536 = vpop.permute.xlu0 %535
        %537 = vrot.lane.b32.xlu0 %v359, 47
        %v538 = vpop.permute.xlu0 %537
        %vm539 = vcmask 384000
        %v540 = vsel %vm539, %v528, %v530
        %v541 = vsel %vm539, %v530, %v532
        %v542 = vsel %vm539, %v532, %v534
        %v543 = vsel %vm539, %v534, %v536
        %v544 = vsel %vm539, %v536, %v538
        %545 = vrot.lane.b32.xlu0 %v354, 44
        %v546 = vpop.permute.xlu0 %545
        %547 = vrot.lane.b32.xlu0 %v355, 44
        %v548 = vpop.permute.xlu0 %547
        %549 = vrot.lane.b32.xlu0 %v356, 44
        %v550 = vpop.permute.xlu0 %549
        %551 = vrot.lane.b32.xlu0 %v357, 44
        %v552 = vpop.permute.xlu0 %551
        %553 = vrot.lane.b32.xlu0 %v358, 44
        %v554 = vpop.permute.xlu0 %553
        %555 = vrot.lane.b32.xlu0 %v359, 44
        %v556 = vpop.permute.xlu0 %555
        %vm557 = vcmask 359424
        %v558 = vsel %vm557, %v546, %v548
        %v559 = vsel %vm557, %v548, %v550
        %v560 = vsel %vm557, %v550, %v552
        %v561 = vsel %vm557, %v552, %v554
        %v562 = vsel %vm557, %v554, %v556
        %563 = vrot.lane.b32.xlu0 %v354, 106
        %v564 = vpop.permute.xlu0 %563
        %565 = vrot.lane.b32.xlu0 %v355, 106
        %v566 = vpop.permute.xlu0 %565
        %567 = vrot.lane.b32.xlu0 %v356, 106
        %v568 = vpop.permute.xlu0 %567
        %569 = vrot.lane.b32.xlu0 %v357, 106
        %v570 = vpop.permute.xlu0 %569
        %571 = vrot.lane.b32.xlu0 %v358, 106
        %v572 = vpop.permute.xlu0 %571
        %573 = vrot.lane.b32.xlu0 %v359, 106
        %v574 = vpop.permute.xlu0 %573
        %vm575 = vcmask 867328
        %v576 = vsel %vm575, %v564, %v566
        %v577 = vsel %vm575, %v566, %v568
        %v578 = vsel %vm575, %v568, %v570
        %v579 = vsel %vm575, %v570, %v572
        %v580 = vsel %vm575, %v572, %v574
        %581 = vrot.lane.b32.xlu0 %v355, 100
        %v582 = vpop.permute.xlu0 %581
        %583 = vrot.lane.b32.xlu0 %v356, 100
        %v584 = vpop.permute.xlu0 %583
        %585 = vrot.lane.b32.xlu0 %v357, 100
        %v586 = vpop.permute.xlu0 %585
        %587 = vrot.lane.b32.xlu0 %v358, 100
        %v588 = vpop.permute.xlu0 %587
        %589 = vrot.lane.b32.xlu0 %v359, 100
        %v590 = vpop.permute.xlu0 %589
        %591 = vrot.lane.b32.xlu0 %v360, 100
        %v592 = vpop.permute.xlu0 %591
        %vm593 = vcmask 818176
        %v594 = vsel %vm593, %v582, %v584
        %v595 = vsel %vm593, %v584, %v586
        %v596 = vsel %vm593, %v586, %v588
        %v597 = vsel %vm593, %v588, %v590
        %v598 = vsel %vm593, %v590, %v592
        %599 = vrot.lane.b32.xlu0 %v355, 34
        %v600 = vpop.permute.xlu0 %599
        %601 = vrot.lane.b32.xlu0 %v356, 34
        %v602 = vpop.permute.xlu0 %601
        %603 = vrot.lane.b32.xlu0 %v357, 34
        %v604 = vpop.permute.xlu0 %603
        %605 = vrot.lane.b32.xlu0 %v358, 34
        %v606 = vpop.permute.xlu0 %605
        %607 = vrot.lane.b32.xlu0 %v359, 34
        %v608 = vpop.permute.xlu0 %607
        %609 = vrot.lane.b32.xlu0 %v360, 34
        %v610 = vpop.permute.xlu0 %609
        %vm611 = vcmask 277504
        %v612 = vsel %vm611, %v600, %v602
        %v613 = vsel %vm611, %v602, %v604
        %v614 = vsel %vm611, %v604, %v606
        %v615 = vsel %vm611, %v606, %v608
        %v616 = vsel %vm611, %v608, %v610
        %617 = vrot.lane.b32.xlu0 %v355, 125
        %v618 = vpop.permute.xlu0 %617
        %619 = vrot.lane.b32.xlu0 %v356, 125
        %v620 = vpop.permute.xlu0 %619
        %621 = vrot.lane.b32.xlu0 %v357, 125
        %v622 = vpop.permute.xlu0 %621
        %623 = vrot.lane.b32.xlu0 %v358, 125
        %v624 = vpop.permute.xlu0 %623
        %625 = vrot.lane.b32.xlu0 %v359, 125
        %v626 = vpop.permute.xlu0 %625
        %627 = vrot.lane.b32.xlu0 %v360, 125
        %v628 = vpop.permute.xlu0 %627
        %vm629 = vcmask 1022976
        %v630 = vsel %vm629, %v618, %v620
        %v631 = vsel %vm629, %v620, %v622
        %v632 = vsel %vm629, %v622, %v624
        %v633 = vsel %vm629, %v624, %v626
        %v634 = vsel %vm629, %v626, %v628
        %635 = vrot.lane.b32.xlu0 %v355, 31
        %v636 = vpop.permute.xlu0 %635
        %637 = vrot.lane.b32.xlu0 %v356, 31
        %v638 = vpop.permute.xlu0 %637
        %639 = vrot.lane.b32.xlu0 %v357, 31
        %v640 = vpop.permute.xlu0 %639
        %641 = vrot.lane.b32.xlu0 %v358, 31
        %v642 = vpop.permute.xlu0 %641
        %643 = vrot.lane.b32.xlu0 %v359, 31
        %v644 = vpop.permute.xlu0 %643
        %645 = vrot.lane.b32.xlu0 %v360, 31
        %v646 = vpop.permute.xlu0 %645
        %647 = vrot.lane.b32.xlu0 %v630, 31
        %v648 = vpop.permute.xlu0 %647
        %649 = vrot.lane.b32.xlu0 %v631, 31
        %v650 = vpop.permute.xlu0 %649
        %651 = vrot.lane.b32.xlu0 %v632, 31
        %v652 = vpop.permute.xlu0 %651
        %653 = vrot.lane.b32.xlu0 %v633, 31
        %v654 = vpop.permute.xlu0 %653
        %655 = vrot.lane.b32.xlu0 %v634, 31
        %v656 = vpop.permute.xlu0 %655
        %657 = vrot.lane.b32.xlu0 %v628, 31
        %v658 = vpop.permute.xlu0 %657
        %vm659 = vcmask 252928
        %v660 = vsel %vm659, %v636, %v638
        %v661 = vsel %vm659, %v638, %v640
        %v662 = vsel %vm659, %v640, %v642
        %v663 = vsel %vm659, %v642, %v644
        %v664 = vsel %vm659, %v644, %v646
        %v665 = vsel %vm659, %v648, %v650
        %v666 = vsel %vm659, %v650, %v652
        %v667 = vsel %vm659, %v652, %v654
        %v668 = vsel %vm659, %v654, %v656
        %v669 = vsel %vm659, %v656, %v658
        %v670 = vld [vmem:[%s2] sm:$0xff]
        %v671 = vld [vmem:[%s2 + $0x8] sm:$0xff]
        %v672 = vld [vmem:[%s2 + $0x10] sm:$0xff]
        %v673 = vld [vmem:[%s2 + $0x18] sm:$0xff]
        %v674 = vld [vmem:[%s3] sm:$0xff]
        %v675 = vld [vmem:[%s3 + $0x8] sm:$0xff]
        %677 = vset.pattern.permute.xlu0 0
        %678 = vperm.xlu0 %677, %v674
        %v679 = vpop.permute.xlu0 %678
        %682 = vset.pattern.permute.xlu0 0
        %683 = vperm.xlu0 %682, %v675
        %v684 = vpop.permute.xlu0 %683
        %686 = vrot.lane.b32.xlu0 %v354, 25
        %v687 = vpop.permute.xlu0 %686
        %688 = vrot.lane.b32.xlu0 %v355, 25
        %v689 = vpop.permute.xlu0 %688
        %690 = vrot.lane.b32.xlu0 %v356, 25
        %v691 = vpop.permute.xlu0 %690
        %692 = vrot.lane.b32.xlu0 %v357, 25
        %v693 = vpop.permute.xlu0 %692
        %694 = vrot.lane.b32.xlu0 %v358, 25
        %v695 = vpop.permute.xlu0 %694
        %696 = vrot.lane.b32.xlu0 %v359, 25
        %v697 = vpop.permute.xlu0 %696
        %698 = vrot.lane.b32.xlu0 %v380, 25
        %v699 = vpop.permute.xlu0 %698
        %700 = vrot.lane.b32.xlu0 %v381, 25
        %v701 = vpop.permute.xlu0 %700
        %702 = vrot.lane.b32.xlu0 %v382, 25
        %v703 = vpop.permute.xlu0 %702
        %704 = vrot.lane.b32.xlu0 %v383, 25
        %v705 = vpop.permute.xlu0 %704
        %706 = vrot.lane.b32.xlu0 %v384, 25
        %v707 = vpop.permute.xlu0 %706
        %708 = vrot.lane.b32.xlu0 %v378, 25
        %v709 = vpop.permute.xlu0 %708
        %710 = vrot.lane.b32.xlu0 %v398, 25
        %v711 = vpop.permute.xlu0 %710
        %712 = vrot.lane.b32.xlu0 %v399, 25
        %v713 = vpop.permute.xlu0 %712
        %714 = vrot.lane.b32.xlu0 %v400, 25
        %v715 = vpop.permute.xlu0 %714
        %716 = vrot.lane.b32.xlu0 %v401, 25
        %v717 = vpop.permute.xlu0 %716
        %718 = vrot.lane.b32.xlu0 %v402, 25
        %v719 = vpop.permute.xlu0 %718
        %720 = vrot.lane.b32.xlu0 %v396, 25
        %v721 = vpop.permute.xlu0 %720
        %722 = vrot.lane.b32.xlu0 %v416, 25
        %v723 = vpop.permute.xlu0 %722
        %724 = vrot.lane.b32.xlu0 %v417, 25
        %v725 = vpop.permute.xlu0 %724
        %726 = vrot.lane.b32.xlu0 %v418, 25
        %v727 = vpop.permute.xlu0 %726
        %728 = vrot.lane.b32.xlu0 %v419, 25
        %v729 = vpop.permute.xlu0 %728
        %730 = vrot.lane.b32.xlu0 %v420, 25
        %v731 = vpop.permute.xlu0 %730
        %732 = vrot.lane.b32.xlu0 %v414, 25
        %v733 = vpop.permute.xlu0 %732
        %734 = vrot.lane.b32.xlu0 %v422, 25
        %v735 = vpop.permute.xlu0 %734
        %736 = vrot.lane.b32.xlu0 %v432, 25
        %v737 = vpop.permute.xlu0 %736
        %738 = vrot.lane.b32.xlu0 %v433, 25
        %v739 = vpop.permute.xlu0 %738
        %740 = vrot.lane.b32.xlu0 %v434, 25
        %v741 = vpop.permute.xlu0 %740
        %742 = vrot.lane.b32.xlu0 %v435, 25
        %v743 = vpop.permute.xlu0 %742
        %744 = vrot.lane.b32.xlu0 %v430, 25
        %v745 = vpop.permute.xlu0 %744
        %746 = vrot.lane.b32.xlu0 %v438, 25
        %v747 = vpop.permute.xlu0 %746
        %748 = vrot.lane.b32.xlu0 %v450, 25
        %v749 = vpop.permute.xlu0 %748
        %750 = vrot.lane.b32.xlu0 %v451, 25
        %v751 = vpop.permute.xlu0 %750
        %752 = vrot.lane.b32.xlu0 %v452, 25
        %v753 = vpop.permute.xlu0 %752
        %754 = vrot.lane.b32.xlu0 %v453, 25
        %v755 = vpop.permute.xlu0 %754
        %756 = vrot.lane.b32.xlu0 %v454, 25
        %v757 = vpop.permute.xlu0 %756
        %758 = vrot.lane.b32.xlu0 %v456, 25
        %v759 = vpop.permute.xlu0 %758
        %760 = vrot.lane.b32.xlu0 %v468, 25
        %v761 = vpop.permute.xlu0 %760
        %762 = vrot.lane.b32.xlu0 %v469, 25
        %v763 = vpop.permute.xlu0 %762
        %764 = vrot.lane.b32.xlu0 %v470, 25
        %v765 = vpop.permute.xlu0 %764
        %766 = vrot.lane.b32.xlu0 %v471, 25
        %v767 = vpop.permute.xlu0 %766
        %768 = vrot.lane.b32.xlu0 %v472, 25
        %v769 = vpop.permute.xlu0 %768
        %770 = vrot.lane.b32.xlu0 %v474, 25
        %v771 = vpop.permute.xlu0 %770
        %772 = vrot.lane.b32.xlu0 %v486, 25
        %v773 = vpop.permute.xlu0 %772
        %774 = vrot.lane.b32.xlu0 %v487, 25
        %v775 = vpop.permute.xlu0 %774
        %776 = vrot.lane.b32.xlu0 %v488, 25
        %v777 = vpop.permute.xlu0 %776
        %778 = vrot.lane.b32.xlu0 %v489, 25
        %v779 = vpop.permute.xlu0 %778
        %780 = vrot.lane.b32.xlu0 %v490, 25
        %v781 = vpop.permute.xlu0 %780
        %782 = vrot.lane.b32.xlu0 %v492, 25
        %v783 = vpop.permute.xlu0 %782
        %784 = vrot.lane.b32.xlu0 %v504, 25
        %v785 = vpop.permute.xlu0 %784
        %786 = vrot.lane.b32.xlu0 %v505, 25
        %v787 = vpop.permute.xlu0 %786
        %788 = vrot.lane.b32.xlu0 %v506, 25
        %v789 = vpop.permute.xlu0 %788
        %790 = vrot.lane.b32.xlu0 %v507, 25
        %v791 = vpop.permute.xlu0 %790
        %792 = vrot.lane.b32.xlu0 %v508, 25
        %v793 = vpop.permute.xlu0 %792
        %794 = vrot.lane.b32.xlu0 %v510, 25
        %v795 = vpop.permute.xlu0 %794
        %796 = vrot.lane.b32.xlu0 %v522, 25
        %v797 = vpop.permute.xlu0 %796
        %798 = vrot.lane.b32.xlu0 %v523, 25
        %v799 = vpop.permute.xlu0 %798
        %800 = vrot.lane.b32.xlu0 %v524, 25
        %v801 = vpop.permute.xlu0 %800
        %802 = vrot.lane.b32.xlu0 %v525, 25
        %v803 = vpop.permute.xlu0 %802
        %804 = vrot.lane.b32.xlu0 %v526, 25
        %v805 = vpop.permute.xlu0 %804
        %806 = vrot.lane.b32.xlu0 %v528, 25
        %v807 = vpop.permute.xlu0 %806
        %808 = vrot.lane.b32.xlu0 %v540, 25
        %v809 = vpop.permute.xlu0 %808
        %810 = vrot.lane.b32.xlu0 %v541, 25
        %v811 = vpop.permute.xlu0 %810
        %812 = vrot.lane.b32.xlu0 %v542, 25
        %v813 = vpop.permute.xlu0 %812
        %814 = vrot.lane.b32.xlu0 %v543, 25
        %v815 = vpop.permute.xlu0 %814
        %816 = vrot.lane.b32.xlu0 %v544, 25
        %v817 = vpop.permute.xlu0 %816
        %818 = vrot.lane.b32.xlu0 %v546, 25
        %v819 = vpop.permute.xlu0 %818
        %820 = vrot.lane.b32.xlu0 %v558, 25
        %v821 = vpop.permute.xlu0 %820
        %822 = vrot.lane.b32.xlu0 %v559, 25
        %v823 = vpop.permute.xlu0 %822
        %824 = vrot.lane.b32.xlu0 %v560, 25
        %v825 = vpop.permute.xlu0 %824
        %826 = vrot.lane.b32.xlu0 %v561, 25
        %v827 = vpop.permute.xlu0 %826
        %828 = vrot.lane.b32.xlu0 %v562, 25
        %v829 = vpop.permute.xlu0 %828
        %830 = vrot.lane.b32.xlu0 %v576, 25
        %v831 = vpop.permute.xlu0 %830
        %832 = vrot.lane.b32.xlu0 %v577, 25
        %v833 = vpop.permute.xlu0 %832
        %834 = vrot.lane.b32.xlu0 %v578, 25
        %v835 = vpop.permute.xlu0 %834
        %836 = vrot.lane.b32.xlu0 %v579, 25
        %v837 = vpop.permute.xlu0 %836
        %838 = vrot.lane.b32.xlu0 %v580, 25
        %v839 = vpop.permute.xlu0 %838
        %840 = vrot.lane.b32.xlu0 %v574, 25
        %v841 = vpop.permute.xlu0 %840
        %842 = vrot.lane.b32.xlu0 %v582, 25
        %v843 = vpop.permute.xlu0 %842
        %844 = vrot.lane.b32.xlu0 %v594, 25
        %v845 = vpop.permute.xlu0 %844
        %846 = vrot.lane.b32.xlu0 %v595, 25
        %v847 = vpop.permute.xlu0 %846
        %848 = vrot.lane.b32.xlu0 %v596, 25
        %v849 = vpop.permute.xlu0 %848
        %850 = vrot.lane.b32.xlu0 %v597, 25
        %v851 = vpop.permute.xlu0 %850
        %852 = vrot.lane.b32.xlu0 %v598, 25
        %v853 = vpop.permute.xlu0 %852
        %854 = vrot.lane.b32.xlu0 %v600, 25
        %v855 = vpop.permute.xlu0 %854
        %856 = vrot.lane.b32.xlu0 %v612, 25
        %v857 = vpop.permute.xlu0 %856
        %858 = vrot.lane.b32.xlu0 %v613, 25
        %v859 = vpop.permute.xlu0 %858
        %860 = vrot.lane.b32.xlu0 %v614, 25
        %v861 = vpop.permute.xlu0 %860
        %862 = vrot.lane.b32.xlu0 %v615, 25
        %v863 = vpop.permute.xlu0 %862
        %864 = vrot.lane.b32.xlu0 %v616, 25
        %v865 = vpop.permute.xlu0 %864
        %866 = vrot.lane.b32.xlu0 %v636, 25
        %v867 = vpop.permute.xlu0 %866
        %868 = vrot.lane.b32.xlu0 %v660, 25
        %v869 = vpop.permute.xlu0 %868
        %870 = vrot.lane.b32.xlu0 %v661, 25
        %v871 = vpop.permute.xlu0 %870
        %872 = vrot.lane.b32.xlu0 %v662, 25
        %v873 = vpop.permute.xlu0 %872
        %874 = vrot.lane.b32.xlu0 %v663, 25
        %v875 = vpop.permute.xlu0 %874
        %876 = vrot.lane.b32.xlu0 %v664, 25
        %v877 = vpop.permute.xlu0 %876
        %878 = vrot.lane.b32.xlu0 %v648, 25
        %v879 = vpop.permute.xlu0 %878
        %880 = vrot.lane.b32.xlu0 %v665, 25
        %v881 = vpop.permute.xlu0 %880
        %882 = vrot.lane.b32.xlu0 %v666, 25
        %v883 = vpop.permute.xlu0 %882
        %884 = vrot.lane.b32.xlu0 %v667, 25
        %v885 = vpop.permute.xlu0 %884
        %886 = vrot.lane.b32.xlu0 %v668, 25
        %v887 = vpop.permute.xlu0 %886
        %888 = vrot.lane.b32.xlu0 %v669, 25
        %v889 = vpop.permute.xlu0 %888
        %vm890 = vcmask 203776
        %v891 = vsel %vm890, %v687, %v689
        %v892 = vsel %vm890, %v689, %v691
        %v893 = vsel %vm890, %v691, %v693
        %v894 = vsel %vm890, %v693, %v695
        %v895 = vsel %vm890, %v695, %v697
        %v896 = vsel %vm890, %v699, %v701
        %v897 = vsel %vm890, %v701, %v703
        %v898 = vsel %vm890, %v703, %v705
        %v899 = vsel %vm890, %v705, %v707
        %v900 = vsel %vm890, %v707, %v709
        %v901 = vsel %vm890, %v711, %v713
        %v902 = vsel %vm890, %v713, %v715
        %v903 = vsel %vm890, %v715, %v717
        %v904 = vsel %vm890, %v717, %v719
        %v905 = vsel %vm890, %v719, %v721
        %v906 = vsel %vm890, %v723, %v725
        %v907 = vsel %vm890, %v725, %v727
        %v908 = vsel %vm890, %v727, %v729
        %v909 = vsel %vm890, %v729, %v731
        %v910 = vsel %vm890, %v731, %v733
        %v911 = vsel %vm890, %v735, %v737
        %v912 = vsel %vm890, %v737, %v739
        %v913 = vsel %vm890, %v739, %v741
        %v914 = vsel %vm890, %v741, %v743
        %v915 = vsel %vm890, %v743, %v745
        %v916 = vsel %vm890, %v747, %v749
        %v917 = vsel %vm890, %v749, %v751
        %v918 = vsel %vm890, %v751, %v753
        %v919 = vsel %vm890, %v753, %v755
        %v920 = vsel %vm890, %v755, %v757
        %v921 = vsel %vm890, %v759, %v761
        %v922 = vsel %vm890, %v761, %v763
        %v923 = vsel %vm890, %v763, %v765
        %v924 = vsel %vm890, %v765, %v767
        %v925 = vsel %vm890, %v767, %v769
        %v926 = vsel %vm890, %v771, %v773
        %v927 = vsel %vm890, %v773, %v775
        %v928 = vsel %vm890, %v775, %v777
        %v929 = vsel %vm890, %v777, %v779
        %v930 = vsel %vm890, %v779, %v781
        %v931 = vsel %vm890, %v783, %v785
        %v932 = vsel %vm890, %v785, %v787
        %v933 = vsel %vm890, %v787, %v789
        %v934 = vsel %vm890, %v789, %v791
        %v935 = vsel %vm890, %v791, %v793
        %v936 = vsel %vm890, %v795, %v797
        %v937 = vsel %vm890, %v797, %v799
        %v938 = vsel %vm890, %v799, %v801
        %v939 = vsel %vm890, %v801, %v803
        %v940 = vsel %vm890, %v803, %v805
        %v941 = vsel %vm890, %v807, %v809
        %v942 = vsel %vm890, %v809, %v811
        %v943 = vsel %vm890, %v811, %v813
        %v944 = vsel %vm890, %v813, %v815
        %v945 = vsel %vm890, %v815, %v817
        %v946 = vsel %vm890, %v819, %v821
        %v947 = vsel %vm890, %v821, %v823
        %v948 = vsel %vm890, %v823, %v825
        %v949 = vsel %vm890, %v825, %v827
        %v950 = vsel %vm890, %v827, %v829
        %v951 = vsel %vm890, %v831, %v833
        %v952 = vsel %vm890, %v833, %v835
        %v953 = vsel %vm890, %v835, %v837
        %v954 = vsel %vm890, %v837, %v839
        %v955 = vsel %vm890, %v839, %v841
        %v956 = vsel %vm890, %v843, %v845
        %v957 = vsel %vm890, %v845, %v847
        %v958 = vsel %vm890, %v847, %v849
        %v959 = vsel %vm890, %v849, %v851
        %v960 = vsel %vm890, %v851, %v853
        %v961 = vsel %vm890, %v855, %v857
        %v962 = vsel %vm890, %v857, %v859
        %v963 = vsel %vm890, %v859, %v861
        %v964 = vsel %vm890, %v861, %v863
        %v965 = vsel %vm890, %v863, %v865
        %v966 = vsel %vm890, %v867, %v869
        %v967 = vsel %vm890, %v869, %v871
        %v968 = vsel %vm890, %v871, %v873
        %v969 = vsel %vm890, %v873, %v875
        %v970 = vsel %vm890, %v875, %v877
        %v971 = vsel %vm890, %v879, %v881
        %v972 = vsel %vm890, %v881, %v883
        %v973 = vsel %vm890, %v883, %v885
        %v974 = vsel %vm890, %v885, %v887
        %v975 = vsel %vm890, %v887, %v889
        %vm1061 = vcmask 130048
        %v1063 = vsel %vm1061, %v671, 0
        %v1066 = vsel %vm1061, %v673, 0
        %1068 = vmatprep.subr.mxu0 %v892
        %1069 = vmatpush1.msra.mxu0 %v891
        %1070 = vmatprep.subr.mxu0 %v897
        %1071 = vmatpush1.msra.mxu0 %v896
        %1072 = vmatprep.subr.mxu0 %v902
        %1073 = vmatpush1.msra.mxu0 %v901
        %1074 = vmatprep.subr.mxu0 %v907
        %1075 = vmatpush1.msra.mxu0 %v906
        %1076 = vmatprep.subr.mxu0 %v912
        %1077 = vmatpush1.msra.mxu0 %v911
        %1078 = vmatprep.subr.mxu0 %v917
        %1079 = vmatpush1.msra.mxu0 %v916
        %1080 = vmatprep.subr.mxu0 %v922
        %1081 = vmatpush1.msra.mxu0 %v921
        %1082 = vmatprep.subr.mxu0 %v927
        %1083 = vmatpush1.msra.mxu0 %v926
        %1084 = vmatprep.subr.mxu0 %v932
        %1085 = vmatpush1.msra.mxu0 %v931
        %1086 = vmatprep.subr.mxu0 %v937
        %1087 = vmatpush1.msra.mxu0 %v936
        %1088 = vmatprep.subr.mxu0 %v942
        %1089 = vmatpush1.msra.mxu0 %v941
        %1090 = vmatprep.subr.mxu0 %v947
        %1091 = vmatpush1.msra.mxu0 %v946
        %1092 = vmatprep.subr.mxu0 %v952
        %1093 = vmatpush1.msra.mxu0 %v951
        %1094 = vmatprep.subr.mxu0 %v912
        %1095 = vmatpush1.msra.mxu0 %v911
        %1096 = vmatprep.subr.mxu0 %v957
        %1097 = vmatpush1.msra.mxu0 %v956
        %1098 = vmatprep.subr.mxu0 %v962
        %1099 = vmatpush1.msra.mxu0 %v961
        %1100 = vmatprep.subr.mxu0 %v967
        %1101 = vmatpush1.msra.mxu0 %v966
        %1102 = vmatprep.subr.mxu0 %v972
        %1103 = vmatpush1.msra.mxu0 %v971
        %1104 = vmatprep.subr.mxu0 0.0
        %1105 = vmatpush1.msra.mxu0 0.0
        %1106 = vmatprep.subr.mxu0 0.0
        %1107 = vmatpush1.msra.mxu0 0.0
        %1108 = vmatprep.subr.mxu0 0.0
        %1109 = vmatpush1.msra.mxu0 0.0
        %1110 = vmatprep.subr.mxu0 0.0
        %1111 = vmatpush1.msra.mxu0 0.0
        %1112 = vmatprep.subr.mxu0 0.0
        %1113 = vmatpush1.msra.mxu0 0.0
        %1114 = vmatprep.subr.mxu0 0.0
        %1115 = vmatpush1.msra.mxu0 0.0
        %1116 = vmatprep.subr.mxu0 0.0
        %1117 = vmatpush1.msra.mxu0 0.0
        %1118 = vmatprep.subr.mxu0 0.0
        %1119 = vmatpush1.msra.mxu0 0.0
        %1120 = vmatprep.subr.mxu0 0.0
        %1121 = vmatpush1.msra.mxu0 0.0
        %1122 = vmatprep.subr.mxu0 0.0
        %1123 = vmatpush1.msra.mxu0 0.0
        %1124 = vmatprep.subr.mxu0 0.0
        %1125 = vmatpush1.msra.mxu0 0.0
        %1126 = vmatprep.subr.mxu0 0.0
        %1127 = vmatpush1.msra.mxu0 0.0
        %1128 = vmatprep.subr.mxu0 0.0
        %1129 = vmatpush1.msra.mxu0 0.0
        %1130 = vmatprep.subr.mxu0 0.0
        %1131 = vmatpush1.msra.mxu0 0.0
        %1132 = vmatprep.mubr.f32.mxu0 %v1063
        %1133 = vmatmul.mubr.f32.gmra.mrb[0].mxu0 %v670
        %v1134 = vpop.f32.mrb[0].mxu0
        %v1135 = vadd.f32 %v679, %v1134
        %v1136 = vpop.f32.mrb[0].mxu0
        %v1137 = vadd.f32 %v679, %v1136
        %1138 = vmatprep.mubr.f32.mxu0 %v1066
        %1139 = vmatmul.mubr.f32.gmra.mrb[0].mxu0 %v672
        %v1140 = vpop.f32.mrb[0].mxu0
        %v1141 = vadd.f32 %v684, %v1140
        %v1142 = vpop.f32.mrb[0].mxu0
        %v1143 = vadd.f32 %v684, %v1142
        %1144 = vdwg.mxu0
        %1145 = vmatprep.subr.mxu0 %v894
        %1146 = vmatpush1.msra.mxu0 %v893
        %1147 = vmatprep.subr.mxu0 %v899
        %1148 = vmatpush1.msra.mxu0 %v898
        %1149 = vmatprep.subr.mxu0 %v904
        %1150 = vmatpush1.msra.mxu0 %v903
        %1151 = vmatprep.subr.mxu0 %v909
        %1152 = vmatpush1.msra.mxu0 %v908
        %1153 = vmatprep.subr.mxu0 %v914
        %1154 = vmatpush1.msra.mxu0 %v913
        %1155 = vmatprep.subr.mxu0 %v919
        %1156 = vmatpush1.msra.mxu0 %v918
        %1157 = vmatprep.subr.mxu0 %v924
        %1158 = vmatpush1.msra.mxu0 %v923
        %1159 = vmatprep.subr.mxu0 %v929
        %1160 = vmatpush1.msra.mxu0 %v928
        %1161 = vmatprep.subr.mxu0 %v934
        %1162 = vmatpush1.msra.mxu0 %v933
        %1163 = vmatprep.subr.mxu0 %v939
        %1164 = vmatpush1.msra.mxu0 %v938
        %1165 = vmatprep.subr.mxu0 %v944
        %1166 = vmatpush1.msra.mxu0 %v943
        %1167 = vmatprep.subr.mxu0 %v949
        %1168 = vmatpush1.msra.mxu0 %v948
        %1169 = vmatprep.subr.mxu0 %v954
        %1170 = vmatpush1.msra.mxu0 %v953
        %1171 = vmatprep.subr.mxu0 %v914
        %1172 = vmatpush1.msra.mxu0 %v913
        %1173 = vmatprep.subr.mxu0 %v959
        %1174 = vmatpush1.msra.mxu0 %v958
        %1175 = vmatprep.subr.mxu0 %v964
        %1176 = vmatpush1.msra.mxu0 %v963
        %1177 = vmatprep.subr.mxu0 %v969
        %1178 = vmatpush1.msra.mxu0 %v968
        %1179 = vmatprep.subr.mxu0 %v974
        %1180 = vmatpush1.msra.mxu0 %v973
        %1181 = vmatprep.subr.mxu0 0.0
        %1182 = vmatpush1.msra.mxu0 0.0
        %1183 = vmatprep.subr.mxu0 0.0
        %1184 = vmatpush1.msra.mxu0 0.0
        %1185 = vmatprep.subr.mxu0 0.0
        %1186 = vmatpush1.msra.mxu0 0.0
        %1187 = vmatprep.subr.mxu0 0.0
        %1188 = vmatpush1.msra.mxu0 0.0
        %1189 = vmatprep.subr.mxu0 0.0
        %1190 = vmatpush1.msra.mxu0 0.0
        %1191 = vmatprep.subr.mxu0 0.0
        %1192 = vmatpush1.msra.mxu0 0.0
        %1193 = vmatprep.subr.mxu0 0.0
        %1194 = vmatpush1.msra.mxu0 0.0
        %1195 = vmatprep.subr.mxu0 0.0
        %1196 = vmatpush1.msra.mxu0 0.0
        %1197 = vmatprep.subr.mxu0 0.0
        %1198 = vmatpush1.msra.mxu0 0.0
        %1199 = vmatprep.subr.mxu0 0.0
        %1200 = vmatpush1.msra.mxu0 0.0
        %1201 = vmatprep.subr.mxu0 0.0
        %1202 = vmatpush1.msra.mxu0 0.0
        %1203 = vmatprep.subr.mxu0 0.0
        %1204 = vmatpush1.msra.mxu0 0.0
        %1205 = vmatprep.subr.mxu0 0.0
        %1206 = vmatpush1.msra.mxu0 0.0
        %1207 = vmatprep.subr.mxu0 0.0
        %1208 = vmatpush1.msra.mxu0 0.0
        %1209 = vmatprep.mubr.f32.mxu0 %v1063
        %1210 = vmatmul.mubr.f32.gmra.mrb[0].mxu0 %v670
        %v1211 = vpop.f32.mrb[0].mxu0
        %v1212 = vadd.f32 %v679, %v1211
        %v1213 = vpop.f32.mrb[0].mxu0
        %v1214 = vadd.f32 %v679, %v1213
        %1215 = vmatprep.mubr.f32.mxu0 %v1066
        %1216 = vmatmul.mubr.f32.gmra.mrb[0].mxu0 %v672
        %v1217 = vpop.f32.mrb[0].mxu0
        %v1218 = vadd.f32 %v684, %v1217
        %v1219 = vpop.f32.mrb[0].mxu0
        %v1220 = vadd.f32 %v684, %v1219
        %1221 = vdwg.mxu0
        %1222 = vmatprep.subr.mxu0 0.0
        %1223 = vmatpush1.msra.mxu0 %v895
        %1224 = vmatprep.subr.mxu0 0.0
        %1225 = vmatpush1.msra.mxu0 %v900
        %1226 = vmatprep.subr.mxu0 0.0
        %1227 = vmatpush1.msra.mxu0 %v905
        %1228 = vmatprep.subr.mxu0 0.0
        %1229 = vmatpush1.msra.mxu0 %v910
        %1230 = vmatprep.subr.mxu0 0.0
        %1231 = vmatpush1.msra.mxu0 %v915
        %1232 = vmatprep.subr.mxu0 0.0
        %1233 = vmatpush1.msra.mxu0 %v920
        %1234 = vmatprep.subr.mxu0 0.0
        %1235 = vmatpush1.msra.mxu0 %v925
        %1236 = vmatprep.subr.mxu0 0.0
        %1237 = vmatpush1.msra.mxu0 %v930
        %1238 = vmatprep.subr.mxu0 0.0
        %1239 = vmatpush1.msra.mxu0 %v935
        %1240 = vmatprep.subr.mxu0 0.0
        %1241 = vmatpush1.msra.mxu0 %v940
        %1242 = vmatprep.subr.mxu0 0.0
        %1243 = vmatpush1.msra.mxu0 %v945
        %1244 = vmatprep.subr.mxu0 0.0
        %1245 = vmatpush1.msra.mxu0 %v950
        %1246 = vmatprep.subr.mxu0 0.0
        %1247 = vmatpush1.msra.mxu0 %v955
        %1248 = vmatprep.subr.mxu0 0.0
        %1249 = vmatpush1.msra.mxu0 %v915
        %1250 = vmatprep.subr.mxu0 0.0
        %1251 = vmatpush1.msra.mxu0 %v960
        %1252 = vmatprep.subr.mxu0 0.0
        %1253 = vmatpush1.msra.mxu0 %v965
        %1254 = vmatprep.subr.mxu0 0.0
        %1255 = vmatpush1.msra.mxu0 %v970
        %1256 = vmatprep.subr.mxu0 0.0
        %1257 = vmatpush1.msra.mxu0 %v975
        %1258 = vmatprep.subr.mxu0 0.0
        %1259 = vmatpush1.msra.mxu0 0.0
        %1260 = vmatprep.subr.mxu0 0.0
        %1261 = vmatpush1.msra.mxu0 0.0
        %1262 = vmatprep.subr.mxu0 0.0
        %1263 = vmatpush1.msra.mxu0 0.0
        %1264 = vmatprep.subr.mxu0 0.0
        %1265 = vmatpush1.msra.mxu0 0.0
        %1266 = vmatprep.subr.mxu0 0.0
        %1267 = vmatpush1.msra.mxu0 0.0
        %1268 = vmatprep.subr.mxu0 0.0
        %1269 = vmatpush1.msra.mxu0 0.0
        %1270 = vmatprep.subr.mxu0 0.0
        %1271 = vmatpush1.msra.mxu0 0.0
        %1272 = vmatprep.subr.mxu0 0.0
        %1273 = vmatpush1.msra.mxu0 0.0
        %1274 = vmatprep.subr.mxu0 0.0
        %1275 = vmatpush1.msra.mxu0 0.0
        %1276 = vmatprep.subr.mxu0 0.0
        %1277 = vmatpush1.msra.mxu0 0.0
        %1278 = vmatprep.subr.mxu0 0.0
        %1279 = vmatpush1.msra.mxu0 0.0
        %1280 = vmatprep.subr.mxu0 0.0
        %1281 = vmatpush1.msra.mxu0 0.0
        %1282 = vmatprep.subr.mxu0 0.0
        %1283 = vmatpush1.msra.mxu0 0.0
        %1284 = vmatprep.subr.mxu0 0.0
        %1285 = vmatpush1.msra.mxu0 0.0
        %1286 = vmatprep.mubr.f32.mxu0 %v1063
        %1287 = vmatmul.mubr.f32.gmra.mrb[0].mxu0 %v670
        %v1288 = vpop.f32.mrb[0].mxu0
        %v1289 = vadd.f32 %v679, %v1288
        %v1290 = vpop.f32.mrb[0].mxu0
        %1291 = vmatprep.mubr.f32.mxu0 %v1066
        %1292 = vmatmul.mubr.f32.gmra.mrb[0].mxu0 %v672
        %v1293 = vpop.f32.mrb[0].mxu0
        %v1294 = vadd.f32 %v684, %v1293
        %v1295 = vpop.f32.mrb[0].mxu0
        %1296 = vdwg.mxu0
        %v1297 = vmax.f32 %v1135, 0.0
        %v1298 = vmax.f32 %v1137, 0.0
        %v1299 = vmax.f32 %v1212, 0.0
        %v1300 = vmax.f32 %v1214, 0.0
        %v1301 = vmax.f32 %v1289, 0.0
        %v1302 = vmax.f32 %v1141, 0.0
        %v1303 = vmax.f32 %v1143, 0.0
        %v1304 = vmax.f32 %v1218, 0.0
        %v1305 = vmax.f32 %v1220, 0.0
        %v1306 = vmax.f32 %v1294, 0.0
        %v1308 = vlaneseq
        %v1309 = vshrl.u32 %v1308, 7
        %v1310 = vsub.s32 0, %v1309
        %v1311 = vrot.slane %v349, %v1310
        %v1312 = vlaneseq
        %v1313 = vshrl.u32 %v1312, 7
        %v1314 = vsub.s32 1, %v1313
        %v1315 = vrot.slane %v349, %v1314
        %v1316 = vlaneseq
        %v1317 = vshrl.u32 %v1316, 7
        %v1318 = vsub.s32 2, %v1317
        %v1319 = vrot.slane %v349, %v1318
        %v1320 = vlaneseq
        %v1321 = vshrl.u32 %v1320, 7
        %v1322 = vsub.s32 3, %v1321
        %v1323 = vrot.slane %v349, %v1322
        %v1324 = vlaneseq
        %v1325 = vshrl.u32 %v1324, 7
        %v1326 = vsub.s32 4, %v1325
        %v1327 = vrot.slane %v349, %v1326
        %v1333 = vmul.f32 %v1297, %v1311
        %v1334 = vmul.f32 %v1298, %v1315
        %v1335 = vmul.f32 %v1299, %v1319
        %v1336 = vmul.f32 %v1300, %v1323
        %v1337 = vmul.f32 %v1301, %v1327
        %v1338 = vmul.f32 %v1302, %v1311
        %v1339 = vmul.f32 %v1303, %v1315
        %v1340 = vmul.f32 %v1304, %v1319
        %v1341 = vmul.f32 %v1305, %v1323
        %v1342 = vmul.f32 %v1306, %v1327
        %1343 = vst [vmem:[#allocation2 + $0x8] sm:$0xff] %v1333
        %1344 = vst [vmem:[#allocation2 + $0x10] sm:$0xff] %v1334
        %1345 = vst [vmem:[#allocation2 + $0x18] sm:$0xff] %v1335
        %1346 = vst [vmem:[#allocation2 + $0x20] sm:$0xff] %v1336
        %1347 = vst [vmem:[#allocation2 + $0x28] sm:$0xff] %v1337
        %1348 = vst [vmem:[#allocation2 + $0x40] sm:$0xff] %v1338
        %1349 = vst [vmem:[#allocation2 + $0x48] sm:$0xff] %v1339
        %1350 = vst [vmem:[#allocation2 + $0x50] sm:$0xff] %v1340
        %1351 = vst [vmem:[#allocation2 + $0x58] sm:$0xff] %v1341
        %1352 = vst [vmem:[#allocation2 + $0x60] sm:$0xff] %v1342
        %v1353 = vld [vmem:[#allocation2] sm:$0xff]
        %v1354 = vld [vmem:[#allocation2 + $0x8] sm:$0xff]
        %v1355 = vld [vmem:[#allocation2 + $0x10] sm:$0xff]
        %v1356 = vld [vmem:[#allocation2 + $0x18] sm:$0xff]
        %v1357 = vld [vmem:[#allocation2 + $0x20] sm:$0xff]
        %v1358 = vld [vmem:[#allocation2 + $0x28] sm:$0xff]
        %v1359 = vld [vmem:[#allocation2 + $0x30] sm:$0xff]
        %v1360 = vld [vmem:[#allocation2 + $0x38] sm:$0xff]
        %v1361 = vld [vmem:[#allocation2 + $0x40] sm:$0xff]
        %v1362 = vld [vmem:[#allocation2 + $0x48] sm:$0xff]
        %v1363 = vld [vmem:[#allocation2 + $0x50] sm:$0xff]
        %v1364 = vld [vmem:[#allocation2 + $0x58] sm:$0xff]
        %v1365 = vld [vmem:[#allocation2 + $0x60] sm:$0xff]
        %v1366 = vld [vmem:[#allocation2 + $0x40] sm:$0xff]
        %v1367 = vld [vmem:[#allocation2 + $0x48] sm:$0xff]
        %v1368 = vld [vmem:[#allocation2 + $0x50] sm:$0xff]
        %v1369 = vld [vmem:[#allocation2 + $0x58] sm:$0xff]
        %v1370 = vld [vmem:[#allocation2 + $0x60] sm:$0xff]
        %v1371 = vld [vmem:[#allocation2 + $0x68] sm:$0xff]
        %1378 = vrot.lane.b32.xlu0 %v1353, 126
        %v1379 = vpop.permute.xlu0 %1378
        %1380 = vrot.lane.b32.xlu0 %v1354, 126
        %v1381 = vpop.permute.xlu0 %1380
        %1382 = vrot.lane.b32.xlu0 %v1355, 126
        %v1383 = vpop.permute.xlu0 %1382
        %1384 = vrot.lane.b32.xlu0 %v1356, 126
        %v1385 = vpop.permute.xlu0 %1384
        %1386 = vrot.lane.b32.xlu0 %v1357, 126
        %v1387 = vpop.permute.xlu0 %1386
        %1388 = vrot.lane.b32.xlu0 %v1358, 126
        %v1389 = vpop.permute.xlu0 %1388
        %v1390 = vsel %vm397, %v1379, %v1381
        %v1391 = vsel %vm397, %v1381, %v1383
        %v1392 = vsel %vm397, %v1383, %v1385
        %v1393 = vsel %vm397, %v1385, %v1387
        %v1394 = vsel %vm397, %v1387, %v1389
        %1395 = vrot.lane.b32.xlu0 %v1353, 124
        %v1396 = vpop.permute.xlu0 %1395
        %1397 = vrot.lane.b32.xlu0 %v1354, 124
        %v1398 = vpop.permute.xlu0 %1397
        %1399 = vrot.lane.b32.xlu0 %v1355, 124
        %v1400 = vpop.permute.xlu0 %1399
        %1401 = vrot.lane.b32.xlu0 %v1356, 124
        %v1402 = vpop.permute.xlu0 %1401
        %1403 = vrot.lane.b32.xlu0 %v1357, 124
        %v1404 = vpop.permute.xlu0 %1403
        %1405 = vrot.lane.b32.xlu0 %v1358, 124
        %v1406 = vpop.permute.xlu0 %1405
        %vm1407 = vcmask 1014784
        %v1408 = vsel %vm1407, %v1396, %v1398
        %v1409 = vsel %vm1407, %v1398, %v1400
        %v1410 = vsel %vm1407, %v1400, %v1402
        %v1411 = vsel %vm1407, %v1402, %v1404
        %v1412 = vsel %vm1407, %v1404, %v1406
        %1413 = vrot.lane.b32.xlu0 %v1353, 80
        %v1414 = vpop.permute.xlu0 %1413
        %1415 = vrot.lane.b32.xlu0 %v1354, 80
        %v1416 = vpop.permute.xlu0 %1415
        %1417 = vrot.lane.b32.xlu0 %v1355, 80
        %v1418 = vpop.permute.xlu0 %1417
        %1419 = vrot.lane.b32.xlu0 %v1356, 80
        %v1420 = vpop.permute.xlu0 %1419
        %1421 = vrot.lane.b32.xlu0 %v1357, 80
        %v1422 = vpop.permute.xlu0 %1421
        %1423 = vrot.lane.b32.xlu0 %v1358, 80
        %v1424 = vpop.permute.xlu0 %1423
        %v1425 = vsel %vm467, %v1414, %v1416
        %v1426 = vsel %vm467, %v1416, %v1418
        %v1427 = vsel %vm467, %v1418, %v1420
        %v1428 = vsel %vm467, %v1420, %v1422
        %v1429 = vsel %vm467, %v1422, %v1424
        %1430 = vrot.lane.b32.xlu0 %v1354, 78
        %v1431 = vpop.permute.xlu0 %1430
        %1432 = vrot.lane.b32.xlu0 %v1355, 78
        %v1433 = vpop.permute.xlu0 %1432
        %1434 = vrot.lane.b32.xlu0 %v1356, 78
        %v1435 = vpop.permute.xlu0 %1434
        %1436 = vrot.lane.b32.xlu0 %v1357, 78
        %v1437 = vpop.permute.xlu0 %1436
        %1438 = vrot.lane.b32.xlu0 %v1358, 78
        %v1439 = vpop.permute.xlu0 %1438
        %v1440 = vsel %vm503, %v1431, %v1433
        %v1441 = vsel %vm503, %v1433, %v1435
        %v1442 = vsel %vm503, %v1435, %v1437
        %v1443 = vsel %vm503, %v1437, %v1439
        %1445 = vrot.lane.b32.xlu0 %v1354, 76
        %v1446 = vpop.permute.xlu0 %1445
        %1447 = vrot.lane.b32.xlu0 %v1355, 76
        %v1448 = vpop.permute.xlu0 %1447
        %1449 = vrot.lane.b32.xlu0 %v1356, 76
        %v1450 = vpop.permute.xlu0 %1449
        %1451 = vrot.lane.b32.xlu0 %v1357, 76
        %v1452 = vpop.permute.xlu0 %1451
        %1453 = vrot.lane.b32.xlu0 %v1358, 76
        %v1454 = vpop.permute.xlu0 %1453
        %1455 = vrot.lane.b32.xlu0 %v1359, 76
        %v1456 = vpop.permute.xlu0 %1455
        %vm1457 = vcmask 621568
        %v1458 = vsel %vm1457, %v1446, %v1448
        %v1459 = vsel %vm1457, %v1448, %v1450
        %v1460 = vsel %vm1457, %v1450, %v1452
        %v1461 = vsel %vm1457, %v1452, %v1454
        %v1462 = vsel %vm1457, %v1454, %v1456
        %1463 = vrot.lane.b32.xlu0 %v1354, 32
        %v1464 = vpop.permute.xlu0 %1463
        %1465 = vrot.lane.b32.xlu0 %v1355, 32
        %v1466 = vpop.permute.xlu0 %1465
        %1467 = vrot.lane.b32.xlu0 %v1356, 32
        %v1468 = vpop.permute.xlu0 %1467
        %1469 = vrot.lane.b32.xlu0 %v1357, 32
        %v1470 = vpop.permute.xlu0 %1469
        %1471 = vrot.lane.b32.xlu0 %v1358, 32
        %v1472 = vpop.permute.xlu0 %1471
        %1473 = vrot.lane.b32.xlu0 %v1359, 32
        %v1474 = vpop.permute.xlu0 %1473
        %vm1475 = vcmask 261120
        %v1476 = vsel %vm1475, %v1464, %v1466
        %v1477 = vsel %vm1475, %v1466, %v1468
        %v1478 = vsel %vm1475, %v1468, %v1470
        %v1479 = vsel %vm1475, %v1470, %v1472
        %v1480 = vsel %vm1475, %v1472, %v1474
        %1481 = vrot.lane.b32.xlu0 %v1354, 30
        %v1482 = vpop.permute.xlu0 %1481
        %1483 = vrot.lane.b32.xlu0 %v1355, 30
        %v1484 = vpop.permute.xlu0 %1483
        %1485 = vrot.lane.b32.xlu0 %v1356, 30
        %v1486 = vpop.permute.xlu0 %1485
        %1487 = vrot.lane.b32.xlu0 %v1357, 30
        %v1488 = vpop.permute.xlu0 %1487
        %1489 = vrot.lane.b32.xlu0 %v1358, 30
        %v1490 = vpop.permute.xlu0 %1489
        %1491 = vrot.lane.b32.xlu0 %v1359, 30
        %v1492 = vpop.permute.xlu0 %1491
        %vm1493 = vcmask 244736
        %v1494 = vsel %vm1493, %v1482, %v1484
        %v1495 = vsel %vm1493, %v1484, %v1486
        %v1496 = vsel %vm1493, %v1486, %v1488
        %v1497 = vsel %vm1493, %v1488, %v1490
        %v1498 = vsel %vm1493, %v1490, %v1492
        %1499 = vrot.lane.b32.xlu0 %v1354, 28
        %v1500 = vpop.permute.xlu0 %1499
        %1501 = vrot.lane.b32.xlu0 %v1355, 28
        %v1502 = vpop.permute.xlu0 %1501
        %1503 = vrot.lane.b32.xlu0 %v1356, 28
        %v1504 = vpop.permute.xlu0 %1503
        %1505 = vrot.lane.b32.xlu0 %v1357, 28
        %v1506 = vpop.permute.xlu0 %1505
        %1507 = vrot.lane.b32.xlu0 %v1358, 28
        %v1508 = vpop.permute.xlu0 %1507
        %1509 = vrot.lane.b32.xlu0 %v1359, 28
        %v1510 = vpop.permute.xlu0 %1509
        %vm1511 = vcmask 228352
        %v1512 = vsel %vm1511, %v1500, %v1502
        %v1513 = vsel %vm1511, %v1502, %v1504
        %v1514 = vsel %vm1511, %v1504, %v1506
        %v1515 = vsel %vm1511, %v1506, %v1508
        %v1516 = vsel %vm1511, %v1508, %v1510
        %1523 = vrot.lane.b32.xlu0 %v1360, 50
        %v1524 = vpop.permute.xlu0 %1523
        %1525 = vrot.lane.b32.xlu0 %v1361, 50
        %v1526 = vpop.permute.xlu0 %1525
        %1527 = vrot.lane.b32.xlu0 %v1362, 50
        %v1528 = vpop.permute.xlu0 %1527
        %1529 = vrot.lane.b32.xlu0 %v1363, 50
        %v1530 = vpop.permute.xlu0 %1529
        %1531 = vrot.lane.b32.xlu0 %v1364, 50
        %v1532 = vpop.permute.xlu0 %1531
        %1533 = vrot.lane.b32.xlu0 %v1365, 50
        %v1534 = vpop.permute.xlu0 %1533
        %v1535 = vsel %vm521, %v1524, %v1526
        %v1536 = vsel %vm521, %v1526, %v1528
        %v1537 = vsel %vm521, %v1528, %v1530
        %v1538 = vsel %vm521, %v1530, %v1532
        %v1539 = vsel %vm521, %v1532, %v1534
        %1540 = vrot.lane.b32.xlu0 %v1360, 46
        %v1541 = vpop.permute.xlu0 %1540
        %1542 = vrot.lane.b32.xlu0 %v1361, 46
        %v1543 = vpop.permute.xlu0 %1542
        %1544 = vrot.lane.b32.xlu0 %v1362, 46
        %v1545 = vpop.permute.xlu0 %1544
        %1546 = vrot.lane.b32.xlu0 %v1363, 46
        %v1547 = vpop.permute.xlu0 %1546
        %1548 = vrot.lane.b32.xlu0 %v1364, 46
        %v1549 = vpop.permute.xlu0 %1548
        %1550 = vrot.lane.b32.xlu0 %v1365, 46
        %v1551 = vpop.permute.xlu0 %1550
        %vm1552 = vcmask 375808
        %v1553 = vsel %vm1552, %v1541, %v1543
        %v1554 = vsel %vm1552, %v1543, %v1545
        %v1555 = vsel %vm1552, %v1545, %v1547
        %v1556 = vsel %vm1552, %v1547, %v1549
        %v1557 = vsel %vm1552, %v1549, %v1551
        %1558 = vrot.lane.b32.xlu0 %v1360, 42
        %v1559 = vpop.permute.xlu0 %1558
        %1560 = vrot.lane.b32.xlu0 %v1361, 42
        %v1561 = vpop.permute.xlu0 %1560
        %1562 = vrot.lane.b32.xlu0 %v1362, 42
        %v1563 = vpop.permute.xlu0 %1562
        %1564 = vrot.lane.b32.xlu0 %v1363, 42
        %v1565 = vpop.permute.xlu0 %1564
        %1566 = vrot.lane.b32.xlu0 %v1364, 42
        %v1567 = vpop.permute.xlu0 %1566
        %1568 = vrot.lane.b32.xlu0 %v1365, 42
        %v1569 = vpop.permute.xlu0 %1568
        %vm1570 = vcmask 343040
        %v1571 = vsel %vm1570, %v1559, %v1561
        %v1572 = vsel %vm1570, %v1561, %v1563
        %v1573 = vsel %vm1570, %v1563, %v1565
        %v1574 = vsel %vm1570, %v1565, %v1567
        %v1575 = vsel %vm1570, %v1567, %v1569
        %1576 = vrot.lane.b32.xlu0 %v1360, 82
        %v1577 = vpop.permute.xlu0 %1576
        %1578 = vrot.lane.b32.xlu0 %v1361, 82
        %v1579 = vpop.permute.xlu0 %1578
        %1580 = vrot.lane.b32.xlu0 %v1362, 82
        %v1581 = vpop.permute.xlu0 %1580
        %1582 = vrot.lane.b32.xlu0 %v1363, 82
        %v1583 = vpop.permute.xlu0 %1582
        %1584 = vrot.lane.b32.xlu0 %v1364, 82
        %v1585 = vpop.permute.xlu0 %1584
        %1586 = vrot.lane.b32.xlu0 %v1365, 82
        %v1587 = vpop.permute.xlu0 %1586
        %vm1588 = vcmask 670720
        %v1589 = vsel %vm1588, %v1577, %v1579
        %v1590 = vsel %vm1588, %v1579, %v1581
        %v1591 = vsel %vm1588, %v1581, %v1583
        %v1592 = vsel %vm1588, %v1583, %v1585
        %v1593 = vsel %vm1588, %v1585, %v1587
        %1594 = vrot.lane.b32.xlu0 %v1361, 78
        %v1595 = vpop.permute.xlu0 %1594
        %1596 = vrot.lane.b32.xlu0 %v1362, 78
        %v1597 = vpop.permute.xlu0 %1596
        %1598 = vrot.lane.b32.xlu0 %v1363, 78
        %v1599 = vpop.permute.xlu0 %1598
        %1600 = vrot.lane.b32.xlu0 %v1364, 78
        %v1601 = vpop.permute.xlu0 %1600
        %1602 = vrot.lane.b32.xlu0 %v1365, 78
        %v1603 = vpop.permute.xlu0 %1602
        %v1604 = vsel %vm503, %v1595, %v1597
        %v1605 = vsel %vm503, %v1597, %v1599
        %v1606 = vsel %vm503, %v1599, %v1601
        %v1607 = vsel %vm503, %v1601, %v1603
        %1614 = vrot.lane.b32.xlu0 %v1366, 74
        %v1615 = vpop.permute.xlu0 %1614
        %1616 = vrot.lane.b32.xlu0 %v1367, 74
        %v1617 = vpop.permute.xlu0 %1616
        %1618 = vrot.lane.b32.xlu0 %v1368, 74
        %v1619 = vpop.permute.xlu0 %1618
        %1620 = vrot.lane.b32.xlu0 %v1369, 74
        %v1621 = vpop.permute.xlu0 %1620
        %1622 = vrot.lane.b32.xlu0 %v1370, 74
        %v1623 = vpop.permute.xlu0 %1622
        %1624 = vrot.lane.b32.xlu0 %v1371, 74
        %v1625 = vpop.permute.xlu0 %1624
        %vm1626 = vcmask 605184
        %v1627 = vsel %vm1626, %v1615, %v1617
        %v1628 = vsel %vm1626, %v1617, %v1619
        %v1629 = vsel %vm1626, %v1619, %v1621
        %v1630 = vsel %vm1626, %v1621, %v1623
        %v1631 = vsel %vm1626, %v1623, %v1625
        %1632 = vrot.lane.b32.xlu0 %v1366, 114
        %v1633 = vpop.permute.xlu0 %1632
        %1634 = vrot.lane.b32.xlu0 %v1367, 114
        %v1635 = vpop.permute.xlu0 %1634
        %1636 = vrot.lane.b32.xlu0 %v1368, 114
        %v1637 = vpop.permute.xlu0 %1636
        %1638 = vrot.lane.b32.xlu0 %v1369, 114
        %v1639 = vpop.permute.xlu0 %1638
        %1640 = vrot.lane.b32.xlu0 %v1370, 114
        %v1641 = vpop.permute.xlu0 %1640
        %1642 = vrot.lane.b32.xlu0 %v1371, 114
        %v1643 = vpop.permute.xlu0 %1642
        %vm1644 = vcmask 932864
        %v1645 = vsel %vm1644, %v1633, %v1635
        %v1646 = vsel %vm1644, %v1635, %v1637
        %v1647 = vsel %vm1644, %v1637, %v1639
        %v1648 = vsel %vm1644, %v1639, %v1641
        %v1649 = vsel %vm1644, %v1641, %v1643
        %1650 = vrot.lane.b32.xlu0 %v1366, 124
        %v1651 = vpop.permute.xlu0 %1650
        %1652 = vrot.lane.b32.xlu0 %v1367, 124
        %v1653 = vpop.permute.xlu0 %1652
        %1654 = vrot.lane.b32.xlu0 %v1368, 124
        %v1655 = vpop.permute.xlu0 %1654
        %1656 = vrot.lane.b32.xlu0 %v1369, 124
        %v1657 = vpop.permute.xlu0 %1656
        %1658 = vrot.lane.b32.xlu0 %v1370, 124
        %v1659 = vpop.permute.xlu0 %1658
        %1660 = vrot.lane.b32.xlu0 %v1371, 124
        %v1661 = vpop.permute.xlu0 %1660
        %v1662 = vsel %vm1407, %v1651, %v1653
        %v1663 = vsel %vm1407, %v1653, %v1655
        %v1664 = vsel %vm1407, %v1655, %v1657
        %v1665 = vsel %vm1407, %v1657, %v1659
        %v1666 = vsel %vm1407, %v1659, %v1661
        %1667 = vrot.lane.b32.xlu0 %v1366, 110
        %v1668 = vpop.permute.xlu0 %1667
        %1669 = vrot.lane.b32.xlu0 %v1367, 110
        %v1670 = vpop.permute.xlu0 %1669
        %1671 = vrot.lane.b32.xlu0 %v1368, 110
        %v1672 = vpop.permute.xlu0 %1671
        %1673 = vrot.lane.b32.xlu0 %v1369, 110
        %v1674 = vpop.permute.xlu0 %1673
        %1675 = vrot.lane.b32.xlu0 %v1370, 110
        %v1676 = vpop.permute.xlu0 %1675
        %1677 = vrot.lane.b32.xlu0 %v1371, 110
        %v1678 = vpop.permute.xlu0 %1677
        %1679 = vrot.lane.b32.xlu0 %v1662, 110
        %v1680 = vpop.permute.xlu0 %1679
        %1681 = vrot.lane.b32.xlu0 %v1663, 110
        %v1682 = vpop.permute.xlu0 %1681
        %1683 = vrot.lane.b32.xlu0 %v1664, 110
        %v1684 = vpop.permute.xlu0 %1683
        %1685 = vrot.lane.b32.xlu0 %v1665, 110
        %v1686 = vpop.permute.xlu0 %1685
        %1687 = vrot.lane.b32.xlu0 %v1666, 110
        %v1688 = vpop.permute.xlu0 %1687
        %1689 = vrot.lane.b32.xlu0 %v1661, 110
        %v1690 = vpop.permute.xlu0 %1689
        %vm1691 = vcmask 900096
        %v1692 = vsel %vm1691, %v1668, %v1670
        %v1693 = vsel %vm1691, %v1670, %v1672
        %v1694 = vsel %vm1691, %v1672, %v1674
        %v1695 = vsel %vm1691, %v1674, %v1676
        %v1696 = vsel %vm1691, %v1676, %v1678
        %v1697 = vsel %vm1691, %v1680, %v1682
        %v1698 = vsel %vm1691, %v1682, %v1684
        %v1699 = vsel %vm1691, %v1684, %v1686
        %v1700 = vsel %vm1691, %v1686, %v1688
        %v1701 = vsel %vm1691, %v1688, %v1690
        %v1702 = vld [vmem:[#allocation8] sm:$0xff]
        %v1703 = vld [vmem:[#allocation8 + $0x8] sm:$0xff]
        %v1704 = vld [vmem:[#allocation8 + $0x10] sm:$0xff]
        %v1705 = vld [vmem:[#allocation8 + $0x18] sm:$0xff]
        %v1706 = vld [vmem:[%s5] sm:$0xff]
        %v1707 = vld [vmem:[%s5 + $0x8] sm:$0xff]
        %1709 = vset.pattern.permute.xlu0 0
        %1710 = vperm.xlu0 %1709, %v1706
        %v1711 = vpop.permute.xlu0 %1710
        %1714 = vset.pattern.permute.xlu0 0
        %1715 = vperm.xlu0 %1714, %v1707
        %v1716 = vpop.permute.xlu0 %1715
        %1718 = vrot.lane.b32.xlu0 %v1353, 50
        %v1719 = vpop.permute.xlu0 %1718
        %1720 = vrot.lane.b32.xlu0 %v1354, 50
        %v1721 = vpop.permute.xlu0 %1720
        %1722 = vrot.lane.b32.xlu0 %v1355, 50
        %v1723 = vpop.permute.xlu0 %1722
        %1724 = vrot.lane.b32.xlu0 %v1356, 50
        %v1725 = vpop.permute.xlu0 %1724
        %1726 = vrot.lane.b32.xlu0 %v1357, 50
        %v1727 = vpop.permute.xlu0 %1726
        %1728 = vrot.lane.b32.xlu0 %v1358, 50
        %v1729 = vpop.permute.xlu0 %1728
        %1730 = vrot.lane.b32.xlu0 %v1390, 50
        %v1731 = vpop.permute.xlu0 %1730
        %1732 = vrot.lane.b32.xlu0 %v1391, 50
        %v1733 = vpop.permute.xlu0 %1732
        %1734 = vrot.lane.b32.xlu0 %v1392, 50
        %v1735 = vpop.permute.xlu0 %1734
        %1736 = vrot.lane.b32.xlu0 %v1393, 50
        %v1737 = vpop.permute.xlu0 %1736
        %1738 = vrot.lane.b32.xlu0 %v1394, 50
        %v1739 = vpop.permute.xlu0 %1738
        %1740 = vrot.lane.b32.xlu0 %v1389, 50
        %v1741 = vpop.permute.xlu0 %1740
        %1742 = vrot.lane.b32.xlu0 %v1408, 50
        %v1743 = vpop.permute.xlu0 %1742
        %1744 = vrot.lane.b32.xlu0 %v1409, 50
        %v1745 = vpop.permute.xlu0 %1744
        %1746 = vrot.lane.b32.xlu0 %v1410, 50
        %v1747 = vpop.permute.xlu0 %1746
        %1748 = vrot.lane.b32.xlu0 %v1411, 50
        %v1749 = vpop.permute.xlu0 %1748
        %1750 = vrot.lane.b32.xlu0 %v1412, 50
        %v1751 = vpop.permute.xlu0 %1750
        %1752 = vrot.lane.b32.xlu0 %v1406, 50
        %v1753 = vpop.permute.xlu0 %1752
        %1754 = vrot.lane.b32.xlu0 %v1425, 50
        %v1755 = vpop.permute.xlu0 %1754
        %1756 = vrot.lane.b32.xlu0 %v1426, 50
        %v1757 = vpop.permute.xlu0 %1756
        %1758 = vrot.lane.b32.xlu0 %v1427, 50
        %v1759 = vpop.permute.xlu0 %1758
        %1760 = vrot.lane.b32.xlu0 %v1428, 50
        %v1761 = vpop.permute.xlu0 %1760
        %1762 = vrot.lane.b32.xlu0 %v1429, 50
        %v1763 = vpop.permute.xlu0 %1762
        %1764 = vrot.lane.b32.xlu0 %v1424, 50
        %v1765 = vpop.permute.xlu0 %1764
        %1766 = vrot.lane.b32.xlu0 %v1431, 50
        %v1767 = vpop.permute.xlu0 %1766
        %1768 = vrot.lane.b32.xlu0 %v1440, 50
        %v1769 = vpop.permute.xlu0 %1768
        %1770 = vrot.lane.b32.xlu0 %v1441, 50
        %v1771 = vpop.permute.xlu0 %1770
        %1772 = vrot.lane.b32.xlu0 %v1442, 50
        %v1773 = vpop.permute.xlu0 %1772
        %1774 = vrot.lane.b32.xlu0 %v1443, 50
        %v1775 = vpop.permute.xlu0 %1774
        %1776 = vrot.lane.b32.xlu0 %v1439, 50
        %v1777 = vpop.permute.xlu0 %1776
        %1778 = vrot.lane.b32.xlu0 %v1446, 50
        %v1779 = vpop.permute.xlu0 %1778
        %1780 = vrot.lane.b32.xlu0 %v1458, 50
        %v1781 = vpop.permute.xlu0 %1780
        %1782 = vrot.lane.b32.xlu0 %v1459, 50
        %v1783 = vpop.permute.xlu0 %1782
        %1784 = vrot.lane.b32.xlu0 %v1460, 50
        %v1785 = vpop.permute.xlu0 %1784
        %1786 = vrot.lane.b32.xlu0 %v1461, 50
        %v1787 = vpop.permute.xlu0 %1786
        %1788 = vrot.lane.b32.xlu0 %v1462, 50
        %v1789 = vpop.permute.xlu0 %1788
        %1790 = vrot.lane.b32.xlu0 %v1464, 50
        %v1791 = vpop.permute.xlu0 %1790
        %1792 = vrot.lane.b32.xlu0 %v1476, 50
        %v1793 = vpop.permute.xlu0 %1792
        %1794 = vrot.lane.b32.xlu0 %v1477, 50
        %v1795 = vpop.permute.xlu0 %1794
        %1796 = vrot.lane.b32.xlu0 %v1478, 50
        %v1797 = vpop.permute.xlu0 %1796
        %1798 = vrot.lane.b32.xlu0 %v1479, 50
        %v1799 = vpop.permute.xlu0 %1798
        %1800 = vrot.lane.b32.xlu0 %v1480, 50
        %v1801 = vpop.permute.xlu0 %1800
        %1802 = vrot.lane.b32.xlu0 %v1482, 50
        %v1803 = vpop.permute.xlu0 %1802
        %1804 = vrot.lane.b32.xlu0 %v1494, 50
        %v1805 = vpop.permute.xlu0 %1804
        %1806 = vrot.lane.b32.xlu0 %v1495, 50
        %v1807 = vpop.permute.xlu0 %1806
        %1808 = vrot.lane.b32.xlu0 %v1496, 50
        %v1809 = vpop.permute.xlu0 %1808
        %1810 = vrot.lane.b32.xlu0 %v1497, 50
        %v1811 = vpop.permute.xlu0 %1810
        %1812 = vrot.lane.b32.xlu0 %v1498, 50
        %v1813 = vpop.permute.xlu0 %1812
        %1814 = vrot.lane.b32.xlu0 %v1500, 50
        %v1815 = vpop.permute.xlu0 %1814
        %1816 = vrot.lane.b32.xlu0 %v1512, 50
        %v1817 = vpop.permute.xlu0 %1816
        %1818 = vrot.lane.b32.xlu0 %v1513, 50
        %v1819 = vpop.permute.xlu0 %1818
        %1820 = vrot.lane.b32.xlu0 %v1514, 50
        %v1821 = vpop.permute.xlu0 %1820
        %1822 = vrot.lane.b32.xlu0 %v1515, 50
        %v1823 = vpop.permute.xlu0 %1822
        %1824 = vrot.lane.b32.xlu0 %v1516, 50
        %v1825 = vpop.permute.xlu0 %1824
        %1826 = vrot.lane.b32.xlu0 %v1524, 50
        %v1827 = vpop.permute.xlu0 %1826
        %1828 = vrot.lane.b32.xlu0 %v1535, 50
        %v1829 = vpop.permute.xlu0 %1828
        %1830 = vrot.lane.b32.xlu0 %v1536, 50
        %v1831 = vpop.permute.xlu0 %1830
        %1832 = vrot.lane.b32.xlu0 %v1537, 50
        %v1833 = vpop.permute.xlu0 %1832
        %1834 = vrot.lane.b32.xlu0 %v1538, 50
        %v1835 = vpop.permute.xlu0 %1834
        %1836 = vrot.lane.b32.xlu0 %v1539, 50
        %v1837 = vpop.permute.xlu0 %1836
        %1838 = vrot.lane.b32.xlu0 %v1541, 50
        %v1839 = vpop.permute.xlu0 %1838
        %1840 = vrot.lane.b32.xlu0 %v1553, 50
        %v1841 = vpop.permute.xlu0 %1840
        %1842 = vrot.lane.b32.xlu0 %v1554, 50
        %v1843 = vpop.permute.xlu0 %1842
        %1844 = vrot.lane.b32.xlu0 %v1555, 50
        %v1845 = vpop.permute.xlu0 %1844
        %1846 = vrot.lane.b32.xlu0 %v1556, 50
        %v1847 = vpop.permute.xlu0 %1846
        %1848 = vrot.lane.b32.xlu0 %v1557, 50
        %v1849 = vpop.permute.xlu0 %1848
        %1850 = vrot.lane.b32.xlu0 %v1559, 50
        %v1851 = vpop.permute.xlu0 %1850
        %1852 = vrot.lane.b32.xlu0 %v1571, 50
        %v1853 = vpop.permute.xlu0 %1852
        %1854 = vrot.lane.b32.xlu0 %v1572, 50
        %v1855 = vpop.permute.xlu0 %1854
        %1856 = vrot.lane.b32.xlu0 %v1573, 50
        %v1857 = vpop.permute.xlu0 %1856
        %1858 = vrot.lane.b32.xlu0 %v1574, 50
        %v1859 = vpop.permute.xlu0 %1858
        %1860 = vrot.lane.b32.xlu0 %v1575, 50
        %v1861 = vpop.permute.xlu0 %1860
        %1862 = vrot.lane.b32.xlu0 %v1589, 50
        %v1863 = vpop.permute.xlu0 %1862
        %1864 = vrot.lane.b32.xlu0 %v1590, 50
        %v1865 = vpop.permute.xlu0 %1864
        %1866 = vrot.lane.b32.xlu0 %v1591, 50
        %v1867 = vpop.permute.xlu0 %1866
        %1868 = vrot.lane.b32.xlu0 %v1592, 50
        %v1869 = vpop.permute.xlu0 %1868
        %1870 = vrot.lane.b32.xlu0 %v1593, 50
        %v1871 = vpop.permute.xlu0 %1870
        %1872 = vrot.lane.b32.xlu0 %v1587, 50
        %v1873 = vpop.permute.xlu0 %1872
        %1874 = vrot.lane.b32.xlu0 %v1595, 50
        %v1875 = vpop.permute.xlu0 %1874
        %1876 = vrot.lane.b32.xlu0 %v1604, 50
        %v1877 = vpop.permute.xlu0 %1876
        %1878 = vrot.lane.b32.xlu0 %v1605, 50
        %v1879 = vpop.permute.xlu0 %1878
        %1880 = vrot.lane.b32.xlu0 %v1606, 50
        %v1881 = vpop.permute.xlu0 %1880
        %1882 = vrot.lane.b32.xlu0 %v1607, 50
        %v1883 = vpop.permute.xlu0 %1882
        %1884 = vrot.lane.b32.xlu0 %v1603, 50
        %v1885 = vpop.permute.xlu0 %1884
        %1886 = vrot.lane.b32.xlu0 %v1615, 50
        %v1887 = vpop.permute.xlu0 %1886
        %1888 = vrot.lane.b32.xlu0 %v1627, 50
        %v1889 = vpop.permute.xlu0 %1888
        %1890 = vrot.lane.b32.xlu0 %v1628, 50
        %v1891 = vpop.permute.xlu0 %1890
        %1892 = vrot.lane.b32.xlu0 %v1629, 50
        %v1893 = vpop.permute.xlu0 %1892
        %1894 = vrot.lane.b32.xlu0 %v1630, 50
        %v1895 = vpop.permute.xlu0 %1894
        %1896 = vrot.lane.b32.xlu0 %v1631, 50
        %v1897 = vpop.permute.xlu0 %1896
        %1898 = vrot.lane.b32.xlu0 %v1645, 50
        %v1899 = vpop.permute.xlu0 %1898
        %1900 = vrot.lane.b32.xlu0 %v1646, 50
        %v1901 = vpop.permute.xlu0 %1900
        %1902 = vrot.lane.b32.xlu0 %v1647, 50
        %v1903 = vpop.permute.xlu0 %1902
        %1904 = vrot.lane.b32.xlu0 %v1648, 50
        %v1905 = vpop.permute.xlu0 %1904
        %1906 = vrot.lane.b32.xlu0 %v1649, 50
        %v1907 = vpop.permute.xlu0 %1906
        %1908 = vrot.lane.b32.xlu0 %v1643, 50
        %v1909 = vpop.permute.xlu0 %1908
        %1910 = vrot.lane.b32.xlu0 %v1692, 50
        %v1911 = vpop.permute.xlu0 %1910
        %1912 = vrot.lane.b32.xlu0 %v1693, 50
        %v1913 = vpop.permute.xlu0 %1912
        %1914 = vrot.lane.b32.xlu0 %v1694, 50
        %v1915 = vpop.permute.xlu0 %1914
        %1916 = vrot.lane.b32.xlu0 %v1695, 50
        %v1917 = vpop.permute.xlu0 %1916
        %1918 = vrot.lane.b32.xlu0 %v1696, 50
        %v1919 = vpop.permute.xlu0 %1918
        %1920 = vrot.lane.b32.xlu0 %v1678, 50
        %v1921 = vpop.permute.xlu0 %1920
        %1922 = vrot.lane.b32.xlu0 %v1697, 50
        %v1923 = vpop.permute.xlu0 %1922
        %1924 = vrot.lane.b32.xlu0 %v1698, 50
        %v1925 = vpop.permute.xlu0 %1924
        %1926 = vrot.lane.b32.xlu0 %v1699, 50
        %v1927 = vpop.permute.xlu0 %1926
        %1928 = vrot.lane.b32.xlu0 %v1700, 50
        %v1929 = vpop.permute.xlu0 %1928
        %1930 = vrot.lane.b32.xlu0 %v1701, 50
        %v1931 = vpop.permute.xlu0 %1930
        %1932 = vrot.lane.b32.xlu0 %v1690, 50
        %v1933 = vpop.permute.xlu0 %1932
        %v1934 = vsel %vm521, %v1719, %v1721
        %v1935 = vsel %vm521, %v1721, %v1723
        %v1936 = vsel %vm521, %v1723, %v1725
        %v1937 = vsel %vm521, %v1725, %v1727
        %v1938 = vsel %vm521, %v1727, %v1729
        %v1939 = vsel %vm521, %v1731, %v1733
        %v1940 = vsel %vm521, %v1733, %v1735
        %v1941 = vsel %vm521, %v1735, %v1737
        %v1942 = vsel %vm521, %v1737, %v1739
        %v1943 = vsel %vm521, %v1739, %v1741
        %v1944 = vsel %vm521, %v1743, %v1745
        %v1945 = vsel %vm521, %v1745, %v1747
        %v1946 = vsel %vm521, %v1747, %v1749
        %v1947 = vsel %vm521, %v1749, %v1751
        %v1948 = vsel %vm521, %v1751, %v1753
        %v1949 = vsel %vm521, %v1755, %v1757
        %v1950 = vsel %vm521, %v1757, %v1759
        %v1951 = vsel %vm521, %v1759, %v1761
        %v1952 = vsel %vm521, %v1761, %v1763
        %v1953 = vsel %vm521, %v1763, %v1765
        %v1954 = vsel %vm521, %v1767, %v1769
        %v1955 = vsel %vm521, %v1769, %v1771
        %v1956 = vsel %vm521, %v1771, %v1773
        %v1957 = vsel %vm521, %v1773, %v1775
        %v1958 = vsel %vm521, %v1775, %v1777
        %v1959 = vsel %vm521, %v1779, %v1781
        %v1960 = vsel %vm521, %v1781, %v1783
        %v1961 = vsel %vm521, %v1783, %v1785
        %v1962 = vsel %vm521, %v1785, %v1787
        %v1963 = vsel %vm521, %v1787, %v1789
        %v1964 = vsel %vm521, %v1791, %v1793
        %v1965 = vsel %vm521, %v1793, %v1795
        %v1966 = vsel %vm521, %v1795, %v1797
        %v1967 = vsel %vm521, %v1797, %v1799
        %v1968 = vsel %vm521, %v1799, %v1801
        %v1969 = vsel %vm521, %v1803, %v1805
        %v1970 = vsel %vm521, %v1805, %v1807
        %v1971 = vsel %vm521, %v1807, %v1809
        %v1972 = vsel %vm521, %v1809, %v1811
        %v1973 = vsel %vm521, %v1811, %v1813
        %v1974 = vsel %vm521, %v1815, %v1817
        %v1975 = vsel %vm521, %v1817, %v1819
        %v1976 = vsel %vm521, %v1819, %v1821
        %v1977 = vsel %vm521, %v1821, %v1823
        %v1978 = vsel %vm521, %v1823, %v1825
        %v1979 = vsel %vm521, %v1827, %v1829
        %v1980 = vsel %vm521, %v1829, %v1831
        %v1981 = vsel %vm521, %v1831, %v1833
        %v1982 = vsel %vm521, %v1833, %v1835
        %v1983 = vsel %vm521, %v1835, %v1837
        %v1984 = vsel %vm521, %v1839, %v1841
        %v1985 = vsel %vm521, %v1841, %v1843
        %v1986 = vsel %vm521, %v1843, %v1845
        %v1987 = vsel %vm521, %v1845, %v1847
        %v1988 = vsel %vm521, %v1847, %v1849
        %v1989 = vsel %vm521, %v1851, %v1853
        %v1990 = vsel %vm521, %v1853, %v1855
        %v1991 = vsel %vm521, %v1855, %v1857
        %v1992 = vsel %vm521, %v1857, %v1859
        %v1993 = vsel %vm521, %v1859, %v1861
        %v1994 = vsel %vm521, %v1863, %v1865
        %v1995 = vsel %vm521, %v1865, %v1867
        %v1996 = vsel %vm521, %v1867, %v1869
        %v1997 = vsel %vm521, %v1869, %v1871
        %v1998 = vsel %vm521, %v1871, %v1873
        %v1999 = vsel %vm521, %v1875, %v1877
        %v2000 = vsel %vm521, %v1877, %v1879
        %v2001 = vsel %vm521, %v1879, %v1881
        %v2002 = vsel %vm521, %v1881, %v1883
        %v2003 = vsel %vm521, %v1883, %v1885
        %v2004 = vsel %vm521, %v1887, %v1889
        %v2005 = vsel %vm521, %v1889, %v1891
        %v2006 = vsel %vm521, %v1891, %v1893
        %v2007 = vsel %vm521, %v1893, %v1895
        %v2008 = vsel %vm521, %v1895, %v1897
        %v2009 = vsel %vm521, %v1899, %v1901
        %v2010 = vsel %vm521, %v1901, %v1903
        %v2011 = vsel %vm521, %v1903, %v1905
        %v2012 = vsel %vm521, %v1905, %v1907
        %v2013 = vsel %vm521, %v1907, %v1909
        %v2014 = vsel %vm521, %v1911, %v1913
        %v2015 = vsel %vm521, %v1913, %v1915
        %v2016 = vsel %vm521, %v1915, %v1917
        %v2017 = vsel %vm521, %v1917, %v1919
        %v2018 = vsel %vm521, %v1919, %v1921
        %v2019 = vsel %vm521, %v1923, %v1925
        %v2020 = vsel %vm521, %v1925, %v1927
        %v2021 = vsel %vm521, %v1927, %v1929
        %v2022 = vsel %vm521, %v1929, %v1931
        %v2023 = vsel %vm521, %v1931, %v1933
        %v2115 = vsel %vm1061, %v1703, 0
        %v2118 = vsel %vm1061, %v1705, 0
        %2120 = vmatprep.subr.mxu0 %v1935
        %2121 = vmatpush1.msra.mxu0 %v1934
        %2122 = vmatprep.subr.mxu0 %v1940
        %2123 = vmatpush1.msra.mxu0 %v1939
        %2124 = vmatprep.subr.mxu0 %v1945
        %2125 = vmatpush1.msra.mxu0 %v1944
        %2126 = vmatprep.subr.mxu0 %v1950
        %2127 = vmatpush1.msra.mxu0 %v1949
        %2128 = vmatprep.subr.mxu0 %v1955
        %2129 = vmatpush1.msra.mxu0 %v1954
        %2130 = vmatprep.subr.mxu0 %v1960
        %2131 = vmatpush1.msra.mxu0 %v1959
        %2132 = vmatprep.subr.mxu0 %v1965
        %2133 = vmatpush1.msra.mxu0 %v1964
        %2134 = vmatprep.subr.mxu0 %v1970
        %2135 = vmatpush1.msra.mxu0 %v1969
        %2136 = vmatprep.subr.mxu0 %v1975
        %2137 = vmatpush1.msra.mxu0 %v1974
        %2138 = vmatprep.subr.mxu0 %v1980
        %2139 = vmatpush1.msra.mxu0 %v1979
        %2140 = vmatprep.subr.mxu0 %v1985
        %2141 = vmatpush1.msra.mxu0 %v1984
        %2142 = vmatprep.subr.mxu0 %v1990
        %2143 = vmatpush1.msra.mxu0 %v1989
        %2144 = vmatprep.subr.mxu0 %v1995
        %2145 = vmatpush1.msra.mxu0 %v1994
        %2146 = vmatprep.subr.mxu0 %v2000
        %2147 = vmatpush1.msra.mxu0 %v1999
        %2148 = vmatprep.subr.mxu0 %v2005
        %2149 = vmatpush1.msra.mxu0 %v2004
        %2150 = vmatprep.subr.mxu0 %v2010
        %2151 = vmatpush1.msra.mxu0 %v2009
        %2152 = vmatprep.subr.mxu0 %v2015
        %2153 = vmatpush1.msra.mxu0 %v2014
        %2154 = vmatprep.subr.mxu0 %v2020
        %2155 = vmatpush1.msra.mxu0 %v2019
        %2156 = vmatprep.subr.mxu0 0.0
        %2157 = vmatpush1.msra.mxu0 0.0
        %2158 = vmatprep.subr.mxu0 0.0
        %2159 = vmatpush1.msra.mxu0 0.0
        %2160 = vmatprep.subr.mxu0 0.0
        %2161 = vmatpush1.msra.mxu0 0.0
        %2162 = vmatprep.subr.mxu0 0.0
        %2163 = vmatpush1.msra.mxu0 0.0
        %2164 = vmatprep.subr.mxu0 0.0
        %2165 = vmatpush1.msra.mxu0 0.0
        %2166 = vmatprep.subr.mxu0 0.0
        %2167 = vmatpush1.msra.mxu0 0.0
        %2168 = vmatprep.subr.mxu0 0.0
        %2169 = vmatpush1.msra.mxu0 0.0
        %2170 = vmatprep.subr.mxu0 0.0
        %2171 = vmatpush1.msra.mxu0 0.0
        %2172 = vmatprep.subr.mxu0 0.0
        %2173 = vmatpush1.msra.mxu0 0.0
        %2174 = vmatprep.subr.mxu0 0.0
        %2175 = vmatpush1.msra.mxu0 0.0
        %2176 = vmatprep.subr.mxu0 0.0
        %2177 = vmatpush1.msra.mxu0 0.0
        %2178 = vmatprep.subr.mxu0 0.0
        %2179 = vmatpush1.msra.mxu0 0.0
        %2180 = vmatprep.subr.mxu0 0.0
        %2181 = vmatpush1.msra.mxu0 0.0
        %2182 = vmatprep.subr.mxu0 0.0
        %2183 = vmatpush1.msra.mxu0 0.0
        %2184 = vmatprep.mubr.f32.mxu0 %v2115
        %2185 = vmatmul.mubr.f32.gmra.mrb[0].mxu0 %v1702
        %v2186 = vpop.f32.mrb[0].mxu0
        %v2187 = vadd.f32 %v1711, %v2186
        %v2188 = vpop.f32.mrb[0].mxu0
        %v2189 = vadd.f32 %v1711, %v2188
        %2190 = vmatprep.mubr.f32.mxu0 %v2118
        %2191 = vmatmul.mubr.f32.gmra.mrb[0].mxu0 %v1704
        %v2192 = vpop.f32.mrb[0].mxu0
        %v2193 = vadd.f32 %v1716, %v2192
        %v2194 = vpop.f32.mrb[0].mxu0
        %v2195 = vadd.f32 %v1716, %v2194
        %2196 = vdwg.mxu0
        %2197 = vmatprep.subr.mxu0 %v1937
        %2198 = vmatpush1.msra.mxu0 %v1936
        %2199 = vmatprep.subr.mxu0 %v1942
        %2200 = vmatpush1.msra.mxu0 %v1941
        %2201 = vmatprep.subr.mxu0 %v1947
        %2202 = vmatpush1.msra.mxu0 %v1946
        %2203 = vmatprep.subr.mxu0 %v1952
        %2204 = vmatpush1.msra.mxu0 %v1951
        %2205 = vmatprep.subr.mxu0 %v1957
        %2206 = vmatpush1.msra.mxu0 %v1956
        %2207 = vmatprep.subr.mxu0 %v1962
        %2208 = vmatpush1.msra.mxu0 %v1961
        %2209 = vmatprep.subr.mxu0 %v1967
        %2210 = vmatpush1.msra.mxu0 %v1966
        %2211 = vmatprep.subr.mxu0 %v1972
        %2212 = vmatpush1.msra.mxu0 %v1971
        %2213 = vmatprep.subr.mxu0 %v1977
        %2214 = vmatpush1.msra.mxu0 %v1976
        %2215 = vmatprep.subr.mxu0 %v1982
        %2216 = vmatpush1.msra.mxu0 %v1981
        %2217 = vmatprep.subr.mxu0 %v1987
        %2218 = vmatpush1.msra.mxu0 %v1986
        %2219 = vmatprep.subr.mxu0 %v1992
        %2220 = vmatpush1.msra.mxu0 %v1991
        %2221 = vmatprep.subr.mxu0 %v1997
        %2222 = vmatpush1.msra.mxu0 %v1996
        %2223 = vmatprep.subr.mxu0 %v2002
        %2224 = vmatpush1.msra.mxu0 %v2001
        %2225 = vmatprep.subr.mxu0 %v2007
        %2226 = vmatpush1.msra.mxu0 %v2006
        %2227 = vmatprep.subr.mxu0 %v2012
        %2228 = vmatpush1.msra.mxu0 %v2011
        %2229 = vmatprep.subr.mxu0 %v2017
        %2230 = vmatpush1.msra.mxu0 %v2016
        %2231 = vmatprep.subr.mxu0 %v2022
        %2232 = vmatpush1.msra.mxu0 %v2021
        %2233 = vmatprep.subr.mxu0 0.0
        %2234 = vmatpush1.msra.mxu0 0.0
        %2235 = vmatprep.subr.mxu0 0.0
        %2236 = vmatpush1.msra.mxu0 0.0
        %2237 = vmatprep.subr.mxu0 0.0
        %2238 = vmatpush1.msra.mxu0 0.0
        %2239 = vmatprep.subr.mxu0 0.0
        %2240 = vmatpush1.msra.mxu0 0.0
        %2241 = vmatprep.subr.mxu0 0.0
        %2242 = vmatpush1.msra.mxu0 0.0
        %2243 = vmatprep.subr.mxu0 0.0
        %2244 = vmatpush1.msra.mxu0 0.0
        %2245 = vmatprep.subr.mxu0 0.0
        %2246 = vmatpush1.msra.mxu0 0.0
        %2247 = vmatprep.subr.mxu0 0.0
        %2248 = vmatpush1.msra.mxu0 0.0
        %2249 = vmatprep.subr.mxu0 0.0
        %2250 = vmatpush1.msra.mxu0 0.0
        %2251 = vmatprep.subr.mxu0 0.0
        %2252 = vmatpush1.msra.mxu0 0.0
        %2253 = vmatprep.subr.mxu0 0.0
        %2254 = vmatpush1.msra.mxu0 0.0
        %2255 = vmatprep.subr.mxu0 0.0
        %2256 = vmatpush1.msra.mxu0 0.0
        %2257 = vmatprep.subr.mxu0 0.0
        %2258 = vmatpush1.msra.mxu0 0.0
        %2259 = vmatprep.subr.mxu0 0.0
        %2260 = vmatpush1.msra.mxu0 0.0
        %2261 = vmatprep.mubr.f32.mxu0 %v2115
        %2262 = vmatmul.mubr.f32.gmra.mrb[0].mxu0 %v1702
        %v2263 = vpop.f32.mrb[0].mxu0
        %v2264 = vadd.f32 %v1711, %v2263
        %v2265 = vpop.f32.mrb[0].mxu0
        %v2266 = vadd.f32 %v1711, %v2265
        %2267 = vmatprep.mubr.f32.mxu0 %v2118
        %2268 = vmatmul.mubr.f32.gmra.mrb[0].mxu0 %v1704
        %v2269 = vpop.f32.mrb[0].mxu0
        %v2270 = vadd.f32 %v1716, %v2269
        %v2271 = vpop.f32.mrb[0].mxu0
        %v2272 = vadd.f32 %v1716, %v2271
        %2273 = vdwg.mxu0
        %2274 = vmatprep.subr.mxu0 0.0
        %2275 = vmatpush1.msra.mxu0 %v1938
        %2276 = vmatprep.subr.mxu0 0.0
        %2277 = vmatpush1.msra.mxu0 %v1943
        %2278 = vmatprep.subr.mxu0 0.0
        %2279 = vmatpush1.msra.mxu0 %v1948
        %2280 = vmatprep.subr.mxu0 0.0
        %2281 = vmatpush1.msra.mxu0 %v1953
        %2282 = vmatprep.subr.mxu0 0.0
        %2283 = vmatpush1.msra.mxu0 %v1958
        %2284 = vmatprep.subr.mxu0 0.0
        %2285 = vmatpush1.msra.mxu0 %v1963
        %2286 = vmatprep.subr.mxu0 0.0
        %2287 = vmatpush1.msra.mxu0 %v1968
        %2288 = vmatprep.subr.mxu0 0.0
        %2289 = vmatpush1.msra.mxu0 %v1973
        %2290 = vmatprep.subr.mxu0 0.0
        %2291 = vmatpush1.msra.mxu0 %v1978
        %2292 = vmatprep.subr.mxu0 0.0
        %2293 = vmatpush1.msra.mxu0 %v1983
        %2294 = vmatprep.subr.mxu0 0.0
        %2295 = vmatpush1.msra.mxu0 %v1988
        %2296 = vmatprep.subr.mxu0 0.0
        %2297 = vmatpush1.msra.mxu0 %v1993
        %2298 = vmatprep.subr.mxu0 0.0
        %2299 = vmatpush1.msra.mxu0 %v1998
        %2300 = vmatprep.subr.mxu0 0.0
        %2301 = vmatpush1.msra.mxu0 %v2003
        %2302 = vmatprep.subr.mxu0 0.0
        %2303 = vmatpush1.msra.mxu0 %v2008
        %2304 = vmatprep.subr.mxu0 0.0
        %2305 = vmatpush1.msra.mxu0 %v2013
        %2306 = vmatprep.subr.mxu0 0.0
        %2307 = vmatpush1.msra.mxu0 %v2018
        %2308 = vmatprep.subr.mxu0 0.0
        %2309 = vmatpush1.msra.mxu0 %v2023
        %2310 = vmatprep.subr.mxu0 0.0
        %2311 = vmatpush1.msra.mxu0 0.0
        %2312 = vmatprep.subr.mxu0 0.0
        %2313 = vmatpush1.msra.mxu0 0.0
        %2314 = vmatprep.subr.mxu0 0.0
        %2315 = vmatpush1.msra.mxu0 0.0
        %2316 = vmatprep.subr.mxu0 0.0
        %2317 = vmatpush1.msra.mxu0 0.0
        %2318 = vmatprep.subr.mxu0 0.0
        %2319 = vmatpush1.msra.mxu0 0.0
        %2320 = vmatprep.subr.mxu0 0.0
        %2321 = vmatpush1.msra.mxu0 0.0
        %2322 = vmatprep.subr.mxu0 0.0
        %2323 = vmatpush1.msra.mxu0 0.0
        %2324 = vmatprep.subr.mxu0 0.0
        %2325 = vmatpush1.msra.mxu0 0.0
        %2326 = vmatprep.subr.mxu0 0.0
        %2327 = vmatpush1.msra.mxu0 0.0
        %2328 = vmatprep.subr.mxu0 0.0
        %2329 = vmatpush1.msra.mxu0 0.0
        %2330 = vmatprep.subr.mxu0 0.0
        %2331 = vmatpush1.msra.mxu0 0.0
        %2332 = vmatprep.subr.mxu0 0.0
        %2333 = vmatpush1.msra.mxu0 0.0
        %2334 = vmatprep.subr.mxu0 0.0
        %2335 = vmatpush1.msra.mxu0 0.0
        %2336 = vmatprep.subr.mxu0 0.0
        %2337 = vmatpush1.msra.mxu0 0.0
        %2338 = vmatprep.mubr.f32.mxu0 %v2115
        %2339 = vmatmul.mubr.f32.gmra.mrb[0].mxu0 %v1702
        %v2340 = vpop.f32.mrb[0].mxu0
        %v2341 = vadd.f32 %v1711, %v2340
        %v2342 = vpop.f32.mrb[0].mxu0
        %2343 = vmatprep.mubr.f32.mxu0 %v2118
        %2344 = vmatmul.mubr.f32.gmra.mrb[0].mxu0 %v1704
        %v2345 = vpop.f32.mrb[0].mxu0
        %v2346 = vadd.f32 %v1716, %v2345
        %v2347 = vpop.f32.mrb[0].mxu0
        %2348 = vdwg.mxu0
        %v2349 = vmax.f32 %v2187, 0.0
        %v2350 = vmax.f32 %v2189, 0.0
        %v2351 = vmax.f32 %v2264, 0.0
        %v2352 = vmax.f32 %v2266, 0.0
        %v2353 = vmax.f32 %v2341, 0.0
        %v2354 = vmax.f32 %v2193, 0.0
        %v2355 = vmax.f32 %v2195, 0.0
        %v2356 = vmax.f32 %v2270, 0.0
        %v2357 = vmax.f32 %v2272, 0.0
        %v2358 = vmax.f32 %v2346, 0.0
        %v2359 = vmul.f32 %v2349, %v1311
        %v2360 = vmul.f32 %v2350, %v1315
        %v2361 = vmul.f32 %v2351, %v1319
        %v2362 = vmul.f32 %v2352, %v1323
        %v2363 = vmul.f32 %v2353, %v1327
        %v2364 = vmul.f32 %v2354, %v1311
        %v2365 = vmul.f32 %v2355, %v1315
        %v2366 = vmul.f32 %v2356, %v1319
        %v2367 = vmul.f32 %v2357, %v1323
        %v2368 = vmul.f32 %v2358, %v1327
        %2369 = vst [vmem:[#allocation2 + $0x8] sm:$0xff] %v2359
        %2370 = vst [vmem:[#allocation2 + $0x10] sm:$0xff] %v2360
        %2371 = vst [vmem:[#allocation2 + $0x18] sm:$0xff] %v2361
        %2372 = vst [vmem:[#allocation2 + $0x20] sm:$0xff] %v2362
        %2373 = vst [vmem:[#allocation2 + $0x28] sm:$0xff] %v2363
        %2374 = vst [vmem:[#allocation2 + $0x40] sm:$0xff] %v2364
        %2375 = vst [vmem:[#allocation2 + $0x48] sm:$0xff] %v2365
        %2376 = vst [vmem:[#allocation2 + $0x50] sm:$0xff] %v2366
        %2377 = vst [vmem:[#allocation2 + $0x58] sm:$0xff] %v2367
        %2378 = vst [vmem:[#allocation2 + $0x60] sm:$0xff] %v2368
        %v2379 = vld [vmem:[#allocation2] sm:$0xff]
        %v2380 = vld [vmem:[#allocation2 + $0x8] sm:$0xff]
        %v2381 = vld [vmem:[#allocation2 + $0x10] sm:$0xff]
        %v2382 = vld [vmem:[#allocation2 + $0x18] sm:$0xff]
        %v2383 = vld [vmem:[#allocation2 + $0x20] sm:$0xff]
        %v2384 = vld [vmem:[#allocation2 + $0x28] sm:$0xff]
        %v2385 = vld [vmem:[#allocation2 + $0x38] sm:$0xff]
        %v2386 = vld [vmem:[#allocation2 + $0x40] sm:$0xff]
        %v2387 = vld [vmem:[#allocation2 + $0x48] sm:$0xff]
        %v2388 = vld [vmem:[#allocation2 + $0x50] sm:$0xff]
        %v2389 = vld [vmem:[#allocation2 + $0x58] sm:$0xff]
        %v2390 = vld [vmem:[#allocation2 + $0x60] sm:$0xff]
        %v2391 = vld [vmem:[#allocation2 + $0x8] sm:$0xff]
        %v2392 = vld [vmem:[#allocation2 + $0x10] sm:$0xff]
        %v2393 = vld [vmem:[#allocation2 + $0x18] sm:$0xff]
        %v2394 = vld [vmem:[#allocation2 + $0x20] sm:$0xff]
        %v2395 = vld [vmem:[#allocation2 + $0x28] sm:$0xff]
        %v2396 = vld [vmem:[#allocation2 + $0x30] sm:$0xff]
        %v2397 = vld [vmem:[#allocation2 + $0x40] sm:$0xff]
        %v2398 = vld [vmem:[#allocation2 + $0x48] sm:$0xff]
        %v2399 = vld [vmem:[#allocation2 + $0x50] sm:$0xff]
        %v2400 = vld [vmem:[#allocation2 + $0x58] sm:$0xff]
        %v2401 = vld [vmem:[#allocation2 + $0x60] sm:$0xff]
        %v2402 = vld [vmem:[#allocation2 + $0x68] sm:$0xff]
        %2415 = vrot.lane.b32.xlu0 %v2379, 127
        %v2416 = vpop.permute.xlu0 %2415
        %2417 = vrot.lane.b32.xlu0 %v2380, 127
        %v2418 = vpop.permute.xlu0 %2417
        %2419 = vrot.lane.b32.xlu0 %v2381, 127
        %v2420 = vpop.permute.xlu0 %2419
        %2421 = vrot.lane.b32.xlu0 %v2382, 127
        %v2422 = vpop.permute.xlu0 %2421
        %2423 = vrot.lane.b32.xlu0 %v2383, 127
        %v2424 = vpop.permute.xlu0 %2423
        %2425 = vrot.lane.b32.xlu0 %v2384, 127
        %v2426 = vpop.permute.xlu0 %2425
        %2427 = vrot.lane.b32.xlu0 %v2385, 127
        %v2428 = vpop.permute.xlu0 %2427
        %2429 = vrot.lane.b32.xlu0 %v2386, 127
        %v2430 = vpop.permute.xlu0 %2429
        %2431 = vrot.lane.b32.xlu0 %v2387, 127
        %v2432 = vpop.permute.xlu0 %2431
        %2433 = vrot.lane.b32.xlu0 %v2388, 127
        %v2434 = vpop.permute.xlu0 %2433
        %2435 = vrot.lane.b32.xlu0 %v2389, 127
        %v2436 = vpop.permute.xlu0 %2435
        %2437 = vrot.lane.b32.xlu0 %v2390, 127
        %v2438 = vpop.permute.xlu0 %2437
        %v2439 = vsel %vm379, %v2416, %v2418
        %v2440 = vsel %vm379, %v2418, %v2420
        %v2441 = vsel %vm379, %v2420, %v2422
        %v2442 = vsel %vm379, %v2422, %v2424
        %v2443 = vsel %vm379, %v2424, %v2426
        %v2444 = vsel %vm379, %v2428, %v2430
        %v2445 = vsel %vm379, %v2430, %v2432
        %v2446 = vsel %vm379, %v2432, %v2434
        %v2447 = vsel %vm379, %v2434, %v2436
        %v2448 = vsel %vm379, %v2436, %v2438
        %2449 = vrot.lane.b32.xlu0 %v2379, 126
        %v2450 = vpop.permute.xlu0 %2449
        %2451 = vrot.lane.b32.xlu0 %v2380, 126
        %v2452 = vpop.permute.xlu0 %2451
        %2453 = vrot.lane.b32.xlu0 %v2381, 126
        %v2454 = vpop.permute.xlu0 %2453
        %2455 = vrot.lane.b32.xlu0 %v2382, 126
        %v2456 = vpop.permute.xlu0 %2455
        %2457 = vrot.lane.b32.xlu0 %v2383, 126
        %v2458 = vpop.permute.xlu0 %2457
        %2459 = vrot.lane.b32.xlu0 %v2384, 126
        %v2460 = vpop.permute.xlu0 %2459
        %2461 = vrot.lane.b32.xlu0 %v2385, 126
        %v2462 = vpop.permute.xlu0 %2461
        %2463 = vrot.lane.b32.xlu0 %v2386, 126
        %v2464 = vpop.permute.xlu0 %2463
        %2465 = vrot.lane.b32.xlu0 %v2387, 126
        %v2466 = vpop.permute.xlu0 %2465
        %2467 = vrot.lane.b32.xlu0 %v2388, 126
        %v2468 = vpop.permute.xlu0 %2467
        %2469 = vrot.lane.b32.xlu0 %v2389, 126
        %v2470 = vpop.permute.xlu0 %2469
        %2471 = vrot.lane.b32.xlu0 %v2390, 126
        %v2472 = vpop.permute.xlu0 %2471
        %v2473 = vsel %vm397, %v2450, %v2452
        %v2474 = vsel %vm397, %v2452, %v2454
        %v2475 = vsel %vm397, %v2454, %v2456
        %v2476 = vsel %vm397, %v2456, %v2458
        %v2477 = vsel %vm397, %v2458, %v2460
        %v2478 = vsel %vm397, %v2462, %v2464
        %v2479 = vsel %vm397, %v2464, %v2466
        %v2480 = vsel %vm397, %v2466, %v2468
        %v2481 = vsel %vm397, %v2468, %v2470
        %v2482 = vsel %vm397, %v2470, %v2472
        %2483 = vrot.lane.b32.xlu0 %v2379, 104
        %v2484 = vpop.permute.xlu0 %2483
        %2485 = vrot.lane.b32.xlu0 %v2380, 104
        %v2486 = vpop.permute.xlu0 %2485
        %2487 = vrot.lane.b32.xlu0 %v2381, 104
        %v2488 = vpop.permute.xlu0 %2487
        %2489 = vrot.lane.b32.xlu0 %v2382, 104
        %v2490 = vpop.permute.xlu0 %2489
        %2491 = vrot.lane.b32.xlu0 %v2383, 104
        %v2492 = vpop.permute.xlu0 %2491
        %2493 = vrot.lane.b32.xlu0 %v2384, 104
        %v2494 = vpop.permute.xlu0 %2493
        %2495 = vrot.lane.b32.xlu0 %v2385, 104
        %v2496 = vpop.permute.xlu0 %2495
        %2497 = vrot.lane.b32.xlu0 %v2386, 104
        %v2498 = vpop.permute.xlu0 %2497
        %2499 = vrot.lane.b32.xlu0 %v2387, 104
        %v2500 = vpop.permute.xlu0 %2499
        %2501 = vrot.lane.b32.xlu0 %v2388, 104
        %v2502 = vpop.permute.xlu0 %2501
        %2503 = vrot.lane.b32.xlu0 %v2389, 104
        %v2504 = vpop.permute.xlu0 %2503
        %2505 = vrot.lane.b32.xlu0 %v2390, 104
        %v2506 = vpop.permute.xlu0 %2505
        %v2507 = vsel %vm415, %v2484, %v2486
        %v2508 = vsel %vm415, %v2486, %v2488
        %v2509 = vsel %vm415, %v2488, %v2490
        %v2510 = vsel %vm415, %v2490, %v2492
        %v2511 = vsel %vm415, %v2492, %v2494
        %v2512 = vsel %vm415, %v2496, %v2498
        %v2513 = vsel %vm415, %v2498, %v2500
        %v2514 = vsel %vm415, %v2500, %v2502
        %v2515 = vsel %vm415, %v2502, %v2504
        %v2516 = vsel %vm415, %v2504, %v2506
        %2517 = vrot.lane.b32.xlu0 %v2380, 103
        %v2518 = vpop.permute.xlu0 %2517
        %2519 = vrot.lane.b32.xlu0 %v2381, 103
        %v2520 = vpop.permute.xlu0 %2519
        %2521 = vrot.lane.b32.xlu0 %v2382, 103
        %v2522 = vpop.permute.xlu0 %2521
        %2523 = vrot.lane.b32.xlu0 %v2383, 103
        %v2524 = vpop.permute.xlu0 %2523
        %2525 = vrot.lane.b32.xlu0 %v2384, 103
        %v2526 = vpop.permute.xlu0 %2525
        %2527 = vrot.lane.b32.xlu0 %v2386, 103
        %v2528 = vpop.permute.xlu0 %2527
        %2529 = vrot.lane.b32.xlu0 %v2387, 103
        %v2530 = vpop.permute.xlu0 %2529
        %2531 = vrot.lane.b32.xlu0 %v2388, 103
        %v2532 = vpop.permute.xlu0 %2531
        %2533 = vrot.lane.b32.xlu0 %v2389, 103
        %v2534 = vpop.permute.xlu0 %2533
        %2535 = vrot.lane.b32.xlu0 %v2390, 103
        %v2536 = vpop.permute.xlu0 %2535
        %v2537 = vsel %vm431, %v2518, %v2520
        %v2538 = vsel %vm431, %v2520, %v2522
        %v2539 = vsel %vm431, %v2522, %v2524
        %v2540 = vsel %vm431, %v2524, %v2526
        %v2541 = vsel %vm431, %v2528, %v2530
        %v2542 = vsel %vm431, %v2530, %v2532
        %v2543 = vsel %vm431, %v2532, %v2534
        %v2544 = vsel %vm431, %v2534, %v2536
        %2557 = vrot.lane.b32.xlu0 %v2391, 102
        %v2558 = vpop.permute.xlu0 %2557
        %2559 = vrot.lane.b32.xlu0 %v2392, 102
        %v2560 = vpop.permute.xlu0 %2559
        %2561 = vrot.lane.b32.xlu0 %v2393, 102
        %v2562 = vpop.permute.xlu0 %2561
        %2563 = vrot.lane.b32.xlu0 %v2394, 102
        %v2564 = vpop.permute.xlu0 %2563
        %2565 = vrot.lane.b32.xlu0 %v2395, 102
        %v2566 = vpop.permute.xlu0 %2565
        %2567 = vrot.lane.b32.xlu0 %v2396, 102
        %v2568 = vpop.permute.xlu0 %2567
        %2569 = vrot.lane.b32.xlu0 %v2397, 102
        %v2570 = vpop.permute.xlu0 %2569
        %2571 = vrot.lane.b32.xlu0 %v2398, 102
        %v2572 = vpop.permute.xlu0 %2571
        %2573 = vrot.lane.b32.xlu0 %v2399, 102
        %v2574 = vpop.permute.xlu0 %2573
        %2575 = vrot.lane.b32.xlu0 %v2400, 102
        %v2576 = vpop.permute.xlu0 %2575
        %2577 = vrot.lane.b32.xlu0 %v2401, 102
        %v2578 = vpop.permute.xlu0 %2577
        %2579 = vrot.lane.b32.xlu0 %v2402, 102
        %v2580 = vpop.permute.xlu0 %2579
        %v2581 = vsel %vm449, %v2558, %v2560
        %v2582 = vsel %vm449, %v2560, %v2562
        %v2583 = vsel %vm449, %v2562, %v2564
        %v2584 = vsel %vm449, %v2564, %v2566
        %v2585 = vsel %vm449, %v2566, %v2568
        %v2586 = vsel %vm449, %v2570, %v2572
        %v2587 = vsel %vm449, %v2572, %v2574
        %v2588 = vsel %vm449, %v2574, %v2576
        %v2589 = vsel %vm449, %v2576, %v2578
        %v2590 = vsel %vm449, %v2578, %v2580
        %2591 = vrot.lane.b32.xlu0 %v2391, 80
        %v2592 = vpop.permute.xlu0 %2591
        %2593 = vrot.lane.b32.xlu0 %v2392, 80
        %v2594 = vpop.permute.xlu0 %2593
        %2595 = vrot.lane.b32.xlu0 %v2393, 80
        %v2596 = vpop.permute.xlu0 %2595
        %2597 = vrot.lane.b32.xlu0 %v2394, 80
        %v2598 = vpop.permute.xlu0 %2597
        %2599 = vrot.lane.b32.xlu0 %v2395, 80
        %v2600 = vpop.permute.xlu0 %2599
        %2601 = vrot.lane.b32.xlu0 %v2396, 80
        %v2602 = vpop.permute.xlu0 %2601
        %2603 = vrot.lane.b32.xlu0 %v2397, 80
        %v2604 = vpop.permute.xlu0 %2603
        %2605 = vrot.lane.b32.xlu0 %v2398, 80
        %v2606 = vpop.permute.xlu0 %2605
        %2607 = vrot.lane.b32.xlu0 %v2399, 80
        %v2608 = vpop.permute.xlu0 %2607
        %2609 = vrot.lane.b32.xlu0 %v2400, 80
        %v2610 = vpop.permute.xlu0 %2609
        %2611 = vrot.lane.b32.xlu0 %v2401, 80
        %v2612 = vpop.permute.xlu0 %2611
        %2613 = vrot.lane.b32.xlu0 %v2402, 80
        %v2614 = vpop.permute.xlu0 %2613
        %v2615 = vsel %vm467, %v2592, %v2594
        %v2616 = vsel %vm467, %v2594, %v2596
        %v2617 = vsel %vm467, %v2596, %v2598
        %v2618 = vsel %vm467, %v2598, %v2600
        %v2619 = vsel %vm467, %v2600, %v2602
        %v2620 = vsel %vm467, %v2604, %v2606
        %v2621 = vsel %vm467, %v2606, %v2608
        %v2622 = vsel %vm467, %v2608, %v2610
        %v2623 = vsel %vm467, %v2610, %v2612
        %v2624 = vsel %vm467, %v2612, %v2614
        %2625 = vrot.lane.b32.xlu0 %v2391, 79
        %v2626 = vpop.permute.xlu0 %2625
        %2627 = vrot.lane.b32.xlu0 %v2392, 79
        %v2628 = vpop.permute.xlu0 %2627
        %2629 = vrot.lane.b32.xlu0 %v2393, 79
        %v2630 = vpop.permute.xlu0 %2629
        %2631 = vrot.lane.b32.xlu0 %v2394, 79
        %v2632 = vpop.permute.xlu0 %2631
        %2633 = vrot.lane.b32.xlu0 %v2395, 79
        %v2634 = vpop.permute.xlu0 %2633
        %2635 = vrot.lane.b32.xlu0 %v2396, 79
        %v2636 = vpop.permute.xlu0 %2635
        %2637 = vrot.lane.b32.xlu0 %v2397, 79
        %v2638 = vpop.permute.xlu0 %2637
        %2639 = vrot.lane.b32.xlu0 %v2398, 79
        %v2640 = vpop.permute.xlu0 %2639
        %2641 = vrot.lane.b32.xlu0 %v2399, 79
        %v2642 = vpop.permute.xlu0 %2641
        %2643 = vrot.lane.b32.xlu0 %v2400, 79
        %v2644 = vpop.permute.xlu0 %2643
        %2645 = vrot.lane.b32.xlu0 %v2401, 79
        %v2646 = vpop.permute.xlu0 %2645
        %2647 = vrot.lane.b32.xlu0 %v2402, 79
        %v2648 = vpop.permute.xlu0 %2647
        %v2649 = vsel %vm485, %v2626, %v2628
        %v2650 = vsel %vm485, %v2628, %v2630
        %v2651 = vsel %vm485, %v2630, %v2632
        %v2652 = vsel %vm485, %v2632, %v2634
        %v2653 = vsel %vm485, %v2634, %v2636
        %v2654 = vsel %vm485, %v2638, %v2640
        %v2655 = vsel %vm485, %v2640, %v2642
        %v2656 = vsel %vm485, %v2642, %v2644
        %v2657 = vsel %vm485, %v2644, %v2646
        %v2658 = vsel %vm485, %v2646, %v2648
        %2659 = vrot.lane.b32.xlu0 %v2391, 78
        %v2660 = vpop.permute.xlu0 %2659
        %2661 = vrot.lane.b32.xlu0 %v2392, 78
        %v2662 = vpop.permute.xlu0 %2661
        %2663 = vrot.lane.b32.xlu0 %v2393, 78
        %v2664 = vpop.permute.xlu0 %2663
        %2665 = vrot.lane.b32.xlu0 %v2394, 78
        %v2666 = vpop.permute.xlu0 %2665
        %2667 = vrot.lane.b32.xlu0 %v2395, 78
        %v2668 = vpop.permute.xlu0 %2667
        %2669 = vrot.lane.b32.xlu0 %v2396, 78
        %v2670 = vpop.permute.xlu0 %2669
        %2671 = vrot.lane.b32.xlu0 %v2397, 78
        %v2672 = vpop.permute.xlu0 %2671
        %2673 = vrot.lane.b32.xlu0 %v2398, 78
        %v2674 = vpop.permute.xlu0 %2673
        %2675 = vrot.lane.b32.xlu0 %v2399, 78
        %v2676 = vpop.permute.xlu0 %2675
        %2677 = vrot.lane.b32.xlu0 %v2400, 78
        %v2678 = vpop.permute.xlu0 %2677
        %2679 = vrot.lane.b32.xlu0 %v2401, 78
        %v2680 = vpop.permute.xlu0 %2679
        %2681 = vrot.lane.b32.xlu0 %v2402, 78
        %v2682 = vpop.permute.xlu0 %2681
        %v2683 = vsel %vm503, %v2660, %v2662
        %v2684 = vsel %vm503, %v2662, %v2664
        %v2685 = vsel %vm503, %v2664, %v2666
        %v2686 = vsel %vm503, %v2666, %v2668
        %v2687 = vsel %vm503, %v2668, %v2670
        %v2688 = vsel %vm503, %v2672, %v2674
        %v2689 = vsel %vm503, %v2674, %v2676
        %v2690 = vsel %vm503, %v2676, %v2678
        %v2691 = vsel %vm503, %v2678, %v2680
        %v2692 = vsel %vm503, %v2680, %v2682
        %v2693 = vld [vmem:[%s6] sm:$0xff]
        %v2694 = vld [vmem:[%s6 + $0x8] sm:$0xff]
        %v2695 = vld [vmem:[%s7] sm:$0xff]
        %2697 = vset.pattern.permute.xlu0 0
        %2698 = vperm.xlu0 %2697, %v2695
        %v2699 = vpop.permute.xlu0 %2698
        %2701 = vrot.lane.b32.xlu0 %v2379, 25
        %v2702 = vpop.permute.xlu0 %2701
        %2703 = vrot.lane.b32.xlu0 %v2380, 25
        %v2704 = vpop.permute.xlu0 %2703
        %2705 = vrot.lane.b32.xlu0 %v2381, 25
        %v2706 = vpop.permute.xlu0 %2705
        %2707 = vrot.lane.b32.xlu0 %v2382, 25
        %v2708 = vpop.permute.xlu0 %2707
        %2709 = vrot.lane.b32.xlu0 %v2383, 25
        %v2710 = vpop.permute.xlu0 %2709
        %2711 = vrot.lane.b32.xlu0 %v2384, 25
        %v2712 = vpop.permute.xlu0 %2711
        %2713 = vrot.lane.b32.xlu0 %v2385, 25
        %v2714 = vpop.permute.xlu0 %2713
        %2715 = vrot.lane.b32.xlu0 %v2386, 25
        %v2716 = vpop.permute.xlu0 %2715
        %2717 = vrot.lane.b32.xlu0 %v2387, 25
        %v2718 = vpop.permute.xlu0 %2717
        %2719 = vrot.lane.b32.xlu0 %v2388, 25
        %v2720 = vpop.permute.xlu0 %2719
        %2721 = vrot.lane.b32.xlu0 %v2389, 25
        %v2722 = vpop.permute.xlu0 %2721
        %2723 = vrot.lane.b32.xlu0 %v2390, 25
        %v2724 = vpop.permute.xlu0 %2723
        %2725 = vrot.lane.b32.xlu0 %v2439, 25
        %v2726 = vpop.permute.xlu0 %2725
        %2727 = vrot.lane.b32.xlu0 %v2440, 25
        %v2728 = vpop.permute.xlu0 %2727
        %2729 = vrot.lane.b32.xlu0 %v2441, 25
        %v2730 = vpop.permute.xlu0 %2729
        %2731 = vrot.lane.b32.xlu0 %v2442, 25
        %v2732 = vpop.permute.xlu0 %2731
        %2733 = vrot.lane.b32.xlu0 %v2443, 25
        %v2734 = vpop.permute.xlu0 %2733
        %2735 = vrot.lane.b32.xlu0 %v2426, 25
        %v2736 = vpop.permute.xlu0 %2735
        %2737 = vrot.lane.b32.xlu0 %v2444, 25
        %v2738 = vpop.permute.xlu0 %2737
        %2739 = vrot.lane.b32.xlu0 %v2445, 25
        %v2740 = vpop.permute.xlu0 %2739
        %2741 = vrot.lane.b32.xlu0 %v2446, 25
        %v2742 = vpop.permute.xlu0 %2741
        %2743 = vrot.lane.b32.xlu0 %v2447, 25
        %v2744 = vpop.permute.xlu0 %2743
        %2745 = vrot.lane.b32.xlu0 %v2448, 25
        %v2746 = vpop.permute.xlu0 %2745
        %2747 = vrot.lane.b32.xlu0 %v2438, 25
        %v2748 = vpop.permute.xlu0 %2747
        %2749 = vrot.lane.b32.xlu0 %v2473, 25
        %v2750 = vpop.permute.xlu0 %2749
        %2751 = vrot.lane.b32.xlu0 %v2474, 25
        %v2752 = vpop.permute.xlu0 %2751
        %2753 = vrot.lane.b32.xlu0 %v2475, 25
        %v2754 = vpop.permute.xlu0 %2753
        %2755 = vrot.lane.b32.xlu0 %v2476, 25
        %v2756 = vpop.permute.xlu0 %2755
        %2757 = vrot.lane.b32.xlu0 %v2477, 25
        %v2758 = vpop.permute.xlu0 %2757
        %2759 = vrot.lane.b32.xlu0 %v2460, 25
        %v2760 = vpop.permute.xlu0 %2759
        %2761 = vrot.lane.b32.xlu0 %v2478, 25
        %v2762 = vpop.permute.xlu0 %2761
        %2763 = vrot.lane.b32.xlu0 %v2479, 25
        %v2764 = vpop.permute.xlu0 %2763
        %2765 = vrot.lane.b32.xlu0 %v2480, 25
        %v2766 = vpop.permute.xlu0 %2765
        %2767 = vrot.lane.b32.xlu0 %v2481, 25
        %v2768 = vpop.permute.xlu0 %2767
        %2769 = vrot.lane.b32.xlu0 %v2482, 25
        %v2770 = vpop.permute.xlu0 %2769
        %2771 = vrot.lane.b32.xlu0 %v2472, 25
        %v2772 = vpop.permute.xlu0 %2771
        %2773 = vrot.lane.b32.xlu0 %v2507, 25
        %v2774 = vpop.permute.xlu0 %2773
        %2775 = vrot.lane.b32.xlu0 %v2508, 25
        %v2776 = vpop.permute.xlu0 %2775
        %2777 = vrot.lane.b32.xlu0 %v2509, 25
        %v2778 = vpop.permute.xlu0 %2777
        %2779 = vrot.lane.b32.xlu0 %v2510, 25
        %v2780 = vpop.permute.xlu0 %2779
        %2781 = vrot.lane.b32.xlu0 %v2511, 25
        %v2782 = vpop.permute.xlu0 %2781
        %2783 = vrot.lane.b32.xlu0 %v2494, 25
        %v2784 = vpop.permute.xlu0 %2783
        %2785 = vrot.lane.b32.xlu0 %v2512, 25
        %v2786 = vpop.permute.xlu0 %2785
        %2787 = vrot.lane.b32.xlu0 %v2513, 25
        %v2788 = vpop.permute.xlu0 %2787
        %2789 = vrot.lane.b32.xlu0 %v2514, 25
        %v2790 = vpop.permute.xlu0 %2789
        %2791 = vrot.lane.b32.xlu0 %v2515, 25
        %v2792 = vpop.permute.xlu0 %2791
        %2793 = vrot.lane.b32.xlu0 %v2516, 25
        %v2794 = vpop.permute.xlu0 %2793
        %2795 = vrot.lane.b32.xlu0 %v2506, 25
        %v2796 = vpop.permute.xlu0 %2795
        %2797 = vrot.lane.b32.xlu0 %v2518, 25
        %v2798 = vpop.permute.xlu0 %2797
        %2799 = vrot.lane.b32.xlu0 %v2537, 25
        %v2800 = vpop.permute.xlu0 %2799
        %2801 = vrot.lane.b32.xlu0 %v2538, 25
        %v2802 = vpop.permute.xlu0 %2801
        %2803 = vrot.lane.b32.xlu0 %v2539, 25
        %v2804 = vpop.permute.xlu0 %2803
        %2805 = vrot.lane.b32.xlu0 %v2540, 25
        %v2806 = vpop.permute.xlu0 %2805
        %2807 = vrot.lane.b32.xlu0 %v2526, 25
        %v2808 = vpop.permute.xlu0 %2807
        %2809 = vrot.lane.b32.xlu0 %v2528, 25
        %v2810 = vpop.permute.xlu0 %2809
        %2811 = vrot.lane.b32.xlu0 %v2541, 25
        %v2812 = vpop.permute.xlu0 %2811
        %2813 = vrot.lane.b32.xlu0 %v2542, 25
        %v2814 = vpop.permute.xlu0 %2813
        %2815 = vrot.lane.b32.xlu0 %v2543, 25
        %v2816 = vpop.permute.xlu0 %2815
        %2817 = vrot.lane.b32.xlu0 %v2544, 25
        %v2818 = vpop.permute.xlu0 %2817
        %2819 = vrot.lane.b32.xlu0 %v2536, 25
        %v2820 = vpop.permute.xlu0 %2819
        %2821 = vrot.lane.b32.xlu0 %v2558, 25
        %v2822 = vpop.permute.xlu0 %2821
        %2823 = vrot.lane.b32.xlu0 %v2581, 25
        %v2824 = vpop.permute.xlu0 %2823
        %2825 = vrot.lane.b32.xlu0 %v2582, 25
        %v2826 = vpop.permute.xlu0 %2825
        %2827 = vrot.lane.b32.xlu0 %v2583, 25
        %v2828 = vpop.permute.xlu0 %2827
        %2829 = vrot.lane.b32.xlu0 %v2584, 25
        %v2830 = vpop.permute.xlu0 %2829
        %2831 = vrot.lane.b32.xlu0 %v2585, 25
        %v2832 = vpop.permute.xlu0 %2831
        %2833 = vrot.lane.b32.xlu0 %v2570, 25
        %v2834 = vpop.permute.xlu0 %2833
        %2835 = vrot.lane.b32.xlu0 %v2586, 25
        %v2836 = vpop.permute.xlu0 %2835
        %2837 = vrot.lane.b32.xlu0 %v2587, 25
        %v2838 = vpop.permute.xlu0 %2837
        %2839 = vrot.lane.b32.xlu0 %v2588, 25
        %v2840 = vpop.permute.xlu0 %2839
        %2841 = vrot.lane.b32.xlu0 %v2589, 25
        %v2842 = vpop.permute.xlu0 %2841
        %2843 = vrot.lane.b32.xlu0 %v2590, 25
        %v2844 = vpop.permute.xlu0 %2843
        %2845 = vrot.lane.b32.xlu0 %v2592, 25
        %v2846 = vpop.permute.xlu0 %2845
        %2847 = vrot.lane.b32.xlu0 %v2615, 25
        %v2848 = vpop.permute.xlu0 %2847
        %2849 = vrot.lane.b32.xlu0 %v2616, 25
        %v2850 = vpop.permute.xlu0 %2849
        %2851 = vrot.lane.b32.xlu0 %v2617, 25
        %v2852 = vpop.permute.xlu0 %2851
        %2853 = vrot.lane.b32.xlu0 %v2618, 25
        %v2854 = vpop.permute.xlu0 %2853
        %2855 = vrot.lane.b32.xlu0 %v2619, 25
        %v2856 = vpop.permute.xlu0 %2855
        %2857 = vrot.lane.b32.xlu0 %v2604, 25
        %v2858 = vpop.permute.xlu0 %2857
        %2859 = vrot.lane.b32.xlu0 %v2620, 25
        %v2860 = vpop.permute.xlu0 %2859
        %2861 = vrot.lane.b32.xlu0 %v2621, 25
        %v2862 = vpop.permute.xlu0 %2861
        %2863 = vrot.lane.b32.xlu0 %v2622, 25
        %v2864 = vpop.permute.xlu0 %2863
        %2865 = vrot.lane.b32.xlu0 %v2623, 25
        %v2866 = vpop.permute.xlu0 %2865
        %2867 = vrot.lane.b32.xlu0 %v2624, 25
        %v2868 = vpop.permute.xlu0 %2867
        %2869 = vrot.lane.b32.xlu0 %v2626, 25
        %v2870 = vpop.permute.xlu0 %2869
        %2871 = vrot.lane.b32.xlu0 %v2649, 25
        %v2872 = vpop.permute.xlu0 %2871
        %2873 = vrot.lane.b32.xlu0 %v2650, 25
        %v2874 = vpop.permute.xlu0 %2873
        %2875 = vrot.lane.b32.xlu0 %v2651, 25
        %v2876 = vpop.permute.xlu0 %2875
        %2877 = vrot.lane.b32.xlu0 %v2652, 25
        %v2878 = vpop.permute.xlu0 %2877
        %2879 = vrot.lane.b32.xlu0 %v2653, 25
        %v2880 = vpop.permute.xlu0 %2879
        %2881 = vrot.lane.b32.xlu0 %v2638, 25
        %v2882 = vpop.permute.xlu0 %2881
        %2883 = vrot.lane.b32.xlu0 %v2654, 25
        %v2884 = vpop.permute.xlu0 %2883
        %2885 = vrot.lane.b32.xlu0 %v2655, 25
        %v2886 = vpop.permute.xlu0 %2885
        %2887 = vrot.lane.b32.xlu0 %v2656, 25
        %v2888 = vpop.permute.xlu0 %2887
        %2889 = vrot.lane.b32.xlu0 %v2657, 25
        %v2890 = vpop.permute.xlu0 %2889
        %2891 = vrot.lane.b32.xlu0 %v2658, 25
        %v2892 = vpop.permute.xlu0 %2891
        %2893 = vrot.lane.b32.xlu0 %v2660, 25
        %v2894 = vpop.permute.xlu0 %2893
        %2895 = vrot.lane.b32.xlu0 %v2683, 25
        %v2896 = vpop.permute.xlu0 %2895
        %2897 = vrot.lane.b32.xlu0 %v2684, 25
        %v2898 = vpop.permute.xlu0 %2897
        %2899 = vrot.lane.b32.xlu0 %v2685, 25
        %v2900 = vpop.permute.xlu0 %2899
        %2901 = vrot.lane.b32.xlu0 %v2686, 25
        %v2902 = vpop.permute.xlu0 %2901
        %2903 = vrot.lane.b32.xlu0 %v2687, 25
        %v2904 = vpop.permute.xlu0 %2903
        %2905 = vrot.lane.b32.xlu0 %v2672, 25
        %v2906 = vpop.permute.xlu0 %2905
        %2907 = vrot.lane.b32.xlu0 %v2688, 25
        %v2908 = vpop.permute.xlu0 %2907
        %2909 = vrot.lane.b32.xlu0 %v2689, 25
        %v2910 = vpop.permute.xlu0 %2909
        %2911 = vrot.lane.b32.xlu0 %v2690, 25
        %v2912 = vpop.permute.xlu0 %2911
        %2913 = vrot.lane.b32.xlu0 %v2691, 25
        %v2914 = vpop.permute.xlu0 %2913
        %2915 = vrot.lane.b32.xlu0 %v2692, 25
        %v2916 = vpop.permute.xlu0 %2915
        %v2917 = vsel %vm890, %v2702, %v2704
        %v2918 = vsel %vm890, %v2704, %v2706
        %v2919 = vsel %vm890, %v2706, %v2708
        %v2920 = vsel %vm890, %v2708, %v2710
        %v2921 = vsel %vm890, %v2710, %v2712
        %v2922 = vsel %vm890, %v2714, %v2716
        %v2923 = vsel %vm890, %v2716, %v2718
        %v2924 = vsel %vm890, %v2718, %v2720
        %v2925 = vsel %vm890, %v2720, %v2722
        %v2926 = vsel %vm890, %v2722, %v2724
        %v2927 = vsel %vm890, %v2726, %v2728
        %v2928 = vsel %vm890, %v2728, %v2730
        %v2929 = vsel %vm890, %v2730, %v2732
        %v2930 = vsel %vm890, %v2732, %v2734
        %v2931 = vsel %vm890, %v2734, %v2736
        %v2932 = vsel %vm890, %v2738, %v2740
        %v2933 = vsel %vm890, %v2740, %v2742
        %v2934 = vsel %vm890, %v2742, %v2744
        %v2935 = vsel %vm890, %v2744, %v2746
        %v2936 = vsel %vm890, %v2746, %v2748
        %v2937 = vsel %vm890, %v2750, %v2752
        %v2938 = vsel %vm890, %v2752, %v2754
        %v2939 = vsel %vm890, %v2754, %v2756
        %v2940 = vsel %vm890, %v2756, %v2758
        %v2941 = vsel %vm890, %v2758, %v2760
        %v2942 = vsel %vm890, %v2762, %v2764
        %v2943 = vsel %vm890, %v2764, %v2766
        %v2944 = vsel %vm890, %v2766, %v2768
        %v2945 = vsel %vm890, %v2768, %v2770
        %v2946 = vsel %vm890, %v2770, %v2772
        %v2947 = vsel %vm890, %v2774, %v2776
        %v2948 = vsel %vm890, %v2776, %v2778
        %v2949 = vsel %vm890, %v2778, %v2780
        %v2950 = vsel %vm890, %v2780, %v2782
        %v2951 = vsel %vm890, %v2782, %v2784
        %v2952 = vsel %vm890, %v2786, %v2788
        %v2953 = vsel %vm890, %v2788, %v2790
        %v2954 = vsel %vm890, %v2790, %v2792
        %v2955 = vsel %vm890, %v2792, %v2794
        %v2956 = vsel %vm890, %v2794, %v2796
        %v2957 = vsel %vm890, %v2798, %v2800
        %v2958 = vsel %vm890, %v2800, %v2802
        %v2959 = vsel %vm890, %v2802, %v2804
        %v2960 = vsel %vm890, %v2804, %v2806
        %v2961 = vsel %vm890, %v2806, %v2808
        %v2962 = vsel %vm890, %v2810, %v2812
        %v2963 = vsel %vm890, %v2812, %v2814
        %v2964 = vsel %vm890, %v2814, %v2816
        %v2965 = vsel %vm890, %v2816, %v2818
        %v2966 = vsel %vm890, %v2818, %v2820
        %v2967 = vsel %vm890, %v2822, %v2824
        %v2968 = vsel %vm890, %v2824, %v2826
        %v2969 = vsel %vm890, %v2826, %v2828
        %v2970 = vsel %vm890, %v2828, %v2830
        %v2971 = vsel %vm890, %v2830, %v2832
        %v2972 = vsel %vm890, %v2834, %v2836
        %v2973 = vsel %vm890, %v2836, %v2838
        %v2974 = vsel %vm890, %v2838, %v2840
        %v2975 = vsel %vm890, %v2840, %v2842
        %v2976 = vsel %vm890, %v2842, %v2844
        %v2977 = vsel %vm890, %v2846, %v2848
        %v2978 = vsel %vm890, %v2848, %v2850
        %v2979 = vsel %vm890, %v2850, %v2852
        %v2980 = vsel %vm890, %v2852, %v2854
        %v2981 = vsel %vm890, %v2854, %v2856
        %v2982 = vsel %vm890, %v2858, %v2860
        %v2983 = vsel %vm890, %v2860, %v2862
        %v2984 = vsel %vm890, %v2862, %v2864
        %v2985 = vsel %vm890, %v2864, %v2866
        %v2986 = vsel %vm890, %v2866, %v2868
        %v2987 = vsel %vm890, %v2870, %v2872
        %v2988 = vsel %vm890, %v2872, %v2874
        %v2989 = vsel %vm890, %v2874, %v2876
        %v2990 = vsel %vm890, %v2876, %v2878
        %v2991 = vsel %vm890, %v2878, %v2880
        %v2992 = vsel %vm890, %v2882, %v2884
        %v2993 = vsel %vm890, %v2884, %v2886
        %v2994 = vsel %vm890, %v2886, %v2888
        %v2995 = vsel %vm890, %v2888, %v2890
        %v2996 = vsel %vm890, %v2890, %v2892
        %v2997 = vsel %vm890, %v2894, %v2896
        %v2998 = vsel %vm890, %v2896, %v2898
        %v2999 = vsel %vm890, %v2898, %v2900
        %v3000 = vsel %vm890, %v2900, %v2902
        %v3001 = vsel %vm890, %v2902, %v2904
        %v3002 = vsel %vm890, %v2906, %v2908
        %v3003 = vsel %vm890, %v2908, %v2910
        %v3004 = vsel %vm890, %v2910, %v2912
        %v3005 = vsel %vm890, %v2912, %v2914
        %v3006 = vsel %vm890, %v2914, %v2916
        %v3098 = vsel %vm1061, %v2694, 0
        %3100 = vmatprep.subr.mxu0 %v2918
        %3101 = vmatpush1.msra.mxu0 %v2917
        %3102 = vmatprep.subr.mxu0 %v2923
        %3103 = vmatpush1.msra.mxu0 %v2922
        %3104 = vmatprep.subr.mxu0 %v2928
        %3105 = vmatpush1.msra.mxu0 %v2927
        %3106 = vmatprep.subr.mxu0 %v2933
        %3107 = vmatpush1.msra.mxu0 %v2932
        %3108 = vmatprep.subr.mxu0 %v2938
        %3109 = vmatpush1.msra.mxu0 %v2937
        %3110 = vmatprep.subr.mxu0 %v2943
        %3111 = vmatpush1.msra.mxu0 %v2942
        %3112 = vmatprep.subr.mxu0 %v2948
        %3113 = vmatpush1.msra.mxu0 %v2947
        %3114 = vmatprep.subr.mxu0 %v2953
        %3115 = vmatpush1.msra.mxu0 %v2952
        %3116 = vmatprep.subr.mxu0 %v2958
        %3117 = vmatpush1.msra.mxu0 %v2957
        %3118 = vmatprep.subr.mxu0 %v2963
        %3119 = vmatpush1.msra.mxu0 %v2962
        %3120 = vmatprep.subr.mxu0 %v2968
        %3121 = vmatpush1.msra.mxu0 %v2967
        %3122 = vmatprep.subr.mxu0 %v2973
        %3123 = vmatpush1.msra.mxu0 %v2972
        %3124 = vmatprep.subr.mxu0 %v2978
        %3125 = vmatpush1.msra.mxu0 %v2977
        %3126 = vmatprep.subr.mxu0 %v2983
        %3127 = vmatpush1.msra.mxu0 %v2982
        %3128 = vmatprep.subr.mxu0 %v2988
        %3129 = vmatpush1.msra.mxu0 %v2987
        %3130 = vmatprep.subr.mxu0 %v2993
        %3131 = vmatpush1.msra.mxu0 %v2992
        %3132 = vmatprep.subr.mxu0 %v2998
        %3133 = vmatpush1.msra.mxu0 %v2997
        %3134 = vmatprep.subr.mxu0 %v3003
        %3135 = vmatpush1.msra.mxu0 %v3002
        %3136 = vmatprep.subr.mxu0 0.0
        %3137 = vmatpush1.msra.mxu0 0.0
        %3138 = vmatprep.subr.mxu0 0.0
        %3139 = vmatpush1.msra.mxu0 0.0
        %3140 = vmatprep.subr.mxu0 0.0
        %3141 = vmatpush1.msra.mxu0 0.0
        %3142 = vmatprep.subr.mxu0 0.0
        %3143 = vmatpush1.msra.mxu0 0.0
        %3144 = vmatprep.subr.mxu0 0.0
        %3145 = vmatpush1.msra.mxu0 0.0
        %3146 = vmatprep.subr.mxu0 0.0
        %3147 = vmatpush1.msra.mxu0 0.0
        %3148 = vmatprep.subr.mxu0 0.0
        %3149 = vmatpush1.msra.mxu0 0.0
        %3150 = vmatprep.subr.mxu0 0.0
        %3151 = vmatpush1.msra.mxu0 0.0
        %3152 = vmatprep.subr.mxu0 0.0
        %3153 = vmatpush1.msra.mxu0 0.0
        %3154 = vmatprep.subr.mxu0 0.0
        %3155 = vmatpush1.msra.mxu0 0.0
        %3156 = vmatprep.subr.mxu0 0.0
        %3157 = vmatpush1.msra.mxu0 0.0
        %3158 = vmatprep.subr.mxu0 0.0
        %3159 = vmatpush1.msra.mxu0 0.0
        %3160 = vmatprep.subr.mxu0 0.0
        %3161 = vmatpush1.msra.mxu0 0.0
        %3162 = vmatprep.subr.mxu0 0.0
        %3163 = vmatpush1.msra.mxu0 0.0
        %3164 = vmatprep.mubr.f32.mxu0 %v3098
        %3165 = vmatmul.mubr.f32.gmra.mrb[0].mxu0 %v2693
        %v3166 = vpop.f32.mrb[0].mxu0
        %v3167 = vadd.f32 %v2699, %v3166
        %v3168 = vpop.f32.mrb[0].mxu0
        %v3169 = vadd.f32 %v2699, %v3168
        %3170 = vdwg.mxu0
        %3171 = vmatprep.subr.mxu0 %v2920
        %3172 = vmatpush1.msra.mxu0 %v2919
        %3173 = vmatprep.subr.mxu0 %v2925
        %3174 = vmatpush1.msra.mxu0 %v2924
        %3175 = vmatprep.subr.mxu0 %v2930
        %3176 = vmatpush1.msra.mxu0 %v2929
        %3177 = vmatprep.subr.mxu0 %v2935
        %3178 = vmatpush1.msra.mxu0 %v2934
        %3179 = vmatprep.subr.mxu0 %v2940
        %3180 = vmatpush1.msra.mxu0 %v2939
        %3181 = vmatprep.subr.mxu0 %v2945
        %3182 = vmatpush1.msra.mxu0 %v2944
        %3183 = vmatprep.subr.mxu0 %v2950
        %3184 = vmatpush1.msra.mxu0 %v2949
        %3185 = vmatprep.subr.mxu0 %v2955
        %3186 = vmatpush1.msra.mxu0 %v2954
        %3187 = vmatprep.subr.mxu0 %v2960
        %3188 = vmatpush1.msra.mxu0 %v2959
        %3189 = vmatprep.subr.mxu0 %v2965
        %3190 = vmatpush1.msra.mxu0 %v2964
        %3191 = vmatprep.subr.mxu0 %v2970
        %3192 = vmatpush1.msra.mxu0 %v2969
        %3193 = vmatprep.subr.mxu0 %v2975
        %3194 = vmatpush1.msra.mxu0 %v2974
        %3195 = vmatprep.subr.mxu0 %v2980
        %3196 = vmatpush1.msra.mxu0 %v2979
        %3197 = vmatprep.subr.mxu0 %v2985
        %3198 = vmatpush1.msra.mxu0 %v2984
        %3199 = vmatprep.subr.mxu0 %v2990
        %3200 = vmatpush1.msra.mxu0 %v2989
        %3201 = vmatprep.subr.mxu0 %v2995
        %3202 = vmatpush1.msra.mxu0 %v2994
        %3203 = vmatprep.subr.mxu0 %v3000
        %3204 = vmatpush1.msra.mxu0 %v2999
        %3205 = vmatprep.subr.mxu0 %v3005
        %3206 = vmatpush1.msra.mxu0 %v3004
        %3207 = vmatprep.subr.mxu0 0.0
        %3208 = vmatpush1.msra.mxu0 0.0
        %3209 = vmatprep.subr.mxu0 0.0
        %3210 = vmatpush1.msra.mxu0 0.0
        %3211 = vmatprep.subr.mxu0 0.0
        %3212 = vmatpush1.msra.mxu0 0.0
        %3213 = vmatprep.subr.mxu0 0.0
        %3214 = vmatpush1.msra.mxu0 0.0
        %3215 = vmatprep.subr.mxu0 0.0
        %3216 = vmatpush1.msra.mxu0 0.0
        %3217 = vmatprep.subr.mxu0 0.0
        %3218 = vmatpush1.msra.mxu0 0.0
        %3219 = vmatprep.subr.mxu0 0.0
        %3220 = vmatpush1.msra.mxu0 0.0
        %3221 = vmatprep.subr.mxu0 0.0
        %3222 = vmatpush1.msra.mxu0 0.0
        %3223 = vmatprep.subr.mxu0 0.0
        %3224 = vmatpush1.msra.mxu0 0.0
        %3225 = vmatprep.subr.mxu0 0.0
        %3226 = vmatpush1.msra.mxu0 0.0
        %3227 = vmatprep.subr.mxu0 0.0
        %3228 = vmatpush1.msra.mxu0 0.0
        %3229 = vmatprep.subr.mxu0 0.0
        %3230 = vmatpush1.msra.mxu0 0.0
        %3231 = vmatprep.subr.mxu0 0.0
        %3232 = vmatpush1.msra.mxu0 0.0
        %3233 = vmatprep.subr.mxu0 0.0
        %3234 = vmatpush1.msra.mxu0 0.0
        %3235 = vmatprep.mubr.f32.mxu0 %v3098
        %3236 = vmatmul.mubr.f32.gmra.mrb[0].mxu0 %v2693
        %v3237 = vpop.f32.mrb[0].mxu0
        %v3238 = vadd.f32 %v2699, %v3237
        %v3239 = vpop.f32.mrb[0].mxu0
        %v3240 = vadd.f32 %v2699, %v3239
        %3241 = vdwg.mxu0
        %3242 = vmatprep.subr.mxu0 0.0
        %3243 = vmatpush1.msra.mxu0 %v2921
        %3244 = vmatprep.subr.mxu0 0.0
        %3245 = vmatpush1.msra.mxu0 %v2926
        %3246 = vmatprep.subr.mxu0 0.0
        %3247 = vmatpush1.msra.mxu0 %v2931
        %3248 = vmatprep.subr.mxu0 0.0
        %3249 = vmatpush1.msra.mxu0 %v2936
        %3250 = vmatprep.subr.mxu0 0.0
        %3251 = vmatpush1.msra.mxu0 %v2941
        %3252 = vmatprep.subr.mxu0 0.0
        %3253 = vmatpush1.msra.mxu0 %v2946
        %3254 = vmatprep.subr.mxu0 0.0
        %3255 = vmatpush1.msra.mxu0 %v2951
        %3256 = vmatprep.subr.mxu0 0.0
        %3257 = vmatpush1.msra.mxu0 %v2956
        %3258 = vmatprep.subr.mxu0 0.0
        %3259 = vmatpush1.msra.mxu0 %v2961
        %3260 = vmatprep.subr.mxu0 0.0
        %3261 = vmatpush1.msra.mxu0 %v2966
        %3262 = vmatprep.subr.mxu0 0.0
        %3263 = vmatpush1.msra.mxu0 %v2971
        %3264 = vmatprep.subr.mxu0 0.0
        %3265 = vmatpush1.msra.mxu0 %v2976
        %3266 = vmatprep.subr.mxu0 0.0
        %3267 = vmatpush1.msra.mxu0 %v2981
        %3268 = vmatprep.subr.mxu0 0.0
        %3269 = vmatpush1.msra.mxu0 %v2986
        %3270 = vmatprep.subr.mxu0 0.0
        %3271 = vmatpush1.msra.mxu0 %v2991
        %3272 = vmatprep.subr.mxu0 0.0
        %3273 = vmatpush1.msra.mxu0 %v2996
        %3274 = vmatprep.subr.mxu0 0.0
        %3275 = vmatpush1.msra.mxu0 %v3001
        %3276 = vmatprep.subr.mxu0 0.0
        %3277 = vmatpush1.msra.mxu0 %v3006
        %3278 = vmatprep.subr.mxu0 0.0
        %3279 = vmatpush1.msra.mxu0 0.0
        %3280 = vmatprep.subr.mxu0 0.0
        %3281 = vmatpush1.msra.mxu0 0.0
        %3282 = vmatprep.subr.mxu0 0.0
        %3283 = vmatpush1.msra.mxu0 0.0
        %3284 = vmatprep.subr.mxu0 0.0
        %3285 = vmatpush1.msra.mxu0 0.0
        %3286 = vmatprep.subr.mxu0 0.0
        %3287 = vmatpush1.msra.mxu0 0.0
        %3288 = vmatprep.subr.mxu0 0.0
        %3289 = vmatpush1.msra.mxu0 0.0
        %3290 = vmatprep.subr.mxu0 0.0
        %3291 = vmatpush1.msra.mxu0 0.0
        %3292 = vmatprep.subr.mxu0 0.0
        %3293 = vmatpush1.msra.mxu0 0.0
        %3294 = vmatprep.subr.mxu0 0.0
        %3295 = vmatpush1.msra.mxu0 0.0
        %3296 = vmatprep.subr.mxu0 0.0
        %3297 = vmatpush1.msra.mxu0 0.0
        %3298 = vmatprep.subr.mxu0 0.0
        %3299 = vmatpush1.msra.mxu0 0.0
        %3300 = vmatprep.subr.mxu0 0.0
        %3301 = vmatpush1.msra.mxu0 0.0
        %3302 = vmatprep.subr.mxu0 0.0
        %3303 = vmatpush1.msra.mxu0 0.0
        %3304 = vmatprep.subr.mxu0 0.0
        %3305 = vmatpush1.msra.mxu0 0.0
        %3306 = vmatprep.mubr.f32.mxu0 %v3098
        %3307 = vmatmul.mubr.f32.gmra.mrb[0].mxu0 %v2693
        %v3308 = vpop.f32.mrb[0].mxu0
        %v3309 = vadd.f32 %v2699, %v3308
        %v3310 = vpop.f32.mrb[0].mxu0
        %3311 = vdwg.mxu0
        %v3312 = vmax.f32 %v3167, 0.0
        %v3313 = vmax.f32 %v3169, 0.0
        %v3314 = vmax.f32 %v3238, 0.0
        %v3315 = vmax.f32 %v3240, 0.0
        %v3316 = vmax.f32 %v3309, 0.0
        %v3317 = vadd.f32 %v3312, %v355
        %v3318 = vadd.f32 %v3313, %v356
        %v3319 = vadd.f32 %v3314, %v357
        %v3320 = vadd.f32 %v3315, %v358
        %v3321 = vadd.f32 %v3316, %v359
        %3322 = vst [vmem:[%s348] sm:$0xff] %v3317
        %3323 = vst [vmem:[%s348 + $0x8] sm:$0xff] %v3318
        %3324 = vst [vmem:[%s348 + $0x10] sm:$0xff] %v3319
        %3325 = vst [vmem:[%s348 + $0x18] sm:$0xff] %v3320
        %3326 = vst [vmem:[%s348 + $0x20] sm:$0xff] %v3321
        %s3327 = sand.u32 %s207, 1
        %s3328 = scalar_lea.sflag [#allocation5], %s3327
        %s3329 = sand.u32 %s207, 1
        %s3330 = smul.addr %s3329, 40
        %s3331 = scalar_lea.vmem [#allocation9], %s3330
        // Predicated region
        $region65: #{tpu_custom_call.1} parent=51 // pred_check
          %p3332 = pneg %p217
        $region66: #{tpu_custom_call.1} parent=51 // pred_check_branch
          %3334 = sbr.rel (%p3332) target = $region68
        $region67: #{tpu_custom_call.1} parent=51 // pred_region
          %s3336 = ssub.s32 640, 640
          %3337 = vsyncadd %s3328, %s3336
          %s3338 = smul.addr %s26, 5
          %s3339 = smul.addr %s3338, 128
          %s3340 = scalar_lea.hbm %s8, %s3339
          %s3342 = sshll.u32 %s3331, 4
          %s3343 = int_to_ptr.vmem [resolvable:$true] %s3342
          %3345 = dma.vmem_to_hbm [thread:$0]  %s3343, 640, %s3340, %s3328
        $region68: #{tpu_custom_call.1} parent=51 // pred_fallthru
          _
      $region52: #{tpu_custom_call.1} parent=5 // pred_fallthru
        _
      %p3346 = scmp.le.s32.totalorder 2, %s21
      // Predicated region
      $region69: #{tpu_custom_call.1} parent=5 // pred_check
        %p3347 = pneg %p3346
      $region70: #{tpu_custom_call.1} parent=5 // pred_check_branch
        %3349 = sbr.rel (%p3347) target = $region72
      $region71: #{tpu_custom_call.1} parent=5 // pred_region
        %s3350 = ssub.s32 %s21, 2
        // Predicated region
        $region73: #{tpu_custom_call.1} parent=71 // pred_check
          %p3351 = pneg %p223
        $region74: #{tpu_custom_call.1} parent=71 // pred_check_branch
          %3353 = sbr.rel (%p3351) target = $region76
        $region75: #{tpu_custom_call.1} parent=71 // pred_region
          %s3354 = sand.u32 %s208, 1
          %s3355 = scalar_lea.sflag [#allocation5], %s3354
          %s3356 = sand.u32 %s208, 1
          %s3357 = smul.addr %s3356, 40
          %s3358 = scalar_lea.vmem [#allocation9], %s3357
          %3359 = dma.done %s3355, 640
        $region76: #{tpu_custom_call.1} parent=71 // pred_fallthru
          _
      $region72: #{tpu_custom_call.1} parent=5 // pred_fallthru
        _
    $region6: #{tpu_custom_call.1} parent=1 // loop_footer
      %s25 = sadd.s32 1, %s21
    $region7: #{tpu_custom_call.1} parent=1 // loop_footer_branch
      %20 = sbr.rel target = $region3
    $region8: #{tpu_custom_call.1} parent=1 // loop_exit
      _
    %3360 = vsyncpa [#allocation4], 1
    %s3361 = scalar_lea.sflag [#allocation4], 1
    %3362 = vsyncpa %s3361, 1
    %3363 = vsyncpa [#allocation7], 1
    %s3364 = scalar_lea.sflag [#allocation7], 1
    %3365 = vsyncpa %s3364, 1
    %3366 = vsyncpa [#allocation5], 1
    %s3367 = scalar_lea.sflag [#allocation5], 1
    %3368 = vsyncpa %s3367, 1

</llo_original>
